<compile_context>
chip_gen: v5e
topology: v5e:2x2
jax: 0.10.0
libtpu: 0.0.40
codegen_flags: <defaults>
</compile_context>

<pallas_src>
import numpy as np
import jax
import jax.numpy as jnp
from jax.experimental import pallas as pl
from jax.experimental.pallas import tpu as pltpu


def _round_up(x, m):
    return (x + m - 1) // m * m


def make_lstm_kernel(n_layers, time_block, hp):
    """Build the fused LSTM kernel for a fixed layer count / time chunk / padded hidden size."""
    nw = 3 * n_layers  # (Wx, Wh, b) per layer

    def kernel(*refs):
        x_ref, last_ref = refs[0], refs[1]          # (TC, TB, E) bf16, (TB, E) bf16
        w_refs = refs[2:2 + nw]                     # per layer: Wx (in, 4Hp), Wh (Hp, 4Hp), b (1, 4Hp)
        wo_ref = refs[2 + nw]                       # (Hp, 128) bf16  (padded output head)
        bo_ref = refs[3 + nw]                       # (1, 128) f32
        o_ref = refs[4 + nw]                        # (TB, 128) f32
        state_refs = refs[5 + nw:]
        h_refs = state_refs[:n_layers]              # each (TB, Hp) f32
        c_refs = state_refs[n_layers:]

        t_chunk = pl.program_id(1)

        # Reset carried state at the start of every batch tile's time loop.
        @pl.when(t_chunk == 0)
        def _init():
            for j in range(n_layers):
                h_refs[j][...] = jnp.zeros_like(h_refs[j])
                c_refs[j][...] = jnp.zeros_like(c_refs[j])

        last = last_ref[...]
        wx = [w_refs[3 * j][...] for j in range(n_layers)]        # bf16, loaded once per chunk
        wh = [w_refs[3 * j + 1][...] for j in range(n_layers)]
        bias = [w_refs[3 * j + 2][...] for j in range(n_layers)]  # f32 (1, 4*hp)

        h_val = [h_refs[j][...] for j in range(n_layers)]         # f32 state in registers
        c_val = [c_refs[j][...] for j in range(n_layers)]

        for tt in range(time_block):                # static unroll over the time chunk
            x = x_ref[tt]                           # (TB, E) bf16
            # change_mask: any(emb_t != emb_last) per row -> 1.0 (update) / 0.0 (freeze state)
            neq = (x != last).astype(jnp.float32)
            mask = jnp.minimum(jnp.sum(neq, axis=1, keepdims=True), 1.0)   # (TB, 1)

            xin = x
            for j in range(n_layers):
                z = (jnp.dot(xin, wx[j], preferred_element_type=jnp.float32)
                     + jnp.dot(h_val[j].astype(wx[j].dtype), wh[j],
                               preferred_element_type=jnp.float32)
                     + bias[j])                     # (TB, 4*hp) f32, gates fused in one matmul
                f_g = jax.nn.sigmoid(z[:, 0 * hp:1 * hp])
                i_g = jax.nn.sigmoid(z[:, 1 * hp:2 * hp])
                o_g = jax.nn.sigmoid(z[:, 2 * hp:3 * hp])
                g_g = jnp.tanh(z[:, 3 * hp:4 * hp])
                c_new = c_val[j] * f_g + i_g * g_g
                h_new = o_g * jnp.tanh(c_new)
                # Masked update (rows whose token equals the last token keep their state).
                c_val[j] = c_val[j] + mask * (c_new - c_val[j])
                h_val[j] = h_val[j] + mask * (h_new - h_val[j])
                xin = h_val[j].astype(x.dtype)

        # Write carried state back to VMEM scratch for the next time chunk.
        for j in range(n_layers):
            h_refs[j][...] = h_val[j]
            c_refs[j][...] = c_val[j]

        # Final head only on the last time chunk (output block is resident across the time axis).
        @pl.when(t_chunk == pl.num_programs(1) - 1)
        def _final():
            logits = jnp.dot(h_val[n_layers - 1].astype(wo_ref.dtype), wo_ref[...],
                             preferred_element_type=jnp.float32) + bo_ref[...]
            o_ref[...] = jax.nn.sigmoid(logits)     # column 0 is the real output

    return kernel


def _pack_gate_weights(p, j, e, h, hp):
    """Split xh-concat weights into x / h parts, fuse the 4 gates along columns, pad to hp lanes."""
    in_dim = e if j == 0 else h
    wx_blocks, wh_blocks, b_blocks = [], [], []
    for gname in ("Wfh", "Wih", "Woh", "Wch"):      # gate order: f, i, o, c (matches kernel slices)
        w = p[f"{gname}{j}"]                        # (in_dim + h, h)
        wx_g, wh_g = w[:in_dim, :], w[in_dim:, :]
        b_g = p[f"b{gname[1:]}{j}"]                 # (h,)
        row_pad = (hp - h) if j > 0 else 0          # layer>0 consumes the padded hidden of layer j-1
        wx_blocks.append(jnp.pad(wx_g, ((0, row_pad), (0, hp - h))))
        wh_blocks.append(jnp.pad(wh_g, ((0, hp - h), (0, hp - h))))
        b_blocks.append(jnp.pad(b_g, (0, hp - h)))
    wx = jnp.concatenate(wx_blocks, axis=1).astype(jnp.bfloat16)   # (in_dim[_pad], 4*hp)
    wh = jnp.concatenate(wh_blocks, axis=1).astype(jnp.bfloat16)   # (hp, 4*hp)
    b = jnp.concatenate(b_blocks, axis=0).reshape(1, 4 * hp).astype(jnp.float32)
    return wx, wh, b


def lstm_forward(tokens, params, *, dim_embedding, dim_hidden, n_layers,
                 batch_block=8, time_block=8):
    B, T = tokens.shape
    E, H = dim_embedding, dim_hidden
    HP = _round_up(H, 128)                          # lane-dense hidden / gates
    TB = batch_block
    BP = _round_up(max(B, TB), TB)
    TC = time_block
    TP = _round_up(T, TC)
    n_b, n_t = BP // TB, TP // TC

    # ---- glue (plain JAX): embedding lookup + layout/padding.
    # TODO(synk): the embedding row gather stays as jnp.take instead of an in-kernel
    # scalar-prefetch DMA gather from an HBM-resident table.
    emb = jnp.take(params["emb"], tokens, axis=0).astype(jnp.float32)   # (B, T, E)
    x_seq = jnp.transpose(emb, (1, 0, 2))                               # (T, B, E)
    x_seq = jnp.pad(x_seq, ((0, 0), (0, BP - B), (0, 0))).astype(jnp.bfloat16)  # (T, BP, E)
    emb_last = x_seq[T - 1]                                             # (BP, E)
    if TP > T:
        # Pad time with copies of the last token: its change_mask is all-False => exact no-op steps.
        x_seq = jnp.concatenate(
            [x_seq, jnp.broadcast_to(x_seq[T - 1:T], (TP - T, BP, E))], axis=0)

    in_specs = [
        pl.BlockSpec((TC, TB, E), lambda b, t: (t, b, 0)),   # time-chunk of embeddings (pipelined)
        pl.BlockSpec((TB, E), lambda b, t: (b, 0)),          # last-token embeddings (resident per tile)
    ]
    args = [x_seq, emb_last]
    for j in range(n_layers):
        wx, wh, bb = _pack_gate_weights(params, j, E, H, HP)
        for w in (wx, wh, bb):
            args.append(w)
            in_specs.append(pl.BlockSpec(w.shape, lambda b, t: (0, 0)))   # VMEM-resident weights

    # Output head: pad (H, 1) -> (HP, 128) so the final matmul/store is lane-dense.
    wo_pad = jnp.zeros((HP, 128), jnp.float32).at[:H, 0].set(params["Wo"][:, 0]).astype(jnp.bfloat16)
    bo_pad = jnp.zeros((1, 128), jnp.float32).at[0, 0].set(params["bo"][0])
    args += [wo_pad, bo_pad]
    in_specs += [pl.BlockSpec(wo_pad.shape, lambda b, t: (0, 0)),
                 pl.BlockSpec(bo_pad.shape, lambda b, t: (0, 0))]

    kernel = make_lstm_kernel(n_layers, TC, HP)
    out = pl.pallas_call(
        kernel,
        out_shape=jax.ShapeDtypeStruct((BP, 128), jnp.float32),
        grid_spec=pltpu.PrefetchScalarGridSpec(
            num_scalar_prefetch=0,
            grid=(n_b, n_t),                                   # (batch tiles, time chunks)
            in_specs=in_specs,
            out_specs=pl.BlockSpec((TB, 128), lambda b, t: (b, 0)),
            scratch_shapes=[pltpu.VMEM((TB, HP), jnp.float32)
                            for _ in range(2 * n_layers)],     # h_0..h_{L-1}, c_0..c_{L-1}
        ),
        compiler_params=pltpu.CompilerParams(
            dimension_semantics=("parallel", "arbitrary")),    # batch parallel (2 TCs on v7x), time sequential
    )(*args)
    return out[:B, 0:1]


def init_params(key, dim_embedding, dim_hidden, n_layers, vocab=30000):
    keys = iter(jax.random.split(key, 3 + 8 * n_layers))
    p = {"emb": jax.random.normal(next(keys), (vocab, dim_embedding), jnp.float32)}
    for j in range(n_layers):
        dim_param = dim_embedding + dim_hidden if j == 0 else 2 * dim_hidden
        for g in ("f", "i", "o", "c"):
            p[f"W{g}h{j}"] = 0.1 * jax.random.normal(next(keys), (dim_param, dim_hidden), jnp.float32)
            p[f"b{g}h{j}"] = jax.random.normal(next(keys), (dim_hidden,), jnp.float32)
    p["Wo"] = 0.1 * jax.random.normal(next(keys), (dim_hidden, 1), jnp.float32)
    p["bo"] = jax.random.normal(next(keys), (1,), jnp.float32)
    return p


def ref_forward(tokens, p, *, dim_hidden, n_layers):
    # Pure-JAX f32 reference mirroring the PyTorch forward (masked in-place updates).
    emb = jnp.take(p["emb"], tokens, axis=0)        # (B, T, E)
    B, T, _ = emb.shape
    h = [jnp.zeros((B, dim_hidden), jnp.float32) for _ in range(n_layers)]
    c = [jnp.zeros((B, dim_hidden), jnp.float32) for _ in range(n_layers)]
    last = emb[:, T - 1, :]
    for t in range(T):
        x = emb[:, t, :]
        mask = jnp.any(x != last, axis=1, keepdims=True)
        for j in range(n_layers):
            xh = jnp.concatenate([x, h[j]], axis=1)
            f = jax.nn.sigmoid(xh @ p[f"Wfh{j}"] + p[f"bfh{j}"])
            i = jax.nn.sigmoid(xh @ p[f"Wih{j}"] + p[f"bih{j}"])
            o = jax.nn.sigmoid(xh @ p[f"Woh{j}"] + p[f"boh{j}"])
            g = jnp.tanh(xh @ p[f"Wch{j}"] + p[f"bch{j}"])
            c_new = c[j] * f + i * g
            h_new = o * jnp.tanh(c_new)
            c[j] = jnp.where(mask, c_new, c[j])
            h[j] = jnp.where(mask, h_new, h[j])
            x = h[j]
    return jax.nn.sigmoid(h[-1] @ p["Wo"] + p["bo"])


if __name__ == "__main__":
    DIM_EMBEDDING = 32
    DIM_HIDDEN = 32
    N_LAYERS = 2
    BATCH = 12
    WORDS_COUNT = 10

    key = jax.random.PRNGKey(0)
    kp, kt = jax.random.split(key)
    params = init_params(kp, DIM_EMBEDDING, DIM_HIDDEN, N_LAYERS)
    tokens = jax.random.randint(kt, (BATCH, WORDS_COUNT), 0, 30000, dtype=jnp.int32)
    # Repeat the last token at the tail of some rows so the change_mask (skip-update) path is exercised.
    tokens = tokens.at[0, WORDS_COUNT - 3:].set(tokens[0, WORDS_COUNT - 1])
    tokens = tokens.at[1, WORDS_COUNT - 2:].set(tokens[1, WORDS_COUNT - 1])

    out = lstm_forward(tokens, params, dim_embedding=DIM_EMBEDDING,
                       dim_hidden=DIM_HIDDEN, n_layers=N_LAYERS)
    out = jax.block_until_ready(out)

    ref = jax.block_until_ready(ref_forward(tokens, params,
                                            dim_hidden=DIM_HIDDEN, n_layers=N_LAYERS))
    assert out.shape == (BATCH, 1)
    # Kernel uses bf16 MXU operands (f32 accumulation/state), hence the slightly looser tolerance.
    np.testing.assert_allclose(np.asarray(out), np.asarray(ref), atol=2e-2, rtol=0)
    print("KERNEL_OK")
</pallas_src>

<mosaic_0001>
module attributes {stable_mosaic.version = 11 : i64} {
  func.func @kernel(%arg0: i32, %arg1: i32, %arg2: memref<8x8x32xbf16, #tpu.memory_space<vmem>>, %arg3: memref<8x32xbf16, #tpu.memory_space<vmem>>, %arg4: memref<32x512xbf16, #tpu.memory_space<vmem>>, %arg5: memref<128x512xbf16, #tpu.memory_space<vmem>>, %arg6: memref<1x512xf32, #tpu.memory_space<vmem>>, %arg7: memref<128x512xbf16, #tpu.memory_space<vmem>>, %arg8: memref<128x512xbf16, #tpu.memory_space<vmem>>, %arg9: memref<1x512xf32, #tpu.memory_space<vmem>>, %arg10: memref<128x128xbf16, #tpu.memory_space<vmem>>, %arg11: memref<1x128xf32, #tpu.memory_space<vmem>>, %arg12: memref<8x128xf32, #tpu.memory_space<vmem>>, %arg13: memref<8x128xf32, #tpu.memory_space<vmem>>, %arg14: memref<8x128xf32, #tpu.memory_space<vmem>>, %arg15: memref<8x128xf32, #tpu.memory_space<vmem>>, %arg16: memref<8x128xf32, #tpu.memory_space<vmem>>) attributes {dimension_semantics = [#tpu.dimension_semantics<parallel>, #tpu.dimension_semantics<arbitrary>], iteration_bounds = array<i64: 2, 2>, scalar_prefetch = 0 : i64, scratch_operands = 4 : i64, tpu.core_type = #tpu.core_type<tc>, window_params = [{transform_indices = @transform_0, window_bounds = array<i64: 8, 8, 32>}, {transform_indices = @transform_1, window_bounds = array<i64: 8, 32>}, {pipeline_mode = #tpu.pipeline_mode<synchronous>, transform_indices = @transform_2, window_bounds = array<i64: 32, 512>}, {pipeline_mode = #tpu.pipeline_mode<synchronous>, transform_indices = @transform_3, window_bounds = array<i64: 128, 512>}, {pipeline_mode = #tpu.pipeline_mode<synchronous>, transform_indices = @transform_4, window_bounds = array<i64: 1, 512>}, {pipeline_mode = #tpu.pipeline_mode<synchronous>, transform_indices = @transform_5, window_bounds = array<i64: 128, 512>}, {pipeline_mode = #tpu.pipeline_mode<synchronous>, transform_indices = @transform_6, window_bounds = array<i64: 128, 512>}, {pipeline_mode = #tpu.pipeline_mode<synchronous>, transform_indices = @transform_7, window_bounds = array<i64: 1, 512>}, {pipeline_mode = #tpu.pipeline_mode<synchronous>, transform_indices = @transform_8, window_bounds = array<i64: 128, 128>}, {pipeline_mode = #tpu.pipeline_mode<synchronous>, transform_indices = @transform_9, window_bounds = array<i64: 1, 128>}, {transform_indices = @transform_10, window_bounds = array<i64: 8, 128>}]} {
    %c0_i32 = arith.constant 0 : i32
    %0 = arith.cmpi eq, %arg1, %c0_i32 : i32
    %1 = arith.extui %0 : i1 to i32
    %c0_i32_0 = arith.constant 0 : i32
    %2 = arith.cmpi ne, %1, %c0_i32_0 : i32
    scf.if %2 {
      %cst_143 = arith.constant 0.000000e+00 : f32
      %725 = vector.broadcast %cst_143 : f32 to vector<8x128xf32>
      %c0_144 = arith.constant 0 : index
      %c0_145 = arith.constant 0 : index
      %726 = vector.load %arg13[%c0_144, %c0_145] : memref<8x128xf32, #tpu.memory_space<vmem>>, vector<8x128xf32>
      tpu.vector_store %arg13[%c0_144, %c0_145], %725 {strides = array<i32>} : memref<8x128xf32, #tpu.memory_space<vmem>>, vector<8x128xf32>,
      %cst_146 = arith.constant 0.000000e+00 : f32
      %727 = vector.broadcast %cst_146 : f32 to vector<8x128xf32>
      %c0_147 = arith.constant 0 : index
      %c0_148 = arith.constant 0 : index
      %728 = vector.load %arg15[%c0_147, %c0_148] : memref<8x128xf32, #tpu.memory_space<vmem>>, vector<8x128xf32>
      tpu.vector_store %arg15[%c0_147, %c0_148], %727 {strides = array<i32>} : memref<8x128xf32, #tpu.memory_space<vmem>>, vector<8x128xf32>,
      %cst_149 = arith.constant 0.000000e+00 : f32
      %729 = vector.broadcast %cst_149 : f32 to vector<8x128xf32>
      %c0_150 = arith.constant 0 : index
      %c0_151 = arith.constant 0 : index
      %730 = vector.load %arg14[%c0_150, %c0_151] : memref<8x128xf32, #tpu.memory_space<vmem>>, vector<8x128xf32>
      tpu.vector_store %arg14[%c0_150, %c0_151], %729 {strides = array<i32>} : memref<8x128xf32, #tpu.memory_space<vmem>>, vector<8x128xf32>,
      %cst_152 = arith.constant 0.000000e+00 : f32
      %731 = vector.broadcast %cst_152 : f32 to vector<8x128xf32>
      %c0_153 = arith.constant 0 : index
      %c0_154 = arith.constant 0 : index
      %732 = vector.load %arg16[%c0_153, %c0_154] : memref<8x128xf32, #tpu.memory_space<vmem>>, vector<8x128xf32>
      tpu.vector_store %arg16[%c0_153, %c0_154], %731 {strides = array<i32>} : memref<8x128xf32, #tpu.memory_space<vmem>>, vector<8x128xf32>,
    } else {
    }
    %c0 = arith.constant 0 : index
    %c0_1 = arith.constant 0 : index
    %3 = vector.load %arg3[%c0, %c0_1] : memref<8x32xbf16, #tpu.memory_space<vmem>>, vector<8x32xbf16>
    %c0_2 = arith.constant 0 : index
    %c0_3 = arith.constant 0 : index
    %4 = vector.load %arg4[%c0_2, %c0_3] : memref<32x512xbf16, #tpu.memory_space<vmem>>, vector<32x512xbf16>
    %c0_4 = arith.constant 0 : index
    %c0_5 = arith.constant 0 : index
    %5 = vector.load %arg7[%c0_4, %c0_5] : memref<128x512xbf16, #tpu.memory_space<vmem>>, vector<128x512xbf16>
    %c0_6 = arith.constant 0 : index
    %c0_7 = arith.constant 0 : index
    %6 = vector.load %arg5[%c0_6, %c0_7] : memref<128x512xbf16, #tpu.memory_space<vmem>>, vector<128x512xbf16>
    %c0_8 = arith.constant 0 : index
    %c0_9 = arith.constant 0 : index
    %7 = vector.load %arg8[%c0_8, %c0_9] : memref<128x512xbf16, #tpu.memory_space<vmem>>, vector<128x512xbf16>
    %c0_10 = arith.constant 0 : index
    %c0_11 = arith.constant 0 : index
    %8 = vector.load %arg6[%c0_10, %c0_11] : memref<1x512xf32, #tpu.memory_space<vmem>>, vector<1x512xf32>
    %c0_12 = arith.constant 0 : index
    %c0_13 = arith.constant 0 : index
    %9 = vector.load %arg9[%c0_12, %c0_13] : memref<1x512xf32, #tpu.memory_space<vmem>>, vector<1x512xf32>
    %c0_14 = arith.constant 0 : index
    %c0_15 = arith.constant 0 : index
    %10 = vector.load %arg13[%c0_14, %c0_15] : memref<8x128xf32, #tpu.memory_space<vmem>>, vector<8x128xf32>
    %c0_16 = arith.constant 0 : index
    %c0_17 = arith.constant 0 : index
    %11 = vector.load %arg14[%c0_16, %c0_17] : memref<8x128xf32, #tpu.memory_space<vmem>>, vector<8x128xf32>
    %c0_18 = arith.constant 0 : index
    %c0_19 = arith.constant 0 : index
    %12 = vector.load %arg15[%c0_18, %c0_19] : memref<8x128xf32, #tpu.memory_space<vmem>>, vector<8x128xf32>
    %c0_20 = arith.constant 0 : index
    %c0_21 = arith.constant 0 : index
    %13 = vector.load %arg16[%c0_20, %c0_21] : memref<8x128xf32, #tpu.memory_space<vmem>>, vector<8x128xf32>
    %c0_22 = arith.constant 0 : index
    %c0_23 = arith.constant 0 : index
    %c0_24 = arith.constant 0 : index
    %14 = vector.load %arg2[%c0_22, %c0_23, %c0_24] : memref<8x8x32xbf16, #tpu.memory_space<vmem>>, vector<1x8x32xbf16>
    %15 = vector.shape_cast %14 : vector<1x8x32xbf16> to vector<8x32xbf16>
    %16 = arith.cmpf one, %15, %3 : vector<8x32xbf16>
    %17 = arith.extui %16 : vector<8x32xi1> to vector<8x32xi32>
    %18 = arith.sitofp %17 : vector<8x32xi32> to vector<8x32xf32>
    %cst = arith.constant dense<0.000000e+00> : vector<8xf32>
    %19 = vector.multi_reduction <add>, %18, %cst [1] : vector<8x32xf32> to vector<8xf32>
    %20 = vector.shape_cast %19 : vector<8xf32> to vector<8x1xf32>
    %cst_25 = arith.constant 1.000000e+00 : f32
    %21 = vector.broadcast %cst_25 : f32 to vector<8x1xf32>
    %22 = arith.minimumf %20, %21 : vector<8x1xf32>
    %cst_26 = arith.constant dense<0.000000e+00> : vector<8x512xf32>
    %23 = tpu.matmul %15, %4, %cst_26 {dimension_numbers = #tpu.dot_dimension_numbers<[1], [0], [0], [1], [0, 0, 1, 1], [], []>} : vector<8x32xbf16>, vector<32x512xbf16>, vector<8x512xf32> -> vector<8x512xf32>
    %24 = arith.truncf %10 : vector<8x128xf32> to vector<8x128xbf16>
    %cst_27 = arith.constant dense<0.000000e+00> : vector<8x512xf32>
    %25 = tpu.matmul %24, %6, %cst_27 {dimension_numbers = #tpu.dot_dimension_numbers<[1], [0], [0], [1], [0, 0, 1, 1], [], []>} : vector<8x128xbf16>, vector<128x512xbf16>, vector<8x512xf32> -> vector<8x512xf32>
    %26 = arith.addf %23, %25 : vector<8x512xf32>
    %27 = vector.broadcast %8 : vector<1x512xf32> to vector<8x512xf32>
    %28 = arith.addf %26, %27 : vector<8x512xf32>
    %29 = vector.extract_strided_slice %28 {offsets = [0, 0], sizes = [8, 128], strides = [1, 1]} : vector<8x512xf32> to vector<8x128xf32>
    %30 = arith.negf %29 : vector<8x128xf32>
    %31 = math.exp %30 : vector<8x128xf32>
    %cst_28 = arith.constant 1.000000e+00 : f32
    %32 = vector.broadcast %cst_28 : f32 to vector<8x128xf32>
    %33 = arith.addf %32, %31 : vector<8x128xf32>
    %34 = arith.divf %32, %33 : vector<8x128xf32>
    %35 = vector.extract_strided_slice %28 {offsets = [0, 128], sizes = [8, 128], strides = [1, 1]} : vector<8x512xf32> to vector<8x128xf32>
    %36 = arith.negf %35 : vector<8x128xf32>
    %37 = math.exp %36 : vector<8x128xf32>
    %cst_29 = arith.constant 1.000000e+00 : f32
    %38 = vector.broadcast %cst_29 : f32 to vector<8x128xf32>
    %39 = arith.addf %38, %37 : vector<8x128xf32>
    %40 = arith.divf %38, %39 : vector<8x128xf32>
    %41 = vector.extract_strided_slice %28 {offsets = [0, 256], sizes = [8, 128], strides = [1, 1]} : vector<8x512xf32> to vector<8x128xf32>
    %42 = arith.negf %41 : vector<8x128xf32>
    %43 = math.exp %42 : vector<8x128xf32>
    %cst_30 = arith.constant 1.000000e+00 : f32
    %44 = vector.broadcast %cst_30 : f32 to vector<8x128xf32>
    %45 = arith.addf %44, %43 : vector<8x128xf32>
    %46 = arith.divf %44, %45 : vector<8x128xf32>
    %47 = vector.extract_strided_slice %28 {offsets = [0, 384], sizes = [8, 128], strides = [1, 1]} : vector<8x512xf32> to vector<8x128xf32>
    %48 = math.tanh %47 : vector<8x128xf32>
    %49 = arith.mulf %12, %34 : vector<8x128xf32>
    %50 = arith.mulf %40, %48 : vector<8x128xf32>
    %51 = arith.addf %49, %50 : vector<8x128xf32>
    %52 = math.tanh %51 : vector<8x128xf32>
    %53 = arith.mulf %46, %52 : vector<8x128xf32>
    %54 = arith.subf %51, %12 : vector<8x128xf32>
    %55 = vector.broadcast %22 : vector<8x1xf32> to vector<8x128xf32>
    %56 = arith.mulf %55, %54 : vector<8x128xf32>
    %57 = arith.addf %12, %56 : vector<8x128xf32>
    %58 = arith.subf %53, %10 : vector<8x128xf32>
    %59 = vector.broadcast %22 : vector<8x1xf32> to vector<8x128xf32>
    %60 = arith.mulf %59, %58 : vector<8x128xf32>
    %61 = arith.addf %10, %60 : vector<8x128xf32>
    %62 = arith.truncf %61 : vector<8x128xf32> to vector<8x128xbf16>
    %cst_31 = arith.constant dense<0.000000e+00> : vector<8x512xf32>
    %63 = tpu.matmul %62, %5, %cst_31 {dimension_numbers = #tpu.dot_dimension_numbers<[1], [0], [0], [1], [0, 0, 1, 1], [], []>} : vector<8x128xbf16>, vector<128x512xbf16>, vector<8x512xf32> -> vector<8x512xf32>
    %64 = arith.truncf %11 : vector<8x128xf32> to vector<8x128xbf16>
    %cst_32 = arith.constant dense<0.000000e+00> : vector<8x512xf32>
    %65 = tpu.matmul %64, %7, %cst_32 {dimension_numbers = #tpu.dot_dimension_numbers<[1], [0], [0], [1], [0, 0, 1, 1], [], []>} : vector<8x128xbf16>, vector<128x512xbf16>, vector<8x512xf32> -> vector<8x512xf32>
    %66 = arith.addf %63, %65 : vector<8x512xf32>
    %67 = vector.broadcast %9 : vector<1x512xf32> to vector<8x512xf32>
    %68 = arith.addf %66, %67 : vector<8x512xf32>
    %69 = vector.extract_strided_slice %68 {offsets = [0, 0], sizes = [8, 128], strides = [1, 1]} : vector<8x512xf32> to vector<8x128xf32>
    %70 = arith.negf %69 : vector<8x128xf32>
    %71 = math.exp %70 : vector<8x128xf32>
    %cst_33 = arith.constant 1.000000e+00 : f32
    %72 = vector.broadcast %cst_33 : f32 to vector<8x128xf32>
    %73 = arith.addf %72, %71 : vector<8x128xf32>
    %74 = arith.divf %72, %73 : vector<8x128xf32>
    %75 = vector.extract_strided_slice %68 {offsets = [0, 128], sizes = [8, 128], strides = [1, 1]} : vector<8x512xf32> to vector<8x128xf32>
    %76 = arith.negf %75 : vector<8x128xf32>
    %77 = math.exp %76 : vector<8x128xf32>
    %cst_34 = arith.constant 1.000000e+00 : f32
    %78 = vector.broadcast %cst_34 : f32 to vector<8x128xf32>
    %79 = arith.addf %78, %77 : vector<8x128xf32>
    %80 = arith.divf %78, %79 : vector<8x128xf32>
    %81 = vector.extract_strided_slice %68 {offsets = [0, 256], sizes = [8, 128], strides = [1, 1]} : vector<8x512xf32> to vector<8x128xf32>
    %82 = arith.negf %81 : vector<8x128xf32>
    %83 = math.exp %82 : vector<8x128xf32>
    %cst_35 = arith.constant 1.000000e+00 : f32
    %84 = vector.broadcast %cst_35 : f32 to vector<8x128xf32>
    %85 = arith.addf %84, %83 : vector<8x128xf32>
    %86 = arith.divf %84, %85 : vector<8x128xf32>
    %87 = vector.extract_strided_slice %68 {offsets = [0, 384], sizes = [8, 128], strides = [1, 1]} : vector<8x512xf32> to vector<8x128xf32>
    %88 = math.tanh %87 : vector<8x128xf32>
    %89 = arith.mulf %13, %74 : vector<8x128xf32>
    %90 = arith.mulf %80, %88 : vector<8x128xf32>
    %91 = arith.addf %89, %90 : vector<8x128xf32>
    %92 = math.tanh %91 : vector<8x128xf32>
    %93 = arith.mulf %86, %92 : vector<8x128xf32>
    %94 = arith.subf %91, %13 : vector<8x128xf32>
    %95 = vector.broadcast %22 : vector<8x1xf32> to vector<8x128xf32>
    %96 = arith.mulf %95, %94 : vector<8x128xf32>
    %97 = arith.addf %13, %96 : vector<8x128xf32>
    %98 = arith.subf %93, %11 : vector<8x128xf32>
    %99 = vector.broadcast %22 : vector<8x1xf32> to vector<8x128xf32>
    %100 = arith.mulf %99, %98 : vector<8x128xf32>
    %101 = arith.addf %11, %100 : vector<8x128xf32>
    %c1 = arith.constant 1 : index
    %c0_36 = arith.constant 0 : index
    %c0_37 = arith.constant 0 : index
    %102 = vector.load %arg2[%c1, %c0_36, %c0_37] : memref<8x8x32xbf16, #tpu.memory_space<vmem>>, vector<1x8x32xbf16>
    %103 = vector.shape_cast %102 : vector<1x8x32xbf16> to vector<8x32xbf16>
    %104 = arith.cmpf one, %103, %3 : vector<8x32xbf16>
    %105 = arith.extui %104 : vector<8x32xi1> to vector<8x32xi32>
    %106 = arith.sitofp %105 : vector<8x32xi32> to vector<8x32xf32>
    %cst_38 = arith.constant dense<0.000000e+00> : vector<8xf32>
    %107 = vector.multi_reduction <add>, %106, %cst_38 [1] : vector<8x32xf32> to vector<8xf32>
    %108 = vector.shape_cast %107 : vector<8xf32> to vector<8x1xf32>
    %cst_39 = arith.constant 1.000000e+00 : f32
    %109 = vector.broadcast %cst_39 : f32 to vector<8x1xf32>
    %110 = arith.minimumf %108, %109 : vector<8x1xf32>
    %cst_40 = arith.constant dense<0.000000e+00> : vector<8x512xf32>
    %111 = tpu.matmul %103, %4, %cst_40 {dimension_numbers = #tpu.dot_dimension_numbers<[1], [0], [0], [1], [0, 0, 1, 1], [], []>} : vector<8x32xbf16>, vector<32x512xbf16>, vector<8x512xf32> -> vector<8x512xf32>
    %112 = arith.truncf %61 : vector<8x128xf32> to vector<8x128xbf16>
    %cst_41 = arith.constant dense<0.000000e+00> : vector<8x512xf32>
    %113 = tpu.matmul %112, %6, %cst_41 {dimension_numbers = #tpu.dot_dimension_numbers<[1], [0], [0], [1], [0, 0, 1, 1], [], []>} : vector<8x128xbf16>, vector<128x512xbf16>, vector<8x512xf32> -> vector<8x512xf32>
    %114 = arith.addf %111, %113 : vector<8x512xf32>
    %115 = vector.broadcast %8 : vector<1x512xf32> to vector<8x512xf32>
    %116 = arith.addf %114, %115 : vector<8x512xf32>
    %117 = vector.extract_strided_slice %116 {offsets = [0, 0], sizes = [8, 128], strides = [1, 1]} : vector<8x512xf32> to vector<8x128xf32>
    %118 = arith.negf %117 : vector<8x128xf32>
    %119 = math.exp %118 : vector<8x128xf32>
    %cst_42 = arith.constant 1.000000e+00 : f32
    %120 = vector.broadcast %cst_42 : f32 to vector<8x128xf32>
    %121 = arith.addf %120, %119 : vector<8x128xf32>
    %122 = arith.divf %120, %121 : vector<8x128xf32>
    %123 = vector.extract_strided_slice %116 {offsets = [0, 128], sizes = [8, 128], strides = [1, 1]} : vector<8x512xf32> to vector<8x128xf32>
    %124 = arith.negf %123 : vector<8x128xf32>
    %125 = math.exp %124 : vector<8x128xf32>
    %cst_43 = arith.constant 1.000000e+00 : f32
    %126 = vector.broadcast %cst_43 : f32 to vector<8x128xf32>
    %127 = arith.addf %126, %125 : vector<8x128xf32>
    %128 = arith.divf %126, %127 : vector<8x128xf32>
    %129 = vector.extract_strided_slice %116 {offsets = [0, 256], sizes = [8, 128], strides = [1, 1]} : vector<8x512xf32> to vector<8x128xf32>
    %130 = arith.negf %129 : vector<8x128xf32>
    %131 = math.exp %130 : vector<8x128xf32>
    %cst_44 = arith.constant 1.000000e+00 : f32
    %132 = vector.broadcast %cst_44 : f32 to vector<8x128xf32>
    %133 = arith.addf %132, %131 : vector<8x128xf32>
    %134 = arith.divf %132, %133 : vector<8x128xf32>
    %135 = vector.extract_strided_slice %116 {offsets = [0, 384], sizes = [8, 128], strides = [1, 1]} : vector<8x512xf32> to vector<8x128xf32>
    %136 = math.tanh %135 : vector<8x128xf32>
    %137 = arith.mulf %57, %122 : vector<8x128xf32>
    %138 = arith.mulf %128, %136 : vector<8x128xf32>
    %139 = arith.addf %137, %138 : vector<8x128xf32>
    %140 = math.tanh %139 : vector<8x128xf32>
    %141 = arith.mulf %134, %140 : vector<8x128xf32>
    %142 = arith.subf %139, %57 : vector<8x128xf32>
    %143 = vector.broadcast %110 : vector<8x1xf32> to vector<8x128xf32>
    %144 = arith.mulf %143, %142 : vector<8x128xf32>
    %145 = arith.addf %57, %144 : vector<8x128xf32>
    %146 = arith.subf %141, %61 : vector<8x128xf32>
    %147 = vector.broadcast %110 : vector<8x1xf32> to vector<8x128xf32>
    %148 = arith.mulf %147, %146 : vector<8x128xf32>
    %149 = arith.addf %61, %148 : vector<8x128xf32>
    %150 = arith.truncf %149 : vector<8x128xf32> to vector<8x128xbf16>
    %cst_45 = arith.constant dense<0.000000e+00> : vector<8x512xf32>
    %151 = tpu.matmul %150, %5, %cst_45 {dimension_numbers = #tpu.dot_dimension_numbers<[1], [0], [0], [1], [0, 0, 1, 1], [], []>} : vector<8x128xbf16>, vector<128x512xbf16>, vector<8x512xf32> -> vector<8x512xf32>
    %152 = arith.truncf %101 : vector<8x128xf32> to vector<8x128xbf16>
    %cst_46 = arith.constant dense<0.000000e+00> : vector<8x512xf32>
    %153 = tpu.matmul %152, %7, %cst_46 {dimension_numbers = #tpu.dot_dimension_numbers<[1], [0], [0], [1], [0, 0, 1, 1], [], []>} : vector<8x128xbf16>, vector<128x512xbf16>, vector<8x512xf32> -> vector<8x512xf32>
    %154 = arith.addf %151, %153 : vector<8x512xf32>
    %155 = vector.broadcast %9 : vector<1x512xf32> to vector<8x512xf32>
    %156 = arith.addf %154, %155 : vector<8x512xf32>
    %157 = vector.extract_strided_slice %156 {offsets = [0, 0], sizes = [8, 128], strides = [1, 1]} : vector<8x512xf32> to vector<8x128xf32>
    %158 = arith.negf %157 : vector<8x128xf32>
    %159 = math.exp %158 : vector<8x128xf32>
    %cst_47 = arith.constant 1.000000e+00 : f32
    %160 = vector.broadcast %cst_47 : f32 to vector<8x128xf32>
    %161 = arith.addf %160, %159 : vector<8x128xf32>
    %162 = arith.divf %160, %161 : vector<8x128xf32>
    %163 = vector.extract_strided_slice %156 {offsets = [0, 128], sizes = [8, 128], strides = [1, 1]} : vector<8x512xf32> to vector<8x128xf32>
    %164 = arith.negf %163 : vector<8x128xf32>
    %165 = math.exp %164 : vector<8x128xf32>
    %cst_48 = arith.constant 1.000000e+00 : f32
    %166 = vector.broadcast %cst_48 : f32 to vector<8x128xf32>
    %167 = arith.addf %166, %165 : vector<8x128xf32>
    %168 = arith.divf %166, %167 : vector<8x128xf32>
    %169 = vector.extract_strided_slice %156 {offsets = [0, 256], sizes = [8, 128], strides = [1, 1]} : vector<8x512xf32> to vector<8x128xf32>
    %170 = arith.negf %169 : vector<8x128xf32>
    %171 = math.exp %170 : vector<8x128xf32>
    %cst_49 = arith.constant 1.000000e+00 : f32
    %172 = vector.broadcast %cst_49 : f32 to vector<8x128xf32>
    %173 = arith.addf %172, %171 : vector<8x128xf32>
    %174 = arith.divf %172, %173 : vector<8x128xf32>
    %175 = vector.extract_strided_slice %156 {offsets = [0, 384], sizes = [8, 128], strides = [1, 1]} : vector<8x512xf32> to vector<8x128xf32>
    %176 = math.tanh %175 : vector<8x128xf32>
    %177 = arith.mulf %97, %162 : vector<8x128xf32>
    %178 = arith.mulf %168, %176 : vector<8x128xf32>
    %179 = arith.addf %177, %178 : vector<8x128xf32>
    %180 = math.tanh %179 : vector<8x128xf32>
    %181 = arith.mulf %174, %180 : vector<8x128xf32>
    %182 = arith.subf %179, %97 : vector<8x128xf32>
    %183 = vector.broadcast %110 : vector<8x1xf32> to vector<8x128xf32>
    %184 = arith.mulf %183, %182 : vector<8x128xf32>
    %185 = arith.addf %97, %184 : vector<8x128xf32>
    %186 = arith.subf %181, %101 : vector<8x128xf32>
    %187 = vector.broadcast %110 : vector<8x1xf32> to vector<8x128xf32>
    %188 = arith.mulf %187, %186 : vector<8x128xf32>
    %189 = arith.addf %101, %188 : vector<8x128xf32>
    %c2 = arith.constant 2 : index
    %c0_50 = arith.constant 0 : index
    %c0_51 = arith.constant 0 : index
    %190 = vector.load %arg2[%c2, %c0_50, %c0_51] : memref<8x8x32xbf16, #tpu.memory_space<vmem>>, vector<1x8x32xbf16>
    %191 = vector.shape_cast %190 : vector<1x8x32xbf16> to vector<8x32xbf16>
    %192 = arith.cmpf one, %191, %3 : vector<8x32xbf16>
    %193 = arith.extui %192 : vector<8x32xi1> to vector<8x32xi32>
    %194 = arith.sitofp %193 : vector<8x32xi32> to vector<8x32xf32>
    %cst_52 = arith.constant dense<0.000000e+00> : vector<8xf32>
    %195 = vector.multi_reduction <add>, %194, %cst_52 [1] : vector<8x32xf32> to vector<8xf32>
    %196 = vector.shape_cast %195 : vector<8xf32> to vector<8x1xf32>
    %cst_53 = arith.constant 1.000000e+00 : f32
    %197 = vector.broadcast %cst_53 : f32 to vector<8x1xf32>
    %198 = arith.minimumf %196, %197 : vector<8x1xf32>
    %cst_54 = arith.constant dense<0.000000e+00> : vector<8x512xf32>
    %199 = tpu.matmul %191, %4, %cst_54 {dimension_numbers = #tpu.dot_dimension_numbers<[1], [0], [0], [1], [0, 0, 1, 1], [], []>} : vector<8x32xbf16>, vector<32x512xbf16>, vector<8x512xf32> -> vector<8x512xf32>
    %200 = arith.truncf %149 : vector<8x128xf32> to vector<8x128xbf16>
    %cst_55 = arith.constant dense<0.000000e+00> : vector<8x512xf32>
    %201 = tpu.matmul %200, %6, %cst_55 {dimension_numbers = #tpu.dot_dimension_numbers<[1], [0], [0], [1], [0, 0, 1, 1], [], []>} : vector<8x128xbf16>, vector<128x512xbf16>, vector<8x512xf32> -> vector<8x512xf32>
    %202 = arith.addf %199, %201 : vector<8x512xf32>
    %203 = vector.broadcast %8 : vector<1x512xf32> to vector<8x512xf32>
    %204 = arith.addf %202, %203 : vector<8x512xf32>
    %205 = vector.extract_strided_slice %204 {offsets = [0, 0], sizes = [8, 128], strides = [1, 1]} : vector<8x512xf32> to vector<8x128xf32>
    %206 = arith.negf %205 : vector<8x128xf32>
    %207 = math.exp %206 : vector<8x128xf32>
    %cst_56 = arith.constant 1.000000e+00 : f32
    %208 = vector.broadcast %cst_56 : f32 to vector<8x128xf32>
    %209 = arith.addf %208, %207 : vector<8x128xf32>
    %210 = arith.divf %208, %209 : vector<8x128xf32>
    %211 = vector.extract_strided_slice %204 {offsets = [0, 128], sizes = [8, 128], strides = [1, 1]} : vector<8x512xf32> to vector<8x128xf32>
    %212 = arith.negf %211 : vector<8x128xf32>
    %213 = math.exp %212 : vector<8x128xf32>
    %cst_57 = arith.constant 1.000000e+00 : f32
    %214 = vector.broadcast %cst_57 : f32 to vector<8x128xf32>
    %215 = arith.addf %214, %213 : vector<8x128xf32>
    %216 = arith.divf %214, %215 : vector<8x128xf32>
    %217 = vector.extract_strided_slice %204 {offsets = [0, 256], sizes = [8, 128], strides = [1, 1]} : vector<8x512xf32> to vector<8x128xf32>
    %218 = arith.negf %217 : vector<8x128xf32>
    %219 = math.exp %218 : vector<8x128xf32>
    %cst_58 = arith.constant 1.000000e+00 : f32
    %220 = vector.broadcast %cst_58 : f32 to vector<8x128xf32>
    %221 = arith.addf %220, %219 : vector<8x128xf32>
    %222 = arith.divf %220, %221 : vector<8x128xf32>
    %223 = vector.extract_strided_slice %204 {offsets = [0, 384], sizes = [8, 128], strides = [1, 1]} : vector<8x512xf32> to vector<8x128xf32>
    %224 = math.tanh %223 : vector<8x128xf32>
    %225 = arith.mulf %145, %210 : vector<8x128xf32>
    %226 = arith.mulf %216, %224 : vector<8x128xf32>
    %227 = arith.addf %225, %226 : vector<8x128xf32>
    %228 = math.tanh %227 : vector<8x128xf32>
    %229 = arith.mulf %222, %228 : vector<8x128xf32>
    %230 = arith.subf %227, %145 : vector<8x128xf32>
    %231 = vector.broadcast %198 : vector<8x1xf32> to vector<8x128xf32>
    %232 = arith.mulf %231, %230 : vector<8x128xf32>
    %233 = arith.addf %145, %232 : vector<8x128xf32>
    %234 = arith.subf %229, %149 : vector<8x128xf32>
    %235 = vector.broadcast %198 : vector<8x1xf32> to vector<8x128xf32>
    %236 = arith.mulf %235, %234 : vector<8x128xf32>
    %237 = arith.addf %149, %236 : vector<8x128xf32>
    %238 = arith.truncf %237 : vector<8x128xf32> to vector<8x128xbf16>
    %cst_59 = arith.constant dense<0.000000e+00> : vector<8x512xf32>
    %239 = tpu.matmul %238, %5, %cst_59 {dimension_numbers = #tpu.dot_dimension_numbers<[1], [0], [0], [1], [0, 0, 1, 1], [], []>} : vector<8x128xbf16>, vector<128x512xbf16>, vector<8x512xf32> -> vector<8x512xf32>
    %240 = arith.truncf %189 : vector<8x128xf32> to vector<8x128xbf16>
    %cst_60 = arith.constant dense<0.000000e+00> : vector<8x512xf32>
    %241 = tpu.matmul %240, %7, %cst_60 {dimension_numbers = #tpu.dot_dimension_numbers<[1], [0], [0], [1], [0, 0, 1, 1], [], []>} : vector<8x128xbf16>, vector<128x512xbf16>, vector<8x512xf32> -> vector<8x512xf32>
    %242 = arith.addf %239, %241 : vector<8x512xf32>
    %243 = vector.broadcast %9 : vector<1x512xf32> to vector<8x512xf32>
    %244 = arith.addf %242, %243 : vector<8x512xf32>
    %245 = vector.extract_strided_slice %244 {offsets = [0, 0], sizes = [8, 128], strides = [1, 1]} : vector<8x512xf32> to vector<8x128xf32>
    %246 = arith.negf %245 : vector<8x128xf32>
    %247 = math.exp %246 : vector<8x128xf32>
    %cst_61 = arith.constant 1.000000e+00 : f32
    %248 = vector.broadcast %cst_61 : f32 to vector<8x128xf32>
    %249 = arith.addf %248, %247 : vector<8x128xf32>
    %250 = arith.divf %248, %249 : vector<8x128xf32>
    %251 = vector.extract_strided_slice %244 {offsets = [0, 128], sizes = [8, 128], strides = [1, 1]} : vector<8x512xf32> to vector<8x128xf32>
    %252 = arith.negf %251 : vector<8x128xf32>
    %253 = math.exp %252 : vector<8x128xf32>
    %cst_62 = arith.constant 1.000000e+00 : f32
    %254 = vector.broadcast %cst_62 : f32 to vector<8x128xf32>
    %255 = arith.addf %254, %253 : vector<8x128xf32>
    %256 = arith.divf %254, %255 : vector<8x128xf32>
    %257 = vector.extract_strided_slice %244 {offsets = [0, 256], sizes = [8, 128], strides = [1, 1]} : vector<8x512xf32> to vector<8x128xf32>
    %258 = arith.negf %257 : vector<8x128xf32>
    %259 = math.exp %258 : vector<8x128xf32>
    %cst_63 = arith.constant 1.000000e+00 : f32
    %260 = vector.broadcast %cst_63 : f32 to vector<8x128xf32>
    %261 = arith.addf %260, %259 : vector<8x128xf32>
    %262 = arith.divf %260, %261 : vector<8x128xf32>
    %263 = vector.extract_strided_slice %244 {offsets = [0, 384], sizes = [8, 128], strides = [1, 1]} : vector<8x512xf32> to vector<8x128xf32>
    %264 = math.tanh %263 : vector<8x128xf32>
    %265 = arith.mulf %185, %250 : vector<8x128xf32>
    %266 = arith.mulf %256, %264 : vector<8x128xf32>
    %267 = arith.addf %265, %266 : vector<8x128xf32>
    %268 = math.tanh %267 : vector<8x128xf32>
    %269 = arith.mulf %262, %268 : vector<8x128xf32>
    %270 = arith.subf %267, %185 : vector<8x128xf32>
    %271 = vector.broadcast %198 : vector<8x1xf32> to vector<8x128xf32>
    %272 = arith.mulf %271, %270 : vector<8x128xf32>
    %273 = arith.addf %185, %272 : vector<8x128xf32>
    %274 = arith.subf %269, %189 : vector<8x128xf32>
    %275 = vector.broadcast %198 : vector<8x1xf32> to vector<8x128xf32>
    %276 = arith.mulf %275, %274 : vector<8x128xf32>
    %277 = arith.addf %189, %276 : vector<8x128xf32>
    %c3 = arith.constant 3 : index
    %c0_64 = arith.constant 0 : index
    %c0_65 = arith.constant 0 : index
    %278 = vector.load %arg2[%c3, %c0_64, %c0_65] : memref<8x8x32xbf16, #tpu.memory_space<vmem>>, vector<1x8x32xbf16>
    %279 = vector.shape_cast %278 : vector<1x8x32xbf16> to vector<8x32xbf16>
    %280 = arith.cmpf one, %279, %3 : vector<8x32xbf16>
    %281 = arith.extui %280 : vector<8x32xi1> to vector<8x32xi32>
    %282 = arith.sitofp %281 : vector<8x32xi32> to vector<8x32xf32>
    %cst_66 = arith.constant dense<0.000000e+00> : vector<8xf32>
    %283 = vector.multi_reduction <add>, %282, %cst_66 [1] : vector<8x32xf32> to vector<8xf32>
    %284 = vector.shape_cast %283 : vector<8xf32> to vector<8x1xf32>
    %cst_67 = arith.constant 1.000000e+00 : f32
    %285 = vector.broadcast %cst_67 : f32 to vector<8x1xf32>
    %286 = arith.minimumf %284, %285 : vector<8x1xf32>
    %cst_68 = arith.constant dense<0.000000e+00> : vector<8x512xf32>
    %287 = tpu.matmul %279, %4, %cst_68 {dimension_numbers = #tpu.dot_dimension_numbers<[1], [0], [0], [1], [0, 0, 1, 1], [], []>} : vector<8x32xbf16>, vector<32x512xbf16>, vector<8x512xf32> -> vector<8x512xf32>
    %288 = arith.truncf %237 : vector<8x128xf32> to vector<8x128xbf16>
    %cst_69 = arith.constant dense<0.000000e+00> : vector<8x512xf32>
    %289 = tpu.matmul %288, %6, %cst_69 {dimension_numbers = #tpu.dot_dimension_numbers<[1], [0], [0], [1], [0, 0, 1, 1], [], []>} : vector<8x128xbf16>, vector<128x512xbf16>, vector<8x512xf32> -> vector<8x512xf32>
    %290 = arith.addf %287, %289 : vector<8x512xf32>
    %291 = vector.broadcast %8 : vector<1x512xf32> to vector<8x512xf32>
    %292 = arith.addf %290, %291 : vector<8x512xf32>
    %293 = vector.extract_strided_slice %292 {offsets = [0, 0], sizes = [8, 128], strides = [1, 1]} : vector<8x512xf32> to vector<8x128xf32>
    %294 = arith.negf %293 : vector<8x128xf32>
    %295 = math.exp %294 : vector<8x128xf32>
    %cst_70 = arith.constant 1.000000e+00 : f32
    %296 = vector.broadcast %cst_70 : f32 to vector<8x128xf32>
    %297 = arith.addf %296, %295 : vector<8x128xf32>
    %298 = arith.divf %296, %297 : vector<8x128xf32>
    %299 = vector.extract_strided_slice %292 {offsets = [0, 128], sizes = [8, 128], strides = [1, 1]} : vector<8x512xf32> to vector<8x128xf32>
    %300 = arith.negf %299 : vector<8x128xf32>
    %301 = math.exp %300 : vector<8x128xf32>
    %cst_71 = arith.constant 1.000000e+00 : f32
    %302 = vector.broadcast %cst_71 : f32 to vector<8x128xf32>
    %303 = arith.addf %302, %301 : vector<8x128xf32>
    %304 = arith.divf %302, %303 : vector<8x128xf32>
    %305 = vector.extract_strided_slice %292 {offsets = [0, 256], sizes = [8, 128], strides = [1, 1]} : vector<8x512xf32> to vector<8x128xf32>
    %306 = arith.negf %305 : vector<8x128xf32>
    %307 = math.exp %306 : vector<8x128xf32>
    %cst_72 = arith.constant 1.000000e+00 : f32
    %308 = vector.broadcast %cst_72 : f32 to vector<8x128xf32>
    %309 = arith.addf %308, %307 : vector<8x128xf32>
    %310 = arith.divf %308, %309 : vector<8x128xf32>
    %311 = vector.extract_strided_slice %292 {offsets = [0, 384], sizes = [8, 128], strides = [1, 1]} : vector<8x512xf32> to vector<8x128xf32>
    %312 = math.tanh %311 : vector<8x128xf32>
    %313 = arith.mulf %233, %298 : vector<8x128xf32>
    %314 = arith.mulf %304, %312 : vector<8x128xf32>
    %315 = arith.addf %313, %314 : vector<8x128xf32>
    %316 = math.tanh %315 : vector<8x128xf32>
    %317 = arith.mulf %310, %316 : vector<8x128xf32>
    %318 = arith.subf %315, %233 : vector<8x128xf32>
    %319 = vector.broadcast %286 : vector<8x1xf32> to vector<8x128xf32>
    %320 = arith.mulf %319, %318 : vector<8x128xf32>
    %321 = arith.addf %233, %320 : vector<8x128xf32>
    %322 = arith.subf %317, %237 : vector<8x128xf32>
    %323 = vector.broadcast %286 : vector<8x1xf32> to vector<8x128xf32>
    %324 = arith.mulf %323, %322 : vector<8x128xf32>
    %325 = arith.addf %237, %324 : vector<8x128xf32>
    %326 = arith.truncf %325 : vector<8x128xf32> to vector<8x128xbf16>
    %cst_73 = arith.constant dense<0.000000e+00> : vector<8x512xf32>
    %327 = tpu.matmul %326, %5, %cst_73 {dimension_numbers = #tpu.dot_dimension_numbers<[1], [0], [0], [1], [0, 0, 1, 1], [], []>} : vector<8x128xbf16>, vector<128x512xbf16>, vector<8x512xf32> -> vector<8x512xf32>
    %328 = arith.truncf %277 : vector<8x128xf32> to vector<8x128xbf16>
    %cst_74 = arith.constant dense<0.000000e+00> : vector<8x512xf32>
    %329 = tpu.matmul %328, %7, %cst_74 {dimension_numbers = #tpu.dot_dimension_numbers<[1], [0], [0], [1], [0, 0, 1, 1], [], []>} : vector<8x128xbf16>, vector<128x512xbf16>, vector<8x512xf32> -> vector<8x512xf32>
    %330 = arith.addf %327, %329 : vector<8x512xf32>
    %331 = vector.broadcast %9 : vector<1x512xf32> to vector<8x512xf32>
    %332 = arith.addf %330, %331 : vector<8x512xf32>
    %333 = vector.extract_strided_slice %332 {offsets = [0, 0], sizes = [8, 128], strides = [1, 1]} : vector<8x512xf32> to vector<8x128xf32>
    %334 = arith.negf %333 : vector<8x128xf32>
    %335 = math.exp %334 : vector<8x128xf32>
    %cst_75 = arith.constant 1.000000e+00 : f32
    %336 = vector.broadcast %cst_75 : f32 to vector<8x128xf32>
    %337 = arith.addf %336, %335 : vector<8x128xf32>
    %338 = arith.divf %336, %337 : vector<8x128xf32>
    %339 = vector.extract_strided_slice %332 {offsets = [0, 128], sizes = [8, 128], strides = [1, 1]} : vector<8x512xf32> to vector<8x128xf32>
    %340 = arith.negf %339 : vector<8x128xf32>
    %341 = math.exp %340 : vector<8x128xf32>
    %cst_76 = arith.constant 1.000000e+00 : f32
    %342 = vector.broadcast %cst_76 : f32 to vector<8x128xf32>
    %343 = arith.addf %342, %341 : vector<8x128xf32>
    %344 = arith.divf %342, %343 : vector<8x128xf32>
    %345 = vector.extract_strided_slice %332 {offsets = [0, 256], sizes = [8, 128], strides = [1, 1]} : vector<8x512xf32> to vector<8x128xf32>
    %346 = arith.negf %345 : vector<8x128xf32>
    %347 = math.exp %346 : vector<8x128xf32>
    %cst_77 = arith.constant 1.000000e+00 : f32
    %348 = vector.broadcast %cst_77 : f32 to vector<8x128xf32>
    %349 = arith.addf %348, %347 : vector<8x128xf32>
    %350 = arith.divf %348, %349 : vector<8x128xf32>
    %351 = vector.extract_strided_slice %332 {offsets = [0, 384], sizes = [8, 128], strides = [1, 1]} : vector<8x512xf32> to vector<8x128xf32>
    %352 = math.tanh %351 : vector<8x128xf32>
    %353 = arith.mulf %273, %338 : vector<8x128xf32>
    %354 = arith.mulf %344, %352 : vector<8x128xf32>
    %355 = arith.addf %353, %354 : vector<8x128xf32>
    %356 = math.tanh %355 : vector<8x128xf32>
    %357 = arith.mulf %350, %356 : vector<8x128xf32>
    %358 = arith.subf %355, %273 : vector<8x128xf32>
    %359 = vector.broadcast %286 : vector<8x1xf32> to vector<8x128xf32>
    %360 = arith.mulf %359, %358 : vector<8x128xf32>
    %361 = arith.addf %273, %360 : vector<8x128xf32>
    %362 = arith.subf %357, %277 : vector<8x128xf32>
    %363 = vector.broadcast %286 : vector<8x1xf32> to vector<8x128xf32>
    %364 = arith.mulf %363, %362 : vector<8x128xf32>
    %365 = arith.addf %277, %364 : vector<8x128xf32>
    %c4 = arith.constant 4 : index
    %c0_78 = arith.constant 0 : index
    %c0_79 = arith.constant 0 : index
    %366 = vector.load %arg2[%c4, %c0_78, %c0_79] : memref<8x8x32xbf16, #tpu.memory_space<vmem>>, vector<1x8x32xbf16>
    %367 = vector.shape_cast %366 : vector<1x8x32xbf16> to vector<8x32xbf16>
    %368 = arith.cmpf one, %367, %3 : vector<8x32xbf16>
    %369 = arith.extui %368 : vector<8x32xi1> to vector<8x32xi32>
    %370 = arith.sitofp %369 : vector<8x32xi32> to vector<8x32xf32>
    %cst_80 = arith.constant dense<0.000000e+00> : vector<8xf32>
    %371 = vector.multi_reduction <add>, %370, %cst_80 [1] : vector<8x32xf32> to vector<8xf32>
    %372 = vector.shape_cast %371 : vector<8xf32> to vector<8x1xf32>
    %cst_81 = arith.constant 1.000000e+00 : f32
    %373 = vector.broadcast %cst_81 : f32 to vector<8x1xf32>
    %374 = arith.minimumf %372, %373 : vector<8x1xf32>
    %cst_82 = arith.constant dense<0.000000e+00> : vector<8x512xf32>
    %375 = tpu.matmul %367, %4, %cst_82 {dimension_numbers = #tpu.dot_dimension_numbers<[1], [0], [0], [1], [0, 0, 1, 1], [], []>} : vector<8x32xbf16>, vector<32x512xbf16>, vector<8x512xf32> -> vector<8x512xf32>
    %376 = arith.truncf %325 : vector<8x128xf32> to vector<8x128xbf16>
    %cst_83 = arith.constant dense<0.000000e+00> : vector<8x512xf32>
    %377 = tpu.matmul %376, %6, %cst_83 {dimension_numbers = #tpu.dot_dimension_numbers<[1], [0], [0], [1], [0, 0, 1, 1], [], []>} : vector<8x128xbf16>, vector<128x512xbf16>, vector<8x512xf32> -> vector<8x512xf32>
    %378 = arith.addf %375, %377 : vector<8x512xf32>
    %379 = vector.broadcast %8 : vector<1x512xf32> to vector<8x512xf32>
    %380 = arith.addf %378, %379 : vector<8x512xf32>
    %381 = vector.extract_strided_slice %380 {offsets = [0, 0], sizes = [8, 128], strides = [1, 1]} : vector<8x512xf32> to vector<8x128xf32>
    %382 = arith.negf %381 : vector<8x128xf32>
    %383 = math.exp %382 : vector<8x128xf32>
    %cst_84 = arith.constant 1.000000e+00 : f32
    %384 = vector.broadcast %cst_84 : f32 to vector<8x128xf32>
    %385 = arith.addf %384, %383 : vector<8x128xf32>
    %386 = arith.divf %384, %385 : vector<8x128xf32>
    %387 = vector.extract_strided_slice %380 {offsets = [0, 128], sizes = [8, 128], strides = [1, 1]} : vector<8x512xf32> to vector<8x128xf32>
    %388 = arith.negf %387 : vector<8x128xf32>
    %389 = math.exp %388 : vector<8x128xf32>
    %cst_85 = arith.constant 1.000000e+00 : f32
    %390 = vector.broadcast %cst_85 : f32 to vector<8x128xf32>
    %391 = arith.addf %390, %389 : vector<8x128xf32>
    %392 = arith.divf %390, %391 : vector<8x128xf32>
    %393 = vector.extract_strided_slice %380 {offsets = [0, 256], sizes = [8, 128], strides = [1, 1]} : vector<8x512xf32> to vector<8x128xf32>
    %394 = arith.negf %393 : vector<8x128xf32>
    %395 = math.exp %394 : vector<8x128xf32>
    %cst_86 = arith.constant 1.000000e+00 : f32
    %396 = vector.broadcast %cst_86 : f32 to vector<8x128xf32>
    %397 = arith.addf %396, %395 : vector<8x128xf32>
    %398 = arith.divf %396, %397 : vector<8x128xf32>
    %399 = vector.extract_strided_slice %380 {offsets = [0, 384], sizes = [8, 128], strides = [1, 1]} : vector<8x512xf32> to vector<8x128xf32>
    %400 = math.tanh %399 : vector<8x128xf32>
    %401 = arith.mulf %321, %386 : vector<8x128xf32>
    %402 = arith.mulf %392, %400 : vector<8x128xf32>
    %403 = arith.addf %401, %402 : vector<8x128xf32>
    %404 = math.tanh %403 : vector<8x128xf32>
    %405 = arith.mulf %398, %404 : vector<8x128xf32>
    %406 = arith.subf %403, %321 : vector<8x128xf32>
    %407 = vector.broadcast %374 : vector<8x1xf32> to vector<8x128xf32>
    %408 = arith.mulf %407, %406 : vector<8x128xf32>
    %409 = arith.addf %321, %408 : vector<8x128xf32>
    %410 = arith.subf %405, %325 : vector<8x128xf32>
    %411 = vector.broadcast %374 : vector<8x1xf32> to vector<8x128xf32>
    %412 = arith.mulf %411, %410 : vector<8x128xf32>
    %413 = arith.addf %325, %412 : vector<8x128xf32>
    %414 = arith.truncf %413 : vector<8x128xf32> to vector<8x128xbf16>
    %cst_87 = arith.constant dense<0.000000e+00> : vector<8x512xf32>
    %415 = tpu.matmul %414, %5, %cst_87 {dimension_numbers = #tpu.dot_dimension_numbers<[1], [0], [0], [1], [0, 0, 1, 1], [], []>} : vector<8x128xbf16>, vector<128x512xbf16>, vector<8x512xf32> -> vector<8x512xf32>
    %416 = arith.truncf %365 : vector<8x128xf32> to vector<8x128xbf16>
    %cst_88 = arith.constant dense<0.000000e+00> : vector<8x512xf32>
    %417 = tpu.matmul %416, %7, %cst_88 {dimension_numbers = #tpu.dot_dimension_numbers<[1], [0], [0], [1], [0, 0, 1, 1], [], []>} : vector<8x128xbf16>, vector<128x512xbf16>, vector<8x512xf32> -> vector<8x512xf32>
    %418 = arith.addf %415, %417 : vector<8x512xf32>
    %419 = vector.broadcast %9 : vector<1x512xf32> to vector<8x512xf32>
    %420 = arith.addf %418, %419 : vector<8x512xf32>
    %421 = vector.extract_strided_slice %420 {offsets = [0, 0], sizes = [8, 128], strides = [1, 1]} : vector<8x512xf32> to vector<8x128xf32>
    %422 = arith.negf %421 : vector<8x128xf32>
    %423 = math.exp %422 : vector<8x128xf32>
    %cst_89 = arith.constant 1.000000e+00 : f32
    %424 = vector.broadcast %cst_89 : f32 to vector<8x128xf32>
    %425 = arith.addf %424, %423 : vector<8x128xf32>
    %426 = arith.divf %424, %425 : vector<8x128xf32>
    %427 = vector.extract_strided_slice %420 {offsets = [0, 128], sizes = [8, 128], strides = [1, 1]} : vector<8x512xf32> to vector<8x128xf32>
    %428 = arith.negf %427 : vector<8x128xf32>
    %429 = math.exp %428 : vector<8x128xf32>
    %cst_90 = arith.constant 1.000000e+00 : f32
    %430 = vector.broadcast %cst_90 : f32 to vector<8x128xf32>
    %431 = arith.addf %430, %429 : vector<8x128xf32>
    %432 = arith.divf %430, %431 : vector<8x128xf32>
    %433 = vector.extract_strided_slice %420 {offsets = [0, 256], sizes = [8, 128], strides = [1, 1]} : vector<8x512xf32> to vector<8x128xf32>
    %434 = arith.negf %433 : vector<8x128xf32>
    %435 = math.exp %434 : vector<8x128xf32>
    %cst_91 = arith.constant 1.000000e+00 : f32
    %436 = vector.broadcast %cst_91 : f32 to vector<8x128xf32>
    %437 = arith.addf %436, %435 : vector<8x128xf32>
    %438 = arith.divf %436, %437 : vector<8x128xf32>
    %439 = vector.extract_strided_slice %420 {offsets = [0, 384], sizes = [8, 128], strides = [1, 1]} : vector<8x512xf32> to vector<8x128xf32>
    %440 = math.tanh %439 : vector<8x128xf32>
    %441 = arith.mulf %361, %426 : vector<8x128xf32>
    %442 = arith.mulf %432, %440 : vector<8x128xf32>
    %443 = arith.addf %441, %442 : vector<8x128xf32>
    %444 = math.tanh %443 : vector<8x128xf32>
    %445 = arith.mulf %438, %444 : vector<8x128xf32>
    %446 = arith.subf %443, %361 : vector<8x128xf32>
    %447 = vector.broadcast %374 : vector<8x1xf32> to vector<8x128xf32>
    %448 = arith.mulf %447, %446 : vector<8x128xf32>
    %449 = arith.addf %361, %448 : vector<8x128xf32>
    %450 = arith.subf %445, %365 : vector<8x128xf32>
    %451 = vector.broadcast %374 : vector<8x1xf32> to vector<8x128xf32>
    %452 = arith.mulf %451, %450 : vector<8x128xf32>
    %453 = arith.addf %365, %452 : vector<8x128xf32>
    %c5 = arith.constant 5 : index
    %c0_92 = arith.constant 0 : index
    %c0_93 = arith.constant 0 : index
    %454 = vector.load %arg2[%c5, %c0_92, %c0_93] : memref<8x8x32xbf16, #tpu.memory_space<vmem>>, vector<1x8x32xbf16>
    %455 = vector.shape_cast %454 : vector<1x8x32xbf16> to vector<8x32xbf16>
    %456 = arith.cmpf one, %455, %3 : vector<8x32xbf16>
    %457 = arith.extui %456 : vector<8x32xi1> to vector<8x32xi32>
    %458 = arith.sitofp %457 : vector<8x32xi32> to vector<8x32xf32>
    %cst_94 = arith.constant dense<0.000000e+00> : vector<8xf32>
    %459 = vector.multi_reduction <add>, %458, %cst_94 [1] : vector<8x32xf32> to vector<8xf32>
    %460 = vector.shape_cast %459 : vector<8xf32> to vector<8x1xf32>
    %cst_95 = arith.constant 1.000000e+00 : f32
    %461 = vector.broadcast %cst_95 : f32 to vector<8x1xf32>
    %462 = arith.minimumf %460, %461 : vector<8x1xf32>
    %cst_96 = arith.constant dense<0.000000e+00> : vector<8x512xf32>
    %463 = tpu.matmul %455, %4, %cst_96 {dimension_numbers = #tpu.dot_dimension_numbers<[1], [0], [0], [1], [0, 0, 1, 1], [], []>} : vector<8x32xbf16>, vector<32x512xbf16>, vector<8x512xf32> -> vector<8x512xf32>
    %464 = arith.truncf %413 : vector<8x128xf32> to vector<8x128xbf16>
    %cst_97 = arith.constant dense<0.000000e+00> : vector<8x512xf32>
    %465 = tpu.matmul %464, %6, %cst_97 {dimension_numbers = #tpu.dot_dimension_numbers<[1], [0], [0], [1], [0, 0, 1, 1], [], []>} : vector<8x128xbf16>, vector<128x512xbf16>, vector<8x512xf32> -> vector<8x512xf32>
    %466 = arith.addf %463, %465 : vector<8x512xf32>
    %467 = vector.broadcast %8 : vector<1x512xf32> to vector<8x512xf32>
    %468 = arith.addf %466, %467 : vector<8x512xf32>
    %469 = vector.extract_strided_slice %468 {offsets = [0, 0], sizes = [8, 128], strides = [1, 1]} : vector<8x512xf32> to vector<8x128xf32>
    %470 = arith.negf %469 : vector<8x128xf32>
    %471 = math.exp %470 : vector<8x128xf32>
    %cst_98 = arith.constant 1.000000e+00 : f32
    %472 = vector.broadcast %cst_98 : f32 to vector<8x128xf32>
    %473 = arith.addf %472, %471 : vector<8x128xf32>
    %474 = arith.divf %472, %473 : vector<8x128xf32>
    %475 = vector.extract_strided_slice %468 {offsets = [0, 128], sizes = [8, 128], strides = [1, 1]} : vector<8x512xf32> to vector<8x128xf32>
    %476 = arith.negf %475 : vector<8x128xf32>
    %477 = math.exp %476 : vector<8x128xf32>
    %cst_99 = arith.constant 1.000000e+00 : f32
    %478 = vector.broadcast %cst_99 : f32 to vector<8x128xf32>
    %479 = arith.addf %478, %477 : vector<8x128xf32>
    %480 = arith.divf %478, %479 : vector<8x128xf32>
    %481 = vector.extract_strided_slice %468 {offsets = [0, 256], sizes = [8, 128], strides = [1, 1]} : vector<8x512xf32> to vector<8x128xf32>
    %482 = arith.negf %481 : vector<8x128xf32>
    %483 = math.exp %482 : vector<8x128xf32>
    %cst_100 = arith.constant 1.000000e+00 : f32
    %484 = vector.broadcast %cst_100 : f32 to vector<8x128xf32>
    %485 = arith.addf %484, %483 : vector<8x128xf32>
    %486 = arith.divf %484, %485 : vector<8x128xf32>
    %487 = vector.extract_strided_slice %468 {offsets = [0, 384], sizes = [8, 128], strides = [1, 1]} : vector<8x512xf32> to vector<8x128xf32>
    %488 = math.tanh %487 : vector<8x128xf32>
    %489 = arith.mulf %409, %474 : vector<8x128xf32>
    %490 = arith.mulf %480, %488 : vector<8x128xf32>
    %491 = arith.addf %489, %490 : vector<8x128xf32>
    %492 = math.tanh %491 : vector<8x128xf32>
    %493 = arith.mulf %486, %492 : vector<8x128xf32>
    %494 = arith.subf %491, %409 : vector<8x128xf32>
    %495 = vector.broadcast %462 : vector<8x1xf32> to vector<8x128xf32>
    %496 = arith.mulf %495, %494 : vector<8x128xf32>
    %497 = arith.addf %409, %496 : vector<8x128xf32>
    %498 = arith.subf %493, %413 : vector<8x128xf32>
    %499 = vector.broadcast %462 : vector<8x1xf32> to vector<8x128xf32>
    %500 = arith.mulf %499, %498 : vector<8x128xf32>
    %501 = arith.addf %413, %500 : vector<8x128xf32>
    %502 = arith.truncf %501 : vector<8x128xf32> to vector<8x128xbf16>
    %cst_101 = arith.constant dense<0.000000e+00> : vector<8x512xf32>
    %503 = tpu.matmul %502, %5, %cst_101 {dimension_numbers = #tpu.dot_dimension_numbers<[1], [0], [0], [1], [0, 0, 1, 1], [], []>} : vector<8x128xbf16>, vector<128x512xbf16>, vector<8x512xf32> -> vector<8x512xf32>
    %504 = arith.truncf %453 : vector<8x128xf32> to vector<8x128xbf16>
    %cst_102 = arith.constant dense<0.000000e+00> : vector<8x512xf32>
    %505 = tpu.matmul %504, %7, %cst_102 {dimension_numbers = #tpu.dot_dimension_numbers<[1], [0], [0], [1], [0, 0, 1, 1], [], []>} : vector<8x128xbf16>, vector<128x512xbf16>, vector<8x512xf32> -> vector<8x512xf32>
    %506 = arith.addf %503, %505 : vector<8x512xf32>
    %507 = vector.broadcast %9 : vector<1x512xf32> to vector<8x512xf32>
    %508 = arith.addf %506, %507 : vector<8x512xf32>
    %509 = vector.extract_strided_slice %508 {offsets = [0, 0], sizes = [8, 128], strides = [1, 1]} : vector<8x512xf32> to vector<8x128xf32>
    %510 = arith.negf %509 : vector<8x128xf32>
    %511 = math.exp %510 : vector<8x128xf32>
    %cst_103 = arith.constant 1.000000e+00 : f32
    %512 = vector.broadcast %cst_103 : f32 to vector<8x128xf32>
    %513 = arith.addf %512, %511 : vector<8x128xf32>
    %514 = arith.divf %512, %513 : vector<8x128xf32>
    %515 = vector.extract_strided_slice %508 {offsets = [0, 128], sizes = [8, 128], strides = [1, 1]} : vector<8x512xf32> to vector<8x128xf32>
    %516 = arith.negf %515 : vector<8x128xf32>
    %517 = math.exp %516 : vector<8x128xf32>
    %cst_104 = arith.constant 1.000000e+00 : f32
    %518 = vector.broadcast %cst_104 : f32 to vector<8x128xf32>
    %519 = arith.addf %518, %517 : vector<8x128xf32>
    %520 = arith.divf %518, %519 : vector<8x128xf32>
    %521 = vector.extract_strided_slice %508 {offsets = [0, 256], sizes = [8, 128], strides = [1, 1]} : vector<8x512xf32> to vector<8x128xf32>
    %522 = arith.negf %521 : vector<8x128xf32>
    %523 = math.exp %522 : vector<8x128xf32>
    %cst_105 = arith.constant 1.000000e+00 : f32
    %524 = vector.broadcast %cst_105 : f32 to vector<8x128xf32>
    %525 = arith.addf %524, %523 : vector<8x128xf32>
    %526 = arith.divf %524, %525 : vector<8x128xf32>
    %527 = vector.extract_strided_slice %508 {offsets = [0, 384], sizes = [8, 128], strides = [1, 1]} : vector<8x512xf32> to vector<8x128xf32>
    %528 = math.tanh %527 : vector<8x128xf32>
    %529 = arith.mulf %449, %514 : vector<8x128xf32>
    %530 = arith.mulf %520, %528 : vector<8x128xf32>
    %531 = arith.addf %529, %530 : vector<8x128xf32>
    %532 = math.tanh %531 : vector<8x128xf32>
    %533 = arith.mulf %526, %532 : vector<8x128xf32>
    %534 = arith.subf %531, %449 : vector<8x128xf32>
    %535 = vector.broadcast %462 : vector<8x1xf32> to vector<8x128xf32>
    %536 = arith.mulf %535, %534 : vector<8x128xf32>
    %537 = arith.addf %449, %536 : vector<8x128xf32>
    %538 = arith.subf %533, %453 : vector<8x128xf32>
    %539 = vector.broadcast %462 : vector<8x1xf32> to vector<8x128xf32>
    %540 = arith.mulf %539, %538 : vector<8x128xf32>
    %541 = arith.addf %453, %540 : vector<8x128xf32>
    %c6 = arith.constant 6 : index
    %c0_106 = arith.constant 0 : index
    %c0_107 = arith.constant 0 : index
    %542 = vector.load %arg2[%c6, %c0_106, %c0_107] : memref<8x8x32xbf16, #tpu.memory_space<vmem>>, vector<1x8x32xbf16>
    %543 = vector.shape_cast %542 : vector<1x8x32xbf16> to vector<8x32xbf16>
    %544 = arith.cmpf one, %543, %3 : vector<8x32xbf16>
    %545 = arith.extui %544 : vector<8x32xi1> to vector<8x32xi32>
    %546 = arith.sitofp %545 : vector<8x32xi32> to vector<8x32xf32>
    %cst_108 = arith.constant dense<0.000000e+00> : vector<8xf32>
    %547 = vector.multi_reduction <add>, %546, %cst_108 [1] : vector<8x32xf32> to vector<8xf32>
    %548 = vector.shape_cast %547 : vector<8xf32> to vector<8x1xf32>
    %cst_109 = arith.constant 1.000000e+00 : f32
    %549 = vector.broadcast %cst_109 : f32 to vector<8x1xf32>
    %550 = arith.minimumf %548, %549 : vector<8x1xf32>
    %cst_110 = arith.constant dense<0.000000e+00> : vector<8x512xf32>
    %551 = tpu.matmul %543, %4, %cst_110 {dimension_numbers = #tpu.dot_dimension_numbers<[1], [0], [0], [1], [0, 0, 1, 1], [], []>} : vector<8x32xbf16>, vector<32x512xbf16>, vector<8x512xf32> -> vector<8x512xf32>
    %552 = arith.truncf %501 : vector<8x128xf32> to vector<8x128xbf16>
    %cst_111 = arith.constant dense<0.000000e+00> : vector<8x512xf32>
    %553 = tpu.matmul %552, %6, %cst_111 {dimension_numbers = #tpu.dot_dimension_numbers<[1], [0], [0], [1], [0, 0, 1, 1], [], []>} : vector<8x128xbf16>, vector<128x512xbf16>, vector<8x512xf32> -> vector<8x512xf32>
    %554 = arith.addf %551, %553 : vector<8x512xf32>
    %555 = vector.broadcast %8 : vector<1x512xf32> to vector<8x512xf32>
    %556 = arith.addf %554, %555 : vector<8x512xf32>
    %557 = vector.extract_strided_slice %556 {offsets = [0, 0], sizes = [8, 128], strides = [1, 1]} : vector<8x512xf32> to vector<8x128xf32>
    %558 = arith.negf %557 : vector<8x128xf32>
    %559 = math.exp %558 : vector<8x128xf32>
    %cst_112 = arith.constant 1.000000e+00 : f32
    %560 = vector.broadcast %cst_112 : f32 to vector<8x128xf32>
    %561 = arith.addf %560, %559 : vector<8x128xf32>
    %562 = arith.divf %560, %561 : vector<8x128xf32>
    %563 = vector.extract_strided_slice %556 {offsets = [0, 128], sizes = [8, 128], strides = [1, 1]} : vector<8x512xf32> to vector<8x128xf32>
    %564 = arith.negf %563 : vector<8x128xf32>
    %565 = math.exp %564 : vector<8x128xf32>
    %cst_113 = arith.constant 1.000000e+00 : f32
    %566 = vector.broadcast %cst_113 : f32 to vector<8x128xf32>
    %567 = arith.addf %566, %565 : vector<8x128xf32>
    %568 = arith.divf %566, %567 : vector<8x128xf32>
    %569 = vector.extract_strided_slice %556 {offsets = [0, 256], sizes = [8, 128], strides = [1, 1]} : vector<8x512xf32> to vector<8x128xf32>
    %570 = arith.negf %569 : vector<8x128xf32>
    %571 = math.exp %570 : vector<8x128xf32>
    %cst_114 = arith.constant 1.000000e+00 : f32
    %572 = vector.broadcast %cst_114 : f32 to vector<8x128xf32>
    %573 = arith.addf %572, %571 : vector<8x128xf32>
    %574 = arith.divf %572, %573 : vector<8x128xf32>
    %575 = vector.extract_strided_slice %556 {offsets = [0, 384], sizes = [8, 128], strides = [1, 1]} : vector<8x512xf32> to vector<8x128xf32>
    %576 = math.tanh %575 : vector<8x128xf32>
    %577 = arith.mulf %497, %562 : vector<8x128xf32>
    %578 = arith.mulf %568, %576 : vector<8x128xf32>
    %579 = arith.addf %577, %578 : vector<8x128xf32>
    %580 = math.tanh %579 : vector<8x128xf32>
    %581 = arith.mulf %574, %580 : vector<8x128xf32>
    %582 = arith.subf %579, %497 : vector<8x128xf32>
    %583 = vector.broadcast %550 : vector<8x1xf32> to vector<8x128xf32>
    %584 = arith.mulf %583, %582 : vector<8x128xf32>
    %585 = arith.addf %497, %584 : vector<8x128xf32>
    %586 = arith.subf %581, %501 : vector<8x128xf32>
    %587 = vector.broadcast %550 : vector<8x1xf32> to vector<8x128xf32>
    %588 = arith.mulf %587, %586 : vector<8x128xf32>
    %589 = arith.addf %501, %588 : vector<8x128xf32>
    %590 = arith.truncf %589 : vector<8x128xf32> to vector<8x128xbf16>
    %cst_115 = arith.constant dense<0.000000e+00> : vector<8x512xf32>
    %591 = tpu.matmul %590, %5, %cst_115 {dimension_numbers = #tpu.dot_dimension_numbers<[1], [0], [0], [1], [0, 0, 1, 1], [], []>} : vector<8x128xbf16>, vector<128x512xbf16>, vector<8x512xf32> -> vector<8x512xf32>
    %592 = arith.truncf %541 : vector<8x128xf32> to vector<8x128xbf16>
    %cst_116 = arith.constant dense<0.000000e+00> : vector<8x512xf32>
    %593 = tpu.matmul %592, %7, %cst_116 {dimension_numbers = #tpu.dot_dimension_numbers<[1], [0], [0], [1], [0, 0, 1, 1], [], []>} : vector<8x128xbf16>, vector<128x512xbf16>, vector<8x512xf32> -> vector<8x512xf32>
    %594 = arith.addf %591, %593 : vector<8x512xf32>
    %595 = vector.broadcast %9 : vector<1x512xf32> to vector<8x512xf32>
    %596 = arith.addf %594, %595 : vector<8x512xf32>
    %597 = vector.extract_strided_slice %596 {offsets = [0, 0], sizes = [8, 128], strides = [1, 1]} : vector<8x512xf32> to vector<8x128xf32>
    %598 = arith.negf %597 : vector<8x128xf32>
    %599 = math.exp %598 : vector<8x128xf32>
    %cst_117 = arith.constant 1.000000e+00 : f32
    %600 = vector.broadcast %cst_117 : f32 to vector<8x128xf32>
    %601 = arith.addf %600, %599 : vector<8x128xf32>
    %602 = arith.divf %600, %601 : vector<8x128xf32>
    %603 = vector.extract_strided_slice %596 {offsets = [0, 128], sizes = [8, 128], strides = [1, 1]} : vector<8x512xf32> to vector<8x128xf32>
    %604 = arith.negf %603 : vector<8x128xf32>
    %605 = math.exp %604 : vector<8x128xf32>
    %cst_118 = arith.constant 1.000000e+00 : f32
    %606 = vector.broadcast %cst_118 : f32 to vector<8x128xf32>
    %607 = arith.addf %606, %605 : vector<8x128xf32>
    %608 = arith.divf %606, %607 : vector<8x128xf32>
    %609 = vector.extract_strided_slice %596 {offsets = [0, 256], sizes = [8, 128], strides = [1, 1]} : vector<8x512xf32> to vector<8x128xf32>
    %610 = arith.negf %609 : vector<8x128xf32>
    %611 = math.exp %610 : vector<8x128xf32>
    %cst_119 = arith.constant 1.000000e+00 : f32
    %612 = vector.broadcast %cst_119 : f32 to vector<8x128xf32>
    %613 = arith.addf %612, %611 : vector<8x128xf32>
    %614 = arith.divf %612, %613 : vector<8x128xf32>
    %615 = vector.extract_strided_slice %596 {offsets = [0, 384], sizes = [8, 128], strides = [1, 1]} : vector<8x512xf32> to vector<8x128xf32>
    %616 = math.tanh %615 : vector<8x128xf32>
    %617 = arith.mulf %537, %602 : vector<8x128xf32>
    %618 = arith.mulf %608, %616 : vector<8x128xf32>
    %619 = arith.addf %617, %618 : vector<8x128xf32>
    %620 = math.tanh %619 : vector<8x128xf32>
    %621 = arith.mulf %614, %620 : vector<8x128xf32>
    %622 = arith.subf %619, %537 : vector<8x128xf32>
    %623 = vector.broadcast %550 : vector<8x1xf32> to vector<8x128xf32>
    %624 = arith.mulf %623, %622 : vector<8x128xf32>
    %625 = arith.addf %537, %624 : vector<8x128xf32>
    %626 = arith.subf %621, %541 : vector<8x128xf32>
    %627 = vector.broadcast %550 : vector<8x1xf32> to vector<8x128xf32>
    %628 = arith.mulf %627, %626 : vector<8x128xf32>
    %629 = arith.addf %541, %628 : vector<8x128xf32>
    %c7 = arith.constant 7 : index
    %c0_120 = arith.constant 0 : index
    %c0_121 = arith.constant 0 : index
    %630 = vector.load %arg2[%c7, %c0_120, %c0_121] : memref<8x8x32xbf16, #tpu.memory_space<vmem>>, vector<1x8x32xbf16>
    %631 = vector.shape_cast %630 : vector<1x8x32xbf16> to vector<8x32xbf16>
    %632 = arith.cmpf one, %631, %3 : vector<8x32xbf16>
    %633 = arith.extui %632 : vector<8x32xi1> to vector<8x32xi32>
    %634 = arith.sitofp %633 : vector<8x32xi32> to vector<8x32xf32>
    %cst_122 = arith.constant dense<0.000000e+00> : vector<8xf32>
    %635 = vector.multi_reduction <add>, %634, %cst_122 [1] : vector<8x32xf32> to vector<8xf32>
    %636 = vector.shape_cast %635 : vector<8xf32> to vector<8x1xf32>
    %cst_123 = arith.constant 1.000000e+00 : f32
    %637 = vector.broadcast %cst_123 : f32 to vector<8x1xf32>
    %638 = arith.minimumf %636, %637 : vector<8x1xf32>
    %cst_124 = arith.constant dense<0.000000e+00> : vector<8x512xf32>
    %639 = tpu.matmul %631, %4, %cst_124 {dimension_numbers = #tpu.dot_dimension_numbers<[1], [0], [0], [1], [0, 0, 1, 1], [], []>} : vector<8x32xbf16>, vector<32x512xbf16>, vector<8x512xf32> -> vector<8x512xf32>
    %640 = arith.truncf %589 : vector<8x128xf32> to vector<8x128xbf16>
    %cst_125 = arith.constant dense<0.000000e+00> : vector<8x512xf32>
    %641 = tpu.matmul %640, %6, %cst_125 {dimension_numbers = #tpu.dot_dimension_numbers<[1], [0], [0], [1], [0, 0, 1, 1], [], []>} : vector<8x128xbf16>, vector<128x512xbf16>, vector<8x512xf32> -> vector<8x512xf32>
    %642 = arith.addf %639, %641 : vector<8x512xf32>
    %643 = vector.broadcast %8 : vector<1x512xf32> to vector<8x512xf32>
    %644 = arith.addf %642, %643 : vector<8x512xf32>
    %645 = vector.extract_strided_slice %644 {offsets = [0, 0], sizes = [8, 128], strides = [1, 1]} : vector<8x512xf32> to vector<8x128xf32>
    %646 = arith.negf %645 : vector<8x128xf32>
    %647 = math.exp %646 : vector<8x128xf32>
    %cst_126 = arith.constant 1.000000e+00 : f32
    %648 = vector.broadcast %cst_126 : f32 to vector<8x128xf32>
    %649 = arith.addf %648, %647 : vector<8x128xf32>
    %650 = arith.divf %648, %649 : vector<8x128xf32>
    %651 = vector.extract_strided_slice %644 {offsets = [0, 128], sizes = [8, 128], strides = [1, 1]} : vector<8x512xf32> to vector<8x128xf32>
    %652 = arith.negf %651 : vector<8x128xf32>
    %653 = math.exp %652 : vector<8x128xf32>
    %cst_127 = arith.constant 1.000000e+00 : f32
    %654 = vector.broadcast %cst_127 : f32 to vector<8x128xf32>
    %655 = arith.addf %654, %653 : vector<8x128xf32>
    %656 = arith.divf %654, %655 : vector<8x128xf32>
    %657 = vector.extract_strided_slice %644 {offsets = [0, 256], sizes = [8, 128], strides = [1, 1]} : vector<8x512xf32> to vector<8x128xf32>
    %658 = arith.negf %657 : vector<8x128xf32>
    %659 = math.exp %658 : vector<8x128xf32>
    %cst_128 = arith.constant 1.000000e+00 : f32
    %660 = vector.broadcast %cst_128 : f32 to vector<8x128xf32>
    %661 = arith.addf %660, %659 : vector<8x128xf32>
    %662 = arith.divf %660, %661 : vector<8x128xf32>
    %663 = vector.extract_strided_slice %644 {offsets = [0, 384], sizes = [8, 128], strides = [1, 1]} : vector<8x512xf32> to vector<8x128xf32>
    %664 = math.tanh %663 : vector<8x128xf32>
    %665 = arith.mulf %585, %650 : vector<8x128xf32>
    %666 = arith.mulf %656, %664 : vector<8x128xf32>
    %667 = arith.addf %665, %666 : vector<8x128xf32>
    %668 = math.tanh %667 : vector<8x128xf32>
    %669 = arith.mulf %662, %668 : vector<8x128xf32>
    %670 = arith.subf %667, %585 : vector<8x128xf32>
    %671 = vector.broadcast %638 : vector<8x1xf32> to vector<8x128xf32>
    %672 = arith.mulf %671, %670 : vector<8x128xf32>
    %673 = arith.addf %585, %672 : vector<8x128xf32>
    %674 = arith.subf %669, %589 : vector<8x128xf32>
    %675 = vector.broadcast %638 : vector<8x1xf32> to vector<8x128xf32>
    %676 = arith.mulf %675, %674 : vector<8x128xf32>
    %677 = arith.addf %589, %676 : vector<8x128xf32>
    %678 = arith.truncf %677 : vector<8x128xf32> to vector<8x128xbf16>
    %cst_129 = arith.constant dense<0.000000e+00> : vector<8x512xf32>
    %679 = tpu.matmul %678, %5, %cst_129 {dimension_numbers = #tpu.dot_dimension_numbers<[1], [0], [0], [1], [0, 0, 1, 1], [], []>} : vector<8x128xbf16>, vector<128x512xbf16>, vector<8x512xf32> -> vector<8x512xf32>
    %680 = arith.truncf %629 : vector<8x128xf32> to vector<8x128xbf16>
    %cst_130 = arith.constant dense<0.000000e+00> : vector<8x512xf32>
    %681 = tpu.matmul %680, %7, %cst_130 {dimension_numbers = #tpu.dot_dimension_numbers<[1], [0], [0], [1], [0, 0, 1, 1], [], []>} : vector<8x128xbf16>, vector<128x512xbf16>, vector<8x512xf32> -> vector<8x512xf32>
    %682 = arith.addf %679, %681 : vector<8x512xf32>
    %683 = vector.broadcast %9 : vector<1x512xf32> to vector<8x512xf32>
    %684 = arith.addf %682, %683 : vector<8x512xf32>
    %685 = vector.extract_strided_slice %684 {offsets = [0, 0], sizes = [8, 128], strides = [1, 1]} : vector<8x512xf32> to vector<8x128xf32>
    %686 = arith.negf %685 : vector<8x128xf32>
    %687 = math.exp %686 : vector<8x128xf32>
    %cst_131 = arith.constant 1.000000e+00 : f32
    %688 = vector.broadcast %cst_131 : f32 to vector<8x128xf32>
    %689 = arith.addf %688, %687 : vector<8x128xf32>
    %690 = arith.divf %688, %689 : vector<8x128xf32>
    %691 = vector.extract_strided_slice %684 {offsets = [0, 128], sizes = [8, 128], strides = [1, 1]} : vector<8x512xf32> to vector<8x128xf32>
    %692 = arith.negf %691 : vector<8x128xf32>
    %693 = math.exp %692 : vector<8x128xf32>
    %cst_132 = arith.constant 1.000000e+00 : f32
    %694 = vector.broadcast %cst_132 : f32 to vector<8x128xf32>
    %695 = arith.addf %694, %693 : vector<8x128xf32>
    %696 = arith.divf %694, %695 : vector<8x128xf32>
    %697 = vector.extract_strided_slice %684 {offsets = [0, 256], sizes = [8, 128], strides = [1, 1]} : vector<8x512xf32> to vector<8x128xf32>
    %698 = arith.negf %697 : vector<8x128xf32>
    %699 = math.exp %698 : vector<8x128xf32>
    %cst_133 = arith.constant 1.000000e+00 : f32
    %700 = vector.broadcast %cst_133 : f32 to vector<8x128xf32>
    %701 = arith.addf %700, %699 : vector<8x128xf32>
    %702 = arith.divf %700, %701 : vector<8x128xf32>
    %703 = vector.extract_strided_slice %684 {offsets = [0, 384], sizes = [8, 128], strides = [1, 1]} : vector<8x512xf32> to vector<8x128xf32>
    %704 = math.tanh %703 : vector<8x128xf32>
    %705 = arith.mulf %625, %690 : vector<8x128xf32>
    %706 = arith.mulf %696, %704 : vector<8x128xf32>
    %707 = arith.addf %705, %706 : vector<8x128xf32>
    %708 = math.tanh %707 : vector<8x128xf32>
    %709 = arith.mulf %702, %708 : vector<8x128xf32>
    %710 = arith.subf %707, %625 : vector<8x128xf32>
    %711 = vector.broadcast %638 : vector<8x1xf32> to vector<8x128xf32>
    %712 = arith.mulf %711, %710 : vector<8x128xf32>
    %713 = arith.addf %625, %712 : vector<8x128xf32>
    %714 = arith.subf %709, %629 : vector<8x128xf32>
    %715 = vector.broadcast %638 : vector<8x1xf32> to vector<8x128xf32>
    %716 = arith.mulf %715, %714 : vector<8x128xf32>
    %717 = arith.addf %629, %716 : vector<8x128xf32>
    %c0_134 = arith.constant 0 : index
    %c0_135 = arith.constant 0 : index
    %718 = vector.load %arg13[%c0_134, %c0_135] : memref<8x128xf32, #tpu.memory_space<vmem>>, vector<8x128xf32>
    tpu.vector_store %arg13[%c0_134, %c0_135], %677 {strides = array<i32>} : memref<8x128xf32, #tpu.memory_space<vmem>>, vector<8x128xf32>,
    %c0_136 = arith.constant 0 : index
    %c0_137 = arith.constant 0 : index
    %719 = vector.load %arg15[%c0_136, %c0_137] : memref<8x128xf32, #tpu.memory_space<vmem>>, vector<8x128xf32>
    tpu.vector_store %arg15[%c0_136, %c0_137], %673 {strides = array<i32>} : memref<8x128xf32, #tpu.memory_space<vmem>>, vector<8x128xf32>,
    %c0_138 = arith.constant 0 : index
    %c0_139 = arith.constant 0 : index
    %720 = vector.load %arg14[%c0_138, %c0_139] : memref<8x128xf32, #tpu.memory_space<vmem>>, vector<8x128xf32>
    tpu.vector_store %arg14[%c0_138, %c0_139], %717 {strides = array<i32>} : memref<8x128xf32, #tpu.memory_space<vmem>>, vector<8x128xf32>,
    %c0_140 = arith.constant 0 : index
    %c0_141 = arith.constant 0 : index
    %721 = vector.load %arg16[%c0_140, %c0_141] : memref<8x128xf32, #tpu.memory_space<vmem>>, vector<8x128xf32>
    tpu.vector_store %arg16[%c0_140, %c0_141], %713 {strides = array<i32>} : memref<8x128xf32, #tpu.memory_space<vmem>>, vector<8x128xf32>,
    %c1_i32 = arith.constant 1 : i32
    %722 = arith.cmpi eq, %arg1, %c1_i32 : i32
    %723 = arith.extui %722 : i1 to i32
    %c0_i32_142 = arith.constant 0 : i32
    %724 = arith.cmpi ne, %723, %c0_i32_142 : i32
    scf.if %724 {
      %725 = arith.truncf %717 : vector<8x128xf32> to vector<8x128xbf16>
      %c0_143 = arith.constant 0 : index
      %c0_144 = arith.constant 0 : index
      %726 = vector.load %arg10[%c0_143, %c0_144] : memref<128x128xbf16, #tpu.memory_space<vmem>>, vector<128x128xbf16>
      %cst_145 = arith.constant dense<0.000000e+00> : vector<8x128xf32>
      %727 = tpu.matmul %725, %726, %cst_145 {dimension_numbers = #tpu.dot_dimension_numbers<[1], [0], [0], [1], [0, 0, 1, 1], [], []>} : vector<8x128xbf16>, vector<128x128xbf16>, vector<8x128xf32> -> vector<8x128xf32>
      %c0_146 = arith.constant 0 : index
      %c0_147 = arith.constant 0 : index
      %728 = vector.load %arg11[%c0_146, %c0_147] : memref<1x128xf32, #tpu.memory_space<vmem>>, vector<1x128xf32>
      %729 = vector.broadcast %728 : vector<1x128xf32> to vector<8x128xf32>
      %730 = arith.addf %727, %729 : vector<8x128xf32>
      %731 = arith.negf %730 : vector<8x128xf32>
      %732 = math.exp %731 : vector<8x128xf32>
      %cst_148 = arith.constant 1.000000e+00 : f32
      %733 = vector.broadcast %cst_148 : f32 to vector<8x128xf32>
      %734 = arith.addf %733, %732 : vector<8x128xf32>
      %735 = arith.divf %733, %734 : vector<8x128xf32>
      %c0_149 = arith.constant 0 : index
      %c0_150 = arith.constant 0 : index
      %736 = vector.load %arg12[%c0_149, %c0_150] : memref<8x128xf32, #tpu.memory_space<vmem>>, vector<8x128xf32>
      tpu.vector_store %arg12[%c0_149, %c0_150], %735 {strides = array<i32>} : memref<8x128xf32, #tpu.memory_space<vmem>>, vector<8x128xf32>,
    } else {
    }
    return
  }
  func.func @transform_0(%arg0: i32, %arg1: i32) -> (i32, i32, i32) {
    %c0_i32 = arith.constant 0 : i32
    %c0_i32_0 = arith.constant 0 : i32
    return %arg1, %arg0, %c0_i32 : i32, i32, i32
  }
  func.func @transform_1(%arg0: i32, %arg1: i32) -> (i32, i32) {
    %c0_i32 = arith.constant 0 : i32
    %c0_i32_0 = arith.constant 0 : i32
    return %arg0, %c0_i32 : i32, i32
  }
  func.func @transform_2(%arg0: i32, %arg1: i32) -> (i32, i32) {
    %c0_i32 = arith.constant 0 : i32
    %c0_i32_0 = arith.constant 0 : i32
    %c0_i32_1 = arith.constant 0 : i32
    return %c0_i32, %c0_i32_0 : i32, i32
  }
  func.func @transform_3(%arg0: i32, %arg1: i32) -> (i32, i32) {
    %c0_i32 = arith.constant 0 : i32
    %c0_i32_0 = arith.constant 0 : i32
    %c0_i32_1 = arith.constant 0 : i32
    return %c0_i32, %c0_i32_0 : i32, i32
  }
  func.func @transform_4(%arg0: i32, %arg1: i32) -> (i32, i32) {
    %c0_i32 = arith.constant 0 : i32
    %c0_i32_0 = arith.constant 0 : i32
    %c0_i32_1 = arith.constant 0 : i32
    return %c0_i32, %c0_i32_0 : i32, i32
  }
  func.func @transform_5(%arg0: i32, %arg1: i32) -> (i32, i32) {
    %c0_i32 = arith.constant 0 : i32
    %c0_i32_0 = arith.constant 0 : i32
    %c0_i32_1 = arith.constant 0 : i32
    return %c0_i32, %c0_i32_0 : i32, i32
  }
  func.func @transform_6(%arg0: i32, %arg1: i32) -> (i32, i32) {
    %c0_i32 = arith.constant 0 : i32
    %c0_i32_0 = arith.constant 0 : i32
    %c0_i32_1 = arith.constant 0 : i32
    return %c0_i32, %c0_i32_0 : i32, i32
  }
  func.func @transform_7(%arg0: i32, %arg1: i32) -> (i32, i32) {
    %c0_i32 = arith.constant 0 : i32
    %c0_i32_0 = arith.constant 0 : i32
    %c0_i32_1 = arith.constant 0 : i32
    return %c0_i32, %c0_i32_0 : i32, i32
  }
  func.func @transform_8(%arg0: i32, %arg1: i32) -> (i32, i32) {
    %c0_i32 = arith.constant 0 : i32
    %c0_i32_0 = arith.constant 0 : i32
    %c0_i32_1 = arith.constant 0 : i32
    return %c0_i32, %c0_i32_0 : i32, i32
  }
  func.func @transform_9(%arg0: i32, %arg1: i32) -> (i32, i32) {
    %c0_i32 = arith.constant 0 : i32
    %c0_i32_0 = arith.constant 0 : i32
    %c0_i32_1 = arith.constant 0 : i32
    return %c0_i32, %c0_i32_0 : i32, i32
  }
  func.func @transform_10(%arg0: i32, %arg1: i32) -> (i32, i32) {
    %c0_i32 = arith.constant 0 : i32
    %c0_i32_0 = arith.constant 0 : i32
    return %arg0, %c0_i32 : i32, i32
  }
}

</mosaic_0001>

<llo_original>
// kernel: tpu_custom_call.1
$region0: #{tpu_custom_call.1}
  #allocation0 [shape = 'u32[]', space=smem, size = 0x4, offset = 0x4, fixed_abs, tag = 'smem constant byte address 0x4 - core index']
  #allocation1 [shape = 'u32[72,128]{1,0:T(1,128)}', space=vmem, size = 0x9000, scoped, tag = 'internal scratch']
  #allocation2 [shape = 'f32[8,128]{1,0:T(8,128)}', space=vmem, size = 0x1000, scoped, tag = 'scratch operand']
  #allocation3 [shape = 'f32[8,128]{1,0:T(8,128)}', space=vmem, size = 0x1000, scoped, tag = 'scratch operand']
  #allocation4 [shape = 'f32[8,128]{1,0:T(8,128)}', space=vmem, size = 0x1000, scoped, tag = 'scratch operand']
  #allocation5 [shape = 'f32[8,128]{1,0:T(8,128)}', space=vmem, size = 0x1000, scoped, tag = 'scratch operand']
  %s0 = inlined_call_operand.hbm [shape: bf16[16,16,32], index: 0, kind: input, shape index: {}]
  %s1 = inlined_call_operand.hbm [shape: bf16[16,32], index: 1, kind: input, shape index: {}]
  %s2 = inlined_call_operand.hbm [shape: bf16[32,512], index: 2, kind: input, shape index: {}]
  %s3 = inlined_call_operand.hbm [shape: bf16[128,512], index: 3, kind: input, shape index: {}]
  %s4 = inlined_call_operand.hbm [shape: f32[1,512], index: 4, kind: input, shape index: {}]
  %s5 = inlined_call_operand.hbm [shape: bf16[128,512], index: 5, kind: input, shape index: {}]
  %s6 = inlined_call_operand.hbm [shape: bf16[128,512], index: 6, kind: input, shape index: {}]
  %s7 = inlined_call_operand.vmem [shape: f32[1,512], index: 7, kind: input, shape index: {}]
  %s8 = inlined_call_operand.hbm [shape: bf16[128,128], index: 8, kind: input, shape index: {}]
  %s9 = inlined_call_operand.vmem [shape: f32[1,128], index: 9, kind: input, shape index: {}]
  %s10 = inlined_call_operand.hbm [shape: f32[16,128], index: 10, kind: output, shape index: {}]
  %s11 = sld [smem:[#allocation0]]
  $region113: #{tpu_custom_call.1} parent=0
    _
  %s13 = ssub.s32 1, %s11
  %s14 = scalar_select 0, %s13, %s11
  $region1: #{tpu_custom_call.1} parent=0
    #allocation6 [shape = 'u8[32768]{0}', space=vmem, size = 0x8000, scoped, tag = 'input window, operand 0']
    #allocation7 [shape = 's32[2]{0}', space=sflag, size = 0x8, scoped, tag = 'scoped memory for tpu_custom_call.1']
    #allocation8 [shape = 's32[2]{0}', space=sflag, size = 0x8, scoped, tag = 'scoped memory for tpu_custom_call.1']
    #allocation9 [shape = 'u8[4096]{0}', space=vmem, size = 0x1000, scoped, tag = 'input window, operand 1']
    #allocation10 [shape = 's32[2]{0}', space=sflag, size = 0x8, scoped, tag = 'scoped memory for tpu_custom_call.1']
    #allocation11 [shape = 'u8[32768]{0}', space=vmem, size = 0x8000, scoped, tag = 'input window, operand 2, single buffered']
    #allocation12 [shape = 'u8[131072]{0}', space=vmem, size = 0x20000, scoped, tag = 'input window, operand 3, single buffered']
    #allocation13 [shape = 's32[1]{0}', space=sflag, size = 0x4, scoped, tag = 'scoped memory for tpu_custom_call.1']
    #allocation14 [shape = 'u8[2048]{0}', space=vmem, size = 0x800, scoped, tag = 'input window, operand 4, single buffered']
    #allocation15 [shape = 'u8[131072]{0}', space=vmem, size = 0x20000, scoped, tag = 'input window, operand 5, single buffered']
    #allocation16 [shape = 's32[1]{0}', space=sflag, size = 0x4, scoped, tag = 'scoped memory for tpu_custom_call.1']
    #allocation17 [shape = 'u8[131072]{0}', space=vmem, size = 0x20000, scoped, tag = 'input window, operand 6, single buffered']
    #allocation18 [shape = 'u8[32768]{0}', space=vmem, size = 0x8000, scoped, tag = 'input window, operand 8, single buffered']
    #allocation19 [shape = 's32[1]{0}', space=sflag, size = 0x4, scoped, tag = 'scoped memory for tpu_custom_call.1']
    #allocation20 [shape = 'u8[8192]{0}', space=vmem, size = 0x2000, scoped, tag = 'output window, operand 0']
    %15 = vsyncpa [#allocation7], 0
    %s16 = scalar_lea.sflag [#allocation7], 1
    %17 = vsyncpa %s16, 0
    %18 = vsyncpa [#allocation10], 0
    %s19 = scalar_lea.sflag [#allocation10], 1
    %20 = vsyncpa %s19, 0
    %21 = vsyncpa [#allocation13], 0
    %22 = vsyncpa [#allocation16], 0
    %23 = vsyncpa [#allocation19], 0
    %24 = vsyncpa [#allocation8], 0
    %s25 = scalar_lea.sflag [#allocation8], 1
    %26 = vsyncpa %s25, 0
    loop: start=0, step=1, limit=6
    $region2: #{tpu_custom_call.1} parent=1 // loop_pre_header
      _
    $region3: #{tpu_custom_call.1} parent=1 // loop_header
      %s28 = sphi 0, %s32
      %p29 = scmp.ge.s32.totalorder %s28, 6
      %s35 = sphi 0, %s47
      %s36 = sphi 0, %s43
      %s37 = sphi 0, %s35
      %s38 = sphi 0, %s36
      %s39 = sphi 0, %s37
      %s40 = sphi 0, %s38
      %s52 = sphi 0, %s54
      %s55 = sphi 0, %s52
      %s56 = sphi 0, %s55
      %s72 = sphi 0, %s56
      %s78 = sphi 0, %s80
      %s81 = sphi 0, %s78
      %s82 = sphi 0, %s81
      %s98 = sphi 0, %s82
      %s102 = sphi 0, %s102
      %s104 = sphi 0, %s102
      %s105 = sphi 0, %s104
      %s119 = sphi 0, %s105
      %s123 = sphi 0, %s123
      %s125 = sphi 0, %s123
      %s126 = sphi 0, %s125
      %s140 = sphi 0, %s126
      %s144 = sphi 0, %s144
      %s146 = sphi 0, %s144
      %s147 = sphi 0, %s146
      %s161 = sphi 0, %s147
      %s165 = sphi 0, %s165
      %s167 = sphi 0, %s165
      %s168 = sphi 0, %s167
      %s182 = sphi 0, %s168
      %s186 = sphi 0, %s186
      %s188 = sphi 0, %s186
      %s189 = sphi 0, %s188
      %s203 = sphi 0, %s189
      %s207 = sphi 0, %s207
      %s209 = sphi 0, %s207
      %s210 = sphi 0, %s209
      %s224 = sphi 0, %s210
      %s228 = sphi 0, %s228
      %s230 = sphi 0, %s228
      %s231 = sphi 0, %s230
      %s245 = sphi 0, %s231
      %s249 = sphi 0, %s249
      %s251 = sphi 0, %s249
      %s252 = sphi 0, %s251
      %s266 = sphi 0, %s252
      %s272 = sphi 0, %s274
      %s275 = sphi 0, %s272
      %s276 = sphi 0, %s275
      %s292 = sphi 0, %s276
    $region4: #{tpu_custom_call.1} parent=1 // loop_header_branch
      %31 = sbr.rel (%p29) target = $region8
    $region5: #{tpu_custom_call.1} parent=1 // loop_body
      %s33 = ssub.s32 %s28, 1
      %s34 = ssub.s32 %s28, 2
      %s41 = sadd.s32 1, %s36
      %p42 = scmp.ge.s32.totalorder %s41, 2
      %s43 = scalar_select %p42, 0, %s41
      %s44 = sadd.s32 1, %s35
      %s45 = scalar_select %p42, %s44, %s35
      %p46 = scmp.ge.s32.totalorder %s45, 2
      %s47 = scalar_select %p46, 0, %s45
      %s48 = ssub.s32 %s36, %s43
      %s49 = ssub.s32 %s35, %s47
      %s50 = sor.u32 %s48, %s49
      %p51 = scmp.eq.s32.totalorder %s50, 0
      %s53 = sadd.s32 %s52, 1
      %s54 = scalar_select %p51, %s52, %s53
      %p57 = pneg %p51
      %p58 = scmp.eq.s32.totalorder %s28, 3
      %p59 = por %p57, %p58
      %p60 = scmp.ne.s32.totalorder %s52, %s55
      %p61 = scmp.eq.s32.totalorder %s28, 0
      %p62 = por %p60, %p61
      %p63 = scmp.ne.s32.totalorder %s52, %s55
      %p64 = scmp.eq.s32.totalorder %s33, 3
      %p65 = por %p63, %p64
      %p66 = scmp.ne.s32.totalorder %s55, %s56
      %p67 = scmp.eq.s32.totalorder %s33, 0
      %p68 = por %p66, %p67
      %p69 = scmp.ne.s32.totalorder %s55, %s56
      %p70 = scmp.eq.s32.totalorder %s34, 3
      %p71 = por %p69, %p70
      %p73 = scmp.ne.s32.totalorder %s56, %s72
      %p74 = scmp.eq.s32.totalorder %s34, 0
      %p75 = por %p73, %p74
      %s76 = ssub.s32 %s35, %s47
      %p77 = scmp.eq.s32.totalorder %s76, 0
      %s79 = sadd.s32 %s78, 1
      %s80 = scalar_select %p77, %s78, %s79
      %p83 = pneg %p77
      %p84 = scmp.eq.s32.totalorder %s28, 3
      %p85 = por %p83, %p84
      %p86 = scmp.ne.s32.totalorder %s78, %s81
      %p87 = scmp.eq.s32.totalorder %s28, 0
      %p88 = por %p86, %p87
      %p89 = scmp.ne.s32.totalorder %s78, %s81
      %p90 = scmp.eq.s32.totalorder %s33, 3
      %p91 = por %p89, %p90
      %p92 = scmp.ne.s32.totalorder %s81, %s82
      %p93 = scmp.eq.s32.totalorder %s33, 0
      %p94 = por %p92, %p93
      %p95 = scmp.ne.s32.totalorder %s81, %s82
      %p96 = scmp.eq.s32.totalorder %s34, 3
      %p97 = por %p95, %p96
      %p99 = scmp.ne.s32.totalorder %s82, %s98
      %p100 = scmp.eq.s32.totalorder %s34, 0
      %p101 = por %p99, %p100
      %s103 = sadd.s32 %s102, 1
      %p106 = scmp.eq.s32.totalorder %s28, 3
      %p107 = scmp.ne.s32.totalorder %s102, %s104
      %p108 = scmp.eq.s32.totalorder %s28, 0
      %p109 = por %p107, %p108
      %p110 = scmp.ne.s32.totalorder %s102, %s104
      %p111 = scmp.eq.s32.totalorder %s33, 3
      %p112 = por %p110, %p111
      %p113 = scmp.ne.s32.totalorder %s104, %s105
      %p114 = scmp.eq.s32.totalorder %s33, 0
      %p115 = por %p113, %p114
      %p116 = scmp.ne.s32.totalorder %s104, %s105
      %p117 = scmp.eq.s32.totalorder %s34, 3
      %p118 = por %p116, %p117
      %p120 = scmp.ne.s32.totalorder %s105, %s119
      %p121 = scmp.eq.s32.totalorder %s34, 0
      %p122 = por %p120, %p121
      %s124 = sadd.s32 %s123, 1
      %p127 = scmp.eq.s32.totalorder %s28, 3
      %p128 = scmp.ne.s32.totalorder %s123, %s125
      %p129 = scmp.eq.s32.totalorder %s28, 0
      %p130 = por %p128, %p129
      %p131 = scmp.ne.s32.totalorder %s123, %s125
      %p132 = scmp.eq.s32.totalorder %s33, 3
      %p133 = por %p131, %p132
      %p134 = scmp.ne.s32.totalorder %s125, %s126
      %p135 = scmp.eq.s32.totalorder %s33, 0
      %p136 = por %p134, %p135
      %p137 = scmp.ne.s32.totalorder %s125, %s126
      %p138 = scmp.eq.s32.totalorder %s34, 3
      %p139 = por %p137, %p138
      %p141 = scmp.ne.s32.totalorder %s126, %s140
      %p142 = scmp.eq.s32.totalorder %s34, 0
      %p143 = por %p141, %p142
      %s145 = sadd.s32 %s144, 1
      %p148 = scmp.eq.s32.totalorder %s28, 3
      %p149 = scmp.ne.s32.totalorder %s144, %s146
      %p150 = scmp.eq.s32.totalorder %s28, 0
      %p151 = por %p149, %p150
      %p152 = scmp.ne.s32.totalorder %s144, %s146
      %p153 = scmp.eq.s32.totalorder %s33, 3
      %p154 = por %p152, %p153
      %p155 = scmp.ne.s32.totalorder %s146, %s147
      %p156 = scmp.eq.s32.totalorder %s33, 0
      %p157 = por %p155, %p156
      %p158 = scmp.ne.s32.totalorder %s146, %s147
      %p159 = scmp.eq.s32.totalorder %s34, 3
      %p160 = por %p158, %p159
      %p162 = scmp.ne.s32.totalorder %s147, %s161
      %p163 = scmp.eq.s32.totalorder %s34, 0
      %p164 = por %p162, %p163
      %s166 = sadd.s32 %s165, 1
      %p169 = scmp.eq.s32.totalorder %s28, 3
      %p170 = scmp.ne.s32.totalorder %s165, %s167
      %p171 = scmp.eq.s32.totalorder %s28, 0
      %p172 = por %p170, %p171
      %p173 = scmp.ne.s32.totalorder %s165, %s167
      %p174 = scmp.eq.s32.totalorder %s33, 3
      %p175 = por %p173, %p174
      %p176 = scmp.ne.s32.totalorder %s167, %s168
      %p177 = scmp.eq.s32.totalorder %s33, 0
      %p178 = por %p176, %p177
      %p179 = scmp.ne.s32.totalorder %s167, %s168
      %p180 = scmp.eq.s32.totalorder %s34, 3
      %p181 = por %p179, %p180
      %p183 = scmp.ne.s32.totalorder %s168, %s182
      %p184 = scmp.eq.s32.totalorder %s34, 0
      %p185 = por %p183, %p184
      %s187 = sadd.s32 %s186, 1
      %p190 = scmp.eq.s32.totalorder %s28, 3
      %p191 = scmp.ne.s32.totalorder %s186, %s188
      %p192 = scmp.eq.s32.totalorder %s28, 0
      %p193 = por %p191, %p192
      %p194 = scmp.ne.s32.totalorder %s186, %s188
      %p195 = scmp.eq.s32.totalorder %s33, 3
      %p196 = por %p194, %p195
      %p197 = scmp.ne.s32.totalorder %s188, %s189
      %p198 = scmp.eq.s32.totalorder %s33, 0
      %p199 = por %p197, %p198
      %p200 = scmp.ne.s32.totalorder %s188, %s189
      %p201 = scmp.eq.s32.totalorder %s34, 3
      %p202 = por %p200, %p201
      %p204 = scmp.ne.s32.totalorder %s189, %s203
      %p205 = scmp.eq.s32.totalorder %s34, 0
      %p206 = por %p204, %p205
      %s208 = sadd.s32 %s207, 1
      %p211 = scmp.eq.s32.totalorder %s28, 3
      %p212 = scmp.ne.s32.totalorder %s207, %s209
      %p213 = scmp.eq.s32.totalorder %s28, 0
      %p214 = por %p212, %p213
      %p215 = scmp.ne.s32.totalorder %s207, %s209
      %p216 = scmp.eq.s32.totalorder %s33, 3
      %p217 = por %p215, %p216
      %p218 = scmp.ne.s32.totalorder %s209, %s210
      %p219 = scmp.eq.s32.totalorder %s33, 0
      %p220 = por %p218, %p219
      %p221 = scmp.ne.s32.totalorder %s209, %s210
      %p222 = scmp.eq.s32.totalorder %s34, 3
      %p223 = por %p221, %p222
      %p225 = scmp.ne.s32.totalorder %s210, %s224
      %p226 = scmp.eq.s32.totalorder %s34, 0
      %p227 = por %p225, %p226
      %s229 = sadd.s32 %s228, 1
      %p232 = scmp.eq.s32.totalorder %s28, 3
      %p233 = scmp.ne.s32.totalorder %s228, %s230
      %p234 = scmp.eq.s32.totalorder %s28, 0
      %p235 = por %p233, %p234
      %p236 = scmp.ne.s32.totalorder %s228, %s230
      %p237 = scmp.eq.s32.totalorder %s33, 3
      %p238 = por %p236, %p237
      %p239 = scmp.ne.s32.totalorder %s230, %s231
      %p240 = scmp.eq.s32.totalorder %s33, 0
      %p241 = por %p239, %p240
      %p242 = scmp.ne.s32.totalorder %s230, %s231
      %p243 = scmp.eq.s32.totalorder %s34, 3
      %p244 = por %p242, %p243
      %p246 = scmp.ne.s32.totalorder %s231, %s245
      %p247 = scmp.eq.s32.totalorder %s34, 0
      %p248 = por %p246, %p247
      %s250 = sadd.s32 %s249, 1
      %p253 = scmp.eq.s32.totalorder %s28, 3
      %p254 = scmp.ne.s32.totalorder %s249, %s251
      %p255 = scmp.eq.s32.totalorder %s28, 0
      %p256 = por %p254, %p255
      %p257 = scmp.ne.s32.totalorder %s249, %s251
      %p258 = scmp.eq.s32.totalorder %s33, 3
      %p259 = por %p257, %p258
      %p260 = scmp.ne.s32.totalorder %s251, %s252
      %p261 = scmp.eq.s32.totalorder %s33, 0
      %p262 = por %p260, %p261
      %p263 = scmp.ne.s32.totalorder %s251, %s252
      %p264 = scmp.eq.s32.totalorder %s34, 3
      %p265 = por %p263, %p264
      %p267 = scmp.ne.s32.totalorder %s252, %s266
      %p268 = scmp.eq.s32.totalorder %s34, 0
      %p269 = por %p267, %p268
      %s270 = ssub.s32 %s35, %s47
      %p271 = scmp.eq.s32.totalorder %s270, 0
      %s273 = sadd.s32 %s272, 1
      %s274 = scalar_select %p271, %s272, %s273
      %p277 = pneg %p271
      %p278 = scmp.eq.s32.totalorder %s28, 3
      %p279 = por %p277, %p278
      %p280 = scmp.ne.s32.totalorder %s272, %s275
      %p281 = scmp.eq.s32.totalorder %s28, 0
      %p282 = por %p280, %p281
      %p283 = scmp.ne.s32.totalorder %s272, %s275
      %p284 = scmp.eq.s32.totalorder %s33, 3
      %p285 = por %p283, %p284
      %p286 = scmp.ne.s32.totalorder %s275, %s276
      %p287 = scmp.eq.s32.totalorder %s33, 0
      %p288 = por %p286, %p287
      %p289 = scmp.ne.s32.totalorder %s275, %s276
      %p290 = scmp.eq.s32.totalorder %s34, 3
      %p291 = por %p289, %p290
      %p293 = scmp.ne.s32.totalorder %s276, %s292
      %p294 = scmp.eq.s32.totalorder %s34, 0
      %p295 = por %p293, %p294
      %p296 = scmp.le.s32.totalorder 1, %s28
      %p297 = scmp.lt.s32.totalorder %s28, 5
      %p298 = pnand %p296, %p297
      %p299 = pneg %p298
      // Predicated region
      $region9: #{tpu_custom_call.1} parent=5 // pred_check
        _
      $region10: #{tpu_custom_call.1} parent=5 // pred_check_branch
        %301 = sbr.rel (%p298) target = $region12
      $region11: #{tpu_custom_call.1} parent=5 // pred_region
        %s302 = ssub.s32 %s28, 1
        // Predicated region
        $region13: #{tpu_custom_call.1} parent=11 // pred_check
          %p303 = pneg %p115
        $region14: #{tpu_custom_call.1} parent=11 // pred_check_branch
          %305 = sbr.rel (%p303) target = $region16
        $region15: #{tpu_custom_call.1} parent=11 // pred_region
          %307 = vsyncadd [#allocation10], 0
          %s308 = sshll.u32 %s2, 4
          %s309 = int_to_ptr.hbm [resolvable:$true] %s308
          %s310 = sshll.u32 [#allocation11], 4
          %s311 = int_to_ptr.vmem [resolvable:$true] %s310
          %316 = dma.hbm_to_vmem [thread:$0]  %s309, 1024, %s311, [#allocation10], 256, 256, 16
        $region16: #{tpu_custom_call.1} parent=11 // pred_fallthru
          _
        // Predicated region
        $region17: #{tpu_custom_call.1} parent=11 // pred_check
          %p317 = pneg %p136
        $region18: #{tpu_custom_call.1} parent=11 // pred_check_branch
          %319 = sbr.rel (%p317) target = $region20
        $region19: #{tpu_custom_call.1} parent=11 // pred_region
          %321 = vsyncadd [#allocation13], 0
          %s322 = sshll.u32 %s3, 4
          %s323 = int_to_ptr.hbm [resolvable:$true] %s322
          %s324 = sshll.u32 [#allocation12], 4
          %s325 = int_to_ptr.vmem [resolvable:$true] %s324
          %330 = dma.hbm_to_vmem [thread:$0]  %s323, 4096, %s325, [#allocation13], 256, 256, 16
        $region20: #{tpu_custom_call.1} parent=11 // pred_fallthru
          _
        // Predicated region
        $region21: #{tpu_custom_call.1} parent=11 // pred_check
          %p331 = pneg %p157
        $region22: #{tpu_custom_call.1} parent=11 // pred_check_branch
          %333 = sbr.rel (%p331) target = $region24
        $region23: #{tpu_custom_call.1} parent=11 // pred_region
          %335 = vsyncadd [#allocation13], 0
          %s337 = sshll.u32 %s4, 4
          %s338 = int_to_ptr.hbm [resolvable:$true] %s337
          %s339 = sshll.u32 [#allocation14], 4
          %s340 = int_to_ptr.vmem [resolvable:$true] %s339
          %342 = dma.hbm_to_vmem [thread:$0]  %s338, 64, %s340, [#allocation13]
        $region24: #{tpu_custom_call.1} parent=11 // pred_fallthru
          _
        // Predicated region
        $region25: #{tpu_custom_call.1} parent=11 // pred_check
          %p343 = pneg %p178
        $region26: #{tpu_custom_call.1} parent=11 // pred_check_branch
          %345 = sbr.rel (%p343) target = $region28
        $region27: #{tpu_custom_call.1} parent=11 // pred_region
          %347 = vsyncadd [#allocation16], 0
          %s348 = sshll.u32 %s5, 4
          %s349 = int_to_ptr.hbm [resolvable:$true] %s348
          %s350 = sshll.u32 [#allocation15], 4
          %s351 = int_to_ptr.vmem [resolvable:$true] %s350
          %356 = dma.hbm_to_vmem [thread:$0]  %s349, 4096, %s351, [#allocation16], 256, 256, 16
        $region28: #{tpu_custom_call.1} parent=11 // pred_fallthru
          _
        // Predicated region
        $region29: #{tpu_custom_call.1} parent=11 // pred_check
          %p357 = pneg %p199
        $region30: #{tpu_custom_call.1} parent=11 // pred_check_branch
          %359 = sbr.rel (%p357) target = $region32
        $region31: #{tpu_custom_call.1} parent=11 // pred_region
          %361 = vsyncadd [#allocation16], 0
          %s362 = sshll.u32 %s6, 4
          %s363 = int_to_ptr.hbm [resolvable:$true] %s362
          %s364 = sshll.u32 [#allocation17], 4
          %s365 = int_to_ptr.vmem [resolvable:$true] %s364
          %370 = dma.hbm_to_vmem [thread:$0]  %s363, 4096, %s365, [#allocation16], 256, 256, 16
        $region32: #{tpu_custom_call.1} parent=11 // pred_fallthru
          _
        // Predicated region
        $region33: #{tpu_custom_call.1} parent=11 // pred_check
          %p371 = pneg %p220
        $region34: #{tpu_custom_call.1} parent=11 // pred_check_branch
          %373 = sbr.rel (%p371) target = $region36
        $region35: #{tpu_custom_call.1} parent=11 // pred_region
          _
        $region36: #{tpu_custom_call.1} parent=11 // pred_fallthru
          _
        // Predicated region
        $region37: #{tpu_custom_call.1} parent=11 // pred_check
          %p374 = pneg %p241
        $region38: #{tpu_custom_call.1} parent=11 // pred_check_branch
          %376 = sbr.rel (%p374) target = $region40
        $region39: #{tpu_custom_call.1} parent=11 // pred_region
          %378 = vsyncadd [#allocation19], 0
          %s379 = sshll.u32 %s8, 4
          %s380 = int_to_ptr.hbm [resolvable:$true] %s379
          %s381 = sshll.u32 [#allocation18], 4
          %s382 = int_to_ptr.vmem [resolvable:$true] %s381
          %387 = dma.hbm_to_vmem [thread:$0]  %s380, 1024, %s382, [#allocation19], 64, 64, 4
        $region40: #{tpu_custom_call.1} parent=11 // pred_fallthru
          _
        // Predicated region
        $region41: #{tpu_custom_call.1} parent=11 // pred_check
          %p388 = pneg %p262
        $region42: #{tpu_custom_call.1} parent=11 // pred_check_branch
          %390 = sbr.rel (%p388) target = $region44
        $region43: #{tpu_custom_call.1} parent=11 // pred_region
          _
        $region44: #{tpu_custom_call.1} parent=11 // pred_fallthru
          _
      $region12: #{tpu_custom_call.1} parent=5 // pred_fallthru
        _
      %p391 = scmp.lt.s32.totalorder %s28, 4
      // Predicated region
      $region45: #{tpu_custom_call.1} parent=5 // pred_check
        %p392 = pneg %p391
      $region46: #{tpu_custom_call.1} parent=5 // pred_check_branch
        %394 = sbr.rel (%p392) target = $region48
      $region47: #{tpu_custom_call.1} parent=5 // pred_region
        // Predicated region
        $region49: #{tpu_custom_call.1} parent=47 // pred_check
          %p395 = pneg %p62
        $region50: #{tpu_custom_call.1} parent=47 // pred_check_branch
          %397 = sbr.rel (%p395) target = $region52
        $region51: #{tpu_custom_call.1} parent=47 // pred_region
          %s398 = sand.u32 %s52, 1
          %s399 = scalar_lea.sflag [#allocation7], %s398
          %s400 = sand.u32 %s52, 1
          %s401 = smul.addr %s400, 32
          %s402 = scalar_lea.vmem [#allocation6], %s401
          %s403 = smul.u32 8, %s36
          %405 = vsyncadd %s399, 0
          %s406 = smul.addr %s403, 2
          %s407 = sadd.s32 %s35, %s406
          %s408 = smul.addr %s407, 4
          %s409 = scalar_lea.hbm %s0, %s408
          %s410 = sshll.u32 %s409, 4
          %s411 = int_to_ptr.hbm [resolvable:$true] %s410
          %s412 = sshll.u32 %s402, 4
          %s413 = int_to_ptr.vmem [resolvable:$true] %s412
          %418 = dma.hbm_to_vmem [thread:$0]  %s411, 512, %s413, %s399, 128, 64, 4
        $region52: #{tpu_custom_call.1} parent=47 // pred_fallthru
          _
        // Predicated region
        $region53: #{tpu_custom_call.1} parent=47 // pred_check
          %p419 = pneg %p88
        $region54: #{tpu_custom_call.1} parent=47 // pred_check_branch
          %421 = sbr.rel (%p419) target = $region56
        $region55: #{tpu_custom_call.1} parent=47 // pred_region
          %s422 = sand.u32 %s28, 1
          %s423 = scalar_lea.sflag [#allocation10], %s422
          %s424 = sand.u32 %s78, 1
          %s425 = smul.addr %s424, 4
          %s426 = scalar_lea.vmem [#allocation9], %s425
          %428 = vsyncadd %s423, 0
          %s429 = smul.addr %s35, 4
          %s430 = scalar_lea.hbm %s1, %s429
          %s432 = sshll.u32 %s430, 4
          %s433 = int_to_ptr.hbm [resolvable:$true] %s432
          %s434 = sshll.u32 %s426, 4
          %s435 = int_to_ptr.vmem [resolvable:$true] %s434
          %437 = dma.hbm_to_vmem [thread:$0]  %s433, 64, %s435, %s423
        $region56: #{tpu_custom_call.1} parent=47 // pred_fallthru
          _
      $region48: #{tpu_custom_call.1} parent=5 // pred_fallthru
        _
      %p438 = scmp.le.s32.totalorder 1, %s28
      %p439 = scmp.lt.s32.totalorder %s28, 5
      %p440 = pnand %p438, %p439
      %p441 = pneg %p440
      // Predicated region
      $region57: #{tpu_custom_call.1} parent=5 // pred_check
        _
      $region58: #{tpu_custom_call.1} parent=5 // pred_check_branch
        %443 = sbr.rel (%p440) target = $region60
      $region59: #{tpu_custom_call.1} parent=5 // pred_region
        %s444 = ssub.s32 %s28, 1
        %s445 = sand.u32 %s55, 1
        %s446 = scalar_lea.sflag [#allocation7], %s445
        %s447 = sand.u32 %s55, 1
        %s448 = smul.addr %s447, 32
        %s449 = scalar_lea.vmem [#allocation6], %s448
        // Predicated region
        $region61: #{tpu_custom_call.1} parent=59 // pred_check
          %p450 = pneg %p68
        $region62: #{tpu_custom_call.1} parent=59 // pred_check_branch
          %452 = sbr.rel (%p450) target = $region64
        $region63: #{tpu_custom_call.1} parent=59 // pred_region
          %454 = dma.done %s446, 512
        $region64: #{tpu_custom_call.1} parent=59 // pred_fallthru
          _
        %s455 = sand.u32 %s33, 1
        %s456 = scalar_lea.sflag [#allocation10], %s455
        %s457 = sand.u32 %s81, 1
        %s458 = smul.addr %s457, 4
        %s459 = scalar_lea.vmem [#allocation9], %s458
        // Predicated region
        $region65: #{tpu_custom_call.1} parent=59 // pred_check
          %p460 = pneg %p94
        $region66: #{tpu_custom_call.1} parent=59 // pred_check_branch
          %462 = sbr.rel (%p460) target = $region68
        $region67: #{tpu_custom_call.1} parent=59 // pred_region
          %464 = dma.done %s456, 64
        $region68: #{tpu_custom_call.1} parent=59 // pred_fallthru
          _
        // Predicated region
        $region69: #{tpu_custom_call.1} parent=59 // pred_check
          %p465 = pneg %p115
        $region70: #{tpu_custom_call.1} parent=59 // pred_check_branch
          %467 = sbr.rel (%p465) target = $region72
        $region71: #{tpu_custom_call.1} parent=59 // pred_region
          %469 = dma.done [#allocation10], 1024
        $region72: #{tpu_custom_call.1} parent=59 // pred_fallthru
          _
        // Predicated region
        $region73: #{tpu_custom_call.1} parent=59 // pred_check
          %p470 = pneg %p136
        $region74: #{tpu_custom_call.1} parent=59 // pred_check_branch
          %472 = sbr.rel (%p470) target = $region76
        $region75: #{tpu_custom_call.1} parent=59 // pred_region
          %474 = dma.done [#allocation13], 4096
        $region76: #{tpu_custom_call.1} parent=59 // pred_fallthru
          _
        // Predicated region
        $region77: #{tpu_custom_call.1} parent=59 // pred_check
          %p475 = pneg %p157
        $region78: #{tpu_custom_call.1} parent=59 // pred_check_branch
          %477 = sbr.rel (%p475) target = $region80
        $region79: #{tpu_custom_call.1} parent=59 // pred_region
          %479 = dma.done [#allocation13], 64
        $region80: #{tpu_custom_call.1} parent=59 // pred_fallthru
          _
        // Predicated region
        $region81: #{tpu_custom_call.1} parent=59 // pred_check
          %p480 = pneg %p178
        $region82: #{tpu_custom_call.1} parent=59 // pred_check_branch
          %482 = sbr.rel (%p480) target = $region84
        $region83: #{tpu_custom_call.1} parent=59 // pred_region
          %484 = dma.done [#allocation16], 4096
        $region84: #{tpu_custom_call.1} parent=59 // pred_fallthru
          _
        // Predicated region
        $region85: #{tpu_custom_call.1} parent=59 // pred_check
          %p485 = pneg %p199
        $region86: #{tpu_custom_call.1} parent=59 // pred_check_branch
          %487 = sbr.rel (%p485) target = $region88
        $region87: #{tpu_custom_call.1} parent=59 // pred_region
          %489 = dma.done [#allocation16], 4096
        $region88: #{tpu_custom_call.1} parent=59 // pred_fallthru
          _
        // Predicated region
        $region89: #{tpu_custom_call.1} parent=59 // pred_check
          %p490 = pneg %p241
        $region90: #{tpu_custom_call.1} parent=59 // pred_check_branch
          %492 = sbr.rel (%p490) target = $region92
        $region91: #{tpu_custom_call.1} parent=59 // pred_region
          %494 = dma.done [#allocation19], 1024
        $region92: #{tpu_custom_call.1} parent=59 // pred_fallthru
          _
        %s495 = sand.u32 %s55, 1
        %s496 = scalar_lea.sflag [#allocation7], %s495
        %s497 = sand.u32 %s55, 1
        %s498 = smul.addr %s497, 32
        %s499 = scalar_lea.vmem [#allocation6], %s498
        %p500 = pneg %p68
        %p501 = pneg %p65
        %s502 = sand.u32 %s33, 1
        %s503 = scalar_lea.sflag [#allocation10], %s502
        %s504 = sand.u32 %s81, 1
        %s505 = smul.addr %s504, 4
        %s506 = scalar_lea.vmem [#allocation9], %s505
        %p507 = pneg %p94
        %p508 = pneg %p91
        %p509 = pneg %p115
        %p510 = pneg %p112
        %p511 = pneg %p136
        %p512 = pneg %p133
        %p513 = pneg %p157
        %p514 = pneg %p154
        %p515 = pneg %p178
        %p516 = pneg %p175
        %p517 = pneg %p199
        %p518 = pneg %p196
        %p519 = pneg %p220
        %p520 = pneg %p217
        %p521 = pneg %p241
        %p522 = pneg %p238
        %p523 = pneg %p262
        %p524 = pneg %p259
        %p525 = pneg %p288
        %p526 = pneg %p285
        %s527 = sand.u32 %s275, 1
        %s528 = scalar_lea.sflag [#allocation8], %s527
        %s529 = sand.u32 %s275, 1
        %s530 = smul.addr %s529, 8
        %s531 = scalar_lea.vmem [#allocation20], %s530
        %s532 = smul.u32 8, %s38
        %p534 = scmp.eq.s32.totalorder %s38, 0
        // Predicated region
        $region93: #{tpu_custom_call.1} parent=59 // pred_check
          %p535 = pneg %p534
        $region94: #{tpu_custom_call.1} parent=59 // pred_check_branch
          %537 = sbr.rel (%p535) target = $region96
        $region95: #{tpu_custom_call.1} parent=59 // pred_region
          %538 = vst [vmem:[#allocation2] sm:$0xff] 0.0
          %539 = vst [vmem:[#allocation4] sm:$0xff] 0.0
          %540 = vst [vmem:[#allocation3] sm:$0xff] 0.0
          %541 = vst [vmem:[#allocation5] sm:$0xff] 0.0
        $region96: #{tpu_custom_call.1} parent=59 // pred_fallthru
          _
        %v542 = vld [vmem:[%s459] sm:$0xf]
        %v543 = vld [vmem:[#allocation11] sm:$0xff]
        %v544 = vld [vmem:[#allocation11 + $0x8] sm:$0xff]
        %v545 = vld [vmem:[#allocation11 + $0x10] sm:$0xff]
        %v546 = vld [vmem:[#allocation11 + $0x18] sm:$0xff]
        %v547 = vld [vmem:[#allocation11 + $0x20] sm:$0xff]
        %v548 = vld [vmem:[#allocation11 + $0x28] sm:$0xff]
        %v549 = vld [vmem:[#allocation11 + $0x30] sm:$0xff]
        %v550 = vld [vmem:[#allocation11 + $0x38] sm:$0xff]
        %v551 = vld [vmem:[#allocation15] sm:$0xff]
        %v552 = vld [vmem:[#allocation15 + $0x8] sm:$0xff]
        %v553 = vld [vmem:[#allocation15 + $0x10] sm:$0xff]
        %v554 = vld [vmem:[#allocation15 + $0x18] sm:$0xff]
        %v555 = vld [vmem:[#allocation15 + $0x20] sm:$0xff]
        %v556 = vld [vmem:[#allocation15 + $0x28] sm:$0xff]
        %v557 = vld [vmem:[#allocation15 + $0x30] sm:$0xff]
        %v558 = vld [vmem:[#allocation15 + $0x38] sm:$0xff]
        %v559 = vld [vmem:[#allocation15 + $0x40] sm:$0xff]
        %v560 = vld [vmem:[#allocation15 + $0x48] sm:$0xff]
        %v561 = vld [vmem:[#allocation15 + $0x50] sm:$0xff]
        %v562 = vld [vmem:[#allocation15 + $0x58] sm:$0xff]
        %v563 = vld [vmem:[#allocation15 + $0x60] sm:$0xff]
        %v564 = vld [vmem:[#allocation15 + $0x68] sm:$0xff]
        %v565 = vld [vmem:[#allocation15 + $0x70] sm:$0xff]
        %v566 = vld [vmem:[#allocation15 + $0x78] sm:$0xff]
        %v567 = vld [vmem:[#allocation15 + $0x80] sm:$0xff]
        %v568 = vld [vmem:[#allocation15 + $0x88] sm:$0xff]
        %v569 = vld [vmem:[#allocation15 + $0x90] sm:$0xff]
        %v570 = vld [vmem:[#allocation15 + $0x98] sm:$0xff]
        %v571 = vld [vmem:[#allocation15 + $0xa0] sm:$0xff]
        %v572 = vld [vmem:[#allocation15 + $0xa8] sm:$0xff]
        %v573 = vld [vmem:[#allocation15 + $0xb0] sm:$0xff]
        %v574 = vld [vmem:[#allocation15 + $0xb8] sm:$0xff]
        %v575 = vld [vmem:[#allocation15 + $0xc0] sm:$0xff]
        %v576 = vld [vmem:[#allocation15 + $0xc8] sm:$0xff]
        %v577 = vld [vmem:[#allocation15 + $0xd0] sm:$0xff]
        %v578 = vld [vmem:[#allocation15 + $0xd8] sm:$0xff]
        %v579 = vld [vmem:[#allocation15 + $0xe0] sm:$0xff]
        %v580 = vld [vmem:[#allocation15 + $0xe8] sm:$0xff]
        %v581 = vld [vmem:[#allocation15 + $0xf0] sm:$0xff]
        %v582 = vld [vmem:[#allocation15 + $0xf8] sm:$0xff]
        %v583 = vld [vmem:[#allocation12] sm:$0xff]
        %v584 = vld [vmem:[#allocation12 + $0x8] sm:$0xff]
        %v585 = vld [vmem:[#allocation12 + $0x10] sm:$0xff]
        %v586 = vld [vmem:[#allocation12 + $0x18] sm:$0xff]
        %v587 = vld [vmem:[#allocation12 + $0x20] sm:$0xff]
        %v588 = vld [vmem:[#allocation12 + $0x28] sm:$0xff]
        %v589 = vld [vmem:[#allocation12 + $0x30] sm:$0xff]
        %v590 = vld [vmem:[#allocation12 + $0x38] sm:$0xff]
        %v591 = vld [vmem:[#allocation12 + $0x40] sm:$0xff]
        %v592 = vld [vmem:[#allocation12 + $0x48] sm:$0xff]
        %v593 = vld [vmem:[#allocation12 + $0x50] sm:$0xff]
        %v594 = vld [vmem:[#allocation12 + $0x58] sm:$0xff]
        %v595 = vld [vmem:[#allocation12 + $0x60] sm:$0xff]
        %v596 = vld [vmem:[#allocation12 + $0x68] sm:$0xff]
        %v597 = vld [vmem:[#allocation12 + $0x70] sm:$0xff]
        %v598 = vld [vmem:[#allocation12 + $0x78] sm:$0xff]
        %v599 = vld [vmem:[#allocation12 + $0x80] sm:$0xff]
        %v600 = vld [vmem:[#allocation12 + $0x88] sm:$0xff]
        %v601 = vld [vmem:[#allocation12 + $0x90] sm:$0xff]
        %v602 = vld [vmem:[#allocation12 + $0x98] sm:$0xff]
        %v603 = vld [vmem:[#allocation12 + $0xa0] sm:$0xff]
        %v604 = vld [vmem:[#allocation12 + $0xa8] sm:$0xff]
        %v605 = vld [vmem:[#allocation12 + $0xb0] sm:$0xff]
        %v606 = vld [vmem:[#allocation12 + $0xb8] sm:$0xff]
        %v607 = vld [vmem:[#allocation12 + $0xc0] sm:$0xff]
        %v608 = vld [vmem:[#allocation12 + $0xc8] sm:$0xff]
        %v609 = vld [vmem:[#allocation12 + $0xd0] sm:$0xff]
        %v610 = vld [vmem:[#allocation12 + $0xd8] sm:$0xff]
        %v611 = vld [vmem:[#allocation12 + $0xe0] sm:$0xff]
        %v612 = vld [vmem:[#allocation12 + $0xe8] sm:$0xff]
        %v613 = vld [vmem:[#allocation12 + $0xf0] sm:$0xff]
        %v614 = vld [vmem:[#allocation12 + $0xf8] sm:$0xff]
        %v615 = vld [vmem:[#allocation17] sm:$0xff]
        %v616 = vld [vmem:[#allocation17 + $0x8] sm:$0xff]
        %v617 = vld [vmem:[#allocation17 + $0x10] sm:$0xff]
        %v618 = vld [vmem:[#allocation17 + $0x18] sm:$0xff]
        %v619 = vld [vmem:[#allocation17 + $0x20] sm:$0xff]
        %v620 = vld [vmem:[#allocation17 + $0x28] sm:$0xff]
        %v621 = vld [vmem:[#allocation17 + $0x30] sm:$0xff]
        %v622 = vld [vmem:[#allocation17 + $0x38] sm:$0xff]
        %v623 = vld [vmem:[#allocation17 + $0x40] sm:$0xff]
        %v624 = vld [vmem:[#allocation17 + $0x48] sm:$0xff]
        %v625 = vld [vmem:[#allocation17 + $0x50] sm:$0xff]
        %v626 = vld [vmem:[#allocation17 + $0x58] sm:$0xff]
        %v627 = vld [vmem:[#allocation17 + $0x60] sm:$0xff]
        %v628 = vld [vmem:[#allocation17 + $0x68] sm:$0xff]
        %v629 = vld [vmem:[#allocation17 + $0x70] sm:$0xff]
        %v630 = vld [vmem:[#allocation17 + $0x78] sm:$0xff]
        %v631 = vld [vmem:[#allocation17 + $0x80] sm:$0xff]
        %v632 = vld [vmem:[#allocation17 + $0x88] sm:$0xff]
        %v633 = vld [vmem:[#allocation17 + $0x90] sm:$0xff]
        %v634 = vld [vmem:[#allocation17 + $0x98] sm:$0xff]
        %v635 = vld [vmem:[#allocation17 + $0xa0] sm:$0xff]
        %v636 = vld [vmem:[#allocation17 + $0xa8] sm:$0xff]
        %v637 = vld [vmem:[#allocation17 + $0xb0] sm:$0xff]
        %v638 = vld [vmem:[#allocation17 + $0xb8] sm:$0xff]
        %v639 = vld [vmem:[#allocation17 + $0xc0] sm:$0xff]
        %v640 = vld [vmem:[#allocation17 + $0xc8] sm:$0xff]
        %v641 = vld [vmem:[#allocation17 + $0xd0] sm:$0xff]
        %v642 = vld [vmem:[#allocation17 + $0xd8] sm:$0xff]
        %v643 = vld [vmem:[#allocation17 + $0xe0] sm:$0xff]
        %v644 = vld [vmem:[#allocation17 + $0xe8] sm:$0xff]
        %v645 = vld [vmem:[#allocation17 + $0xf0] sm:$0xff]
        %v646 = vld [vmem:[#allocation17 + $0xf8] sm:$0xff]
        %v647 = vld [vmem:[#allocation14] sm:$0xf]
        %v648 = vld [vmem:[%s7] sm:$0xf]
        %v649 = vld [vmem:[#allocation2] sm:$0xff]
        %v650 = vld [vmem:[#allocation3] sm:$0xff]
        %v651 = vld [vmem:[#allocation4] sm:$0xff]
        %v652 = vld [vmem:[#allocation5] sm:$0xff]
        %v653 = vld [vmem:[%s449] sm:$0xf]
        %v654 = vunpack.c.l.bf16 %v653
        %v655 = vunpack.c.l.bf16 %v542
        %vm656 = vcmp.ne.f32.partialorder %v654, %v655
        %v657 = vsel %vm656, 1, 0
        %v658 = vcvt.s32.f32 %v657
        %vm659 = vcmask 261120
        %v660 = vsel %vm659, %v658, 0.0
        %661 = vadd.xlane.f32.xlu0 %v660
        %v662 = vpop.xlane.xlu0 %661
        %v663 = vmin.f32 %v662, 1.0
        %v664 = vpack.c.bf16 %v649, %v649
        %v697 = vunpack.c.l.b16 %v583
        %v698 = vunpack.c.h.b16 %v583
        %v699 = vunpack.c.l.b16 %v584
        %v700 = vunpack.c.h.b16 %v584
        %v701 = vunpack.c.l.b16 %v585
        %v702 = vunpack.c.h.b16 %v585
        %v703 = vunpack.c.l.b16 %v586
        %v704 = vunpack.c.h.b16 %v586
        %v705 = vunpack.c.l.b16 %v587
        %v706 = vunpack.c.h.b16 %v587
        %v707 = vunpack.c.l.b16 %v588
        %v708 = vunpack.c.h.b16 %v588
        %v709 = vunpack.c.l.b16 %v589
        %v710 = vunpack.c.h.b16 %v589
        %v711 = vunpack.c.l.b16 %v590
        %v712 = vunpack.c.h.b16 %v590
        %v713 = vunpack.c.l.b16 %v591
        %v714 = vunpack.c.h.b16 %v591
        %v715 = vunpack.c.l.b16 %v592
        %v716 = vunpack.c.h.b16 %v592
        %v717 = vunpack.c.l.b16 %v593
        %v718 = vunpack.c.h.b16 %v593
        %v719 = vunpack.c.l.b16 %v594
        %v720 = vunpack.c.h.b16 %v594
        %v721 = vunpack.c.l.b16 %v595
        %v722 = vunpack.c.h.b16 %v595
        %v723 = vunpack.c.l.b16 %v596
        %v724 = vunpack.c.h.b16 %v596
        %v725 = vunpack.c.l.b16 %v597
        %v726 = vunpack.c.h.b16 %v597
        %v727 = vunpack.c.l.b16 %v598
        %v728 = vunpack.c.h.b16 %v598
        %v729 = vunpack.c.l.b16 %v599
        %v730 = vunpack.c.h.b16 %v599
        %v731 = vunpack.c.l.b16 %v600
        %v732 = vunpack.c.h.b16 %v600
        %v733 = vunpack.c.l.b16 %v601
        %v734 = vunpack.c.h.b16 %v601
        %v735 = vunpack.c.l.b16 %v602
        %v736 = vunpack.c.h.b16 %v602
        %v737 = vunpack.c.l.b16 %v603
        %v738 = vunpack.c.h.b16 %v603
        %v739 = vunpack.c.l.b16 %v604
        %v740 = vunpack.c.h.b16 %v604
        %v741 = vunpack.c.l.b16 %v605
        %v742 = vunpack.c.h.b16 %v605
        %v743 = vunpack.c.l.b16 %v606
        %v744 = vunpack.c.h.b16 %v606
        %v745 = vunpack.c.l.b16 %v607
        %v746 = vunpack.c.h.b16 %v607
        %v747 = vunpack.c.l.b16 %v608
        %v748 = vunpack.c.h.b16 %v608
        %v749 = vunpack.c.l.b16 %v609
        %v750 = vunpack.c.h.b16 %v609
        %v751 = vunpack.c.l.b16 %v610
        %v752 = vunpack.c.h.b16 %v610
        %v753 = vunpack.c.l.b16 %v611
        %v754 = vunpack.c.h.b16 %v611
        %v755 = vunpack.c.l.b16 %v612
        %v756 = vunpack.c.h.b16 %v612
        %v757 = vunpack.c.l.b16 %v613
        %v758 = vunpack.c.h.b16 %v613
        %v759 = vunpack.c.l.b16 %v614
        %v760 = vunpack.c.h.b16 %v614
        %v761 = vpack.c.b16 %v701, %v697
        %v762 = vpack.c.b16 %v702, %v698
        %v763 = vpack.c.b16 %v703, %v699
        %v764 = vpack.c.b16 %v704, %v700
        %v765 = vpack.c.b16 %v709, %v705
        %v766 = vpack.c.b16 %v710, %v706
        %v767 = vpack.c.b16 %v711, %v707
        %v768 = vpack.c.b16 %v712, %v708
        %v769 = vpack.c.b16 %v717, %v713
        %v770 = vpack.c.b16 %v718, %v714
        %v771 = vpack.c.b16 %v719, %v715
        %v772 = vpack.c.b16 %v720, %v716
        %v773 = vpack.c.b16 %v725, %v721
        %v774 = vpack.c.b16 %v726, %v722
        %v775 = vpack.c.b16 %v727, %v723
        %v776 = vpack.c.b16 %v728, %v724
        %v777 = vpack.c.b16 %v733, %v729
        %v778 = vpack.c.b16 %v734, %v730
        %v779 = vpack.c.b16 %v735, %v731
        %v780 = vpack.c.b16 %v736, %v732
        %v781 = vpack.c.b16 %v741, %v737
        %v782 = vpack.c.b16 %v742, %v738
        %v783 = vpack.c.b16 %v743, %v739
        %v784 = vpack.c.b16 %v744, %v740
        %v785 = vpack.c.b16 %v749, %v745
        %v786 = vpack.c.b16 %v750, %v746
        %v787 = vpack.c.b16 %v751, %v747
        %v788 = vpack.c.b16 %v752, %v748
        %v789 = vpack.c.b16 %v757, %v753
        %v790 = vpack.c.b16 %v758, %v754
        %v791 = vpack.c.b16 %v759, %v755
        %v792 = vpack.c.b16 %v760, %v756
        %825 = vmatpush.bf16.msra.mxu0 %v789
        %826 = vmatpush.bf16.msra.mxu0 %v785
        %827 = vmatpush.bf16.msra.mxu0 %v781
        %828 = vmatpush.bf16.msra.mxu0 %v777
        %829 = vmatpush.bf16.msra.mxu0 %v773
        %830 = vmatpush.bf16.msra.mxu0 %v769
        %831 = vmatpush.bf16.msra.mxu0 %v765
        %832 = vmatpush.bf16.msra.mxu0 %v761
        %833 = vmatmul.bf16.gmra.mxu0 %v664
        %v834 = vpop.f32.mrf.mxu0
        %v835 = vadd.f32 0.0, %v834
        %v836 = vpop.f32.mrf.mxu0
        %837 = vdwg.mxu0
        %838 = vmatpush.bf16.msra.mxu0 %v790
        %839 = vmatpush.bf16.msra.mxu0 %v786
        %840 = vmatpush.bf16.msra.mxu0 %v782
        %841 = vmatpush.bf16.msra.mxu0 %v778
        %842 = vmatpush.bf16.msra.mxu0 %v774
        %843 = vmatpush.bf16.msra.mxu0 %v770
        %844 = vmatpush.bf16.msra.mxu0 %v766
        %845 = vmatpush.bf16.msra.mxu0 %v762
        %846 = vmatmul.bf16.gmra.mxu0 %v664
        %v847 = vpop.f32.mrf.mxu0
        %v848 = vadd.f32 0.0, %v847
        %v849 = vpop.f32.mrf.mxu0
        %850 = vdwg.mxu0
        %851 = vmatpush.bf16.msra.mxu0 %v791
        %852 = vmatpush.bf16.msra.mxu0 %v787
        %853 = vmatpush.bf16.msra.mxu0 %v783
        %854 = vmatpush.bf16.msra.mxu0 %v779
        %855 = vmatpush.bf16.msra.mxu0 %v775
        %856 = vmatpush.bf16.msra.mxu0 %v771
        %857 = vmatpush.bf16.msra.mxu0 %v767
        %858 = vmatpush.bf16.msra.mxu0 %v763
        %859 = vmatmul.bf16.gmra.mxu0 %v664
        %v860 = vpop.f32.mrf.mxu0
        %v861 = vadd.f32 0.0, %v860
        %v862 = vpop.f32.mrf.mxu0
        %863 = vdwg.mxu0
        %864 = vmatpush.bf16.msra.mxu0 %v792
        %865 = vmatpush.bf16.msra.mxu0 %v788
        %866 = vmatpush.bf16.msra.mxu0 %v784
        %867 = vmatpush.bf16.msra.mxu0 %v780
        %868 = vmatpush.bf16.msra.mxu0 %v776
        %869 = vmatpush.bf16.msra.mxu0 %v772
        %870 = vmatpush.bf16.msra.mxu0 %v768
        %871 = vmatpush.bf16.msra.mxu0 %v764
        %872 = vmatmul.bf16.gmra.mxu0 %v664
        %v873 = vpop.f32.mrf.mxu0
        %v874 = vadd.f32 0.0, %v873
        %v875 = vpop.f32.mrf.mxu0
        %876 = vdwg.mxu0
        %v885 = vunpack.c.l.b16 %v543
        %v886 = vunpack.c.h.b16 %v543
        %v887 = vunpack.c.l.b16 %v544
        %v888 = vunpack.c.h.b16 %v544
        %v889 = vunpack.c.l.b16 %v545
        %v890 = vunpack.c.h.b16 %v545
        %v891 = vunpack.c.l.b16 %v546
        %v892 = vunpack.c.h.b16 %v546
        %v893 = vunpack.c.l.b16 %v547
        %v894 = vunpack.c.h.b16 %v547
        %v895 = vunpack.c.l.b16 %v548
        %v896 = vunpack.c.h.b16 %v548
        %v897 = vunpack.c.l.b16 %v549
        %v898 = vunpack.c.h.b16 %v549
        %v899 = vunpack.c.l.b16 %v550
        %v900 = vunpack.c.h.b16 %v550
        %v901 = vpack.c.b16 %v889, %v885
        %v902 = vpack.c.b16 %v890, %v886
        %v903 = vpack.c.b16 %v891, %v887
        %v904 = vpack.c.b16 %v892, %v888
        %v905 = vpack.c.b16 %v897, %v893
        %v906 = vpack.c.b16 %v898, %v894
        %v907 = vpack.c.b16 %v899, %v895
        %v908 = vpack.c.b16 %v900, %v896
        %v918 = vsel %vm659, %v653, 0
        %920 = vmatpush.bf16.msra.mxu0 0
        %921 = vmatpush.bf16.msra.mxu0 0
        %922 = vmatpush.bf16.msra.mxu0 0
        %923 = vmatpush.bf16.msra.mxu0 0
        %924 = vmatpush.bf16.msra.mxu0 0
        %925 = vmatpush.bf16.msra.mxu0 0
        %926 = vmatpush.bf16.msra.mxu0 %v905
        %927 = vmatpush.bf16.msra.mxu0 %v901
        %928 = vmatmul.bf16.gmra.mxu0 %v918
        %v929 = vpop.f32.mrf.mxu0
        %v930 = vadd.f32 %v835, %v929
        %v931 = vpop.f32.mrf.mxu0
        %932 = vdwg.mxu0
        %933 = vmatpush.bf16.msra.mxu0 0
        %934 = vmatpush.bf16.msra.mxu0 0
        %935 = vmatpush.bf16.msra.mxu0 0
        %936 = vmatpush.bf16.msra.mxu0 0
        %937 = vmatpush.bf16.msra.mxu0 0
        %938 = vmatpush.bf16.msra.mxu0 0
        %939 = vmatpush.bf16.msra.mxu0 %v906
        %940 = vmatpush.bf16.msra.mxu0 %v902
        %941 = vmatmul.bf16.gmra.mxu0 %v918
        %v942 = vpop.f32.mrf.mxu0
        %v943 = vadd.f32 %v848, %v942
        %v944 = vpop.f32.mrf.mxu0
        %945 = vdwg.mxu0
        %946 = vmatpush.bf16.msra.mxu0 0
        %947 = vmatpush.bf16.msra.mxu0 0
        %948 = vmatpush.bf16.msra.mxu0 0
        %949 = vmatpush.bf16.msra.mxu0 0
        %950 = vmatpush.bf16.msra.mxu0 0
        %951 = vmatpush.bf16.msra.mxu0 0
        %952 = vmatpush.bf16.msra.mxu0 %v907
        %953 = vmatpush.bf16.msra.mxu0 %v903
        %954 = vmatmul.bf16.gmra.mxu0 %v918
        %v955 = vpop.f32.mrf.mxu0
        %v956 = vadd.f32 %v861, %v955
        %v957 = vpop.f32.mrf.mxu0
        %958 = vdwg.mxu0
        %959 = vmatpush.bf16.msra.mxu0 0
        %960 = vmatpush.bf16.msra.mxu0 0
        %961 = vmatpush.bf16.msra.mxu0 0
        %962 = vmatpush.bf16.msra.mxu0 0
        %963 = vmatpush.bf16.msra.mxu0 0
        %964 = vmatpush.bf16.msra.mxu0 0
        %965 = vmatpush.bf16.msra.mxu0 %v908
        %966 = vmatpush.bf16.msra.mxu0 %v904
        %967 = vmatmul.bf16.gmra.mxu0 %v918
        %v968 = vpop.f32.mrf.mxu0
        %v969 = vadd.f32 %v874, %v968
        %v970 = vpop.f32.mrf.mxu0
        %971 = vdwg.mxu0
        %v973 = vperm.slane %v647, 0
        %v974 = vperm.slane %v647, 1
        %v975 = vperm.slane %v647, 2
        %v976 = vperm.slane %v647, 3
        %v981 = vadd.f32 %v930, %v973
        %v982 = vadd.f32 %v943, %v974
        %v983 = vadd.f32 %v956, %v975
        %v984 = vadd.f32 %v969, %v976
        %v985 = vxor.u32 %v981, 2147483648
        %v986 = vmul.f32 %v985, 1.442695
        %v987 = vpow.pop %v986
        %v988 = vadd.f32 %v987, 1.0
        %v989 = vrcp.pop %v988
        %v990 = vmul.f32 %v988, %v989
        %v991 = vsub.f32 1.0, %v990
        %v992 = vmul.f32 %v989, %v991
        %v993 = vadd.f32 %v989, %v992
        %vm994 = vweird.f32 %v988
        %vm995 = vweird.f32 %v989
        %vm996 = vmor %vm994, %vm995
        %v997 = vsel %vm996, %v989, %v993
        %v998 = vand.u32 2147483647, %v988
        %vm999 = vcmp.eq.f32.partialorder %v998, 8.507059e+37
        %v1000 = vand.u32 %v988, 2147483648
        %v1001 = vor.u32 1.1754944e-38, %v1000
        %v1002 = vsel %vm999, %v1001, %v997
        %v1003 = vmul.f32 1.0, %v1002
        %v1004 = vxor.u32 %v982, 2147483648
        %v1005 = vmul.f32 %v1004, 1.442695
        %v1006 = vpow.pop %v1005
        %v1007 = vadd.f32 %v1006, 1.0
        %v1008 = vrcp.pop %v1007
        %v1009 = vmul.f32 %v1007, %v1008
        %v1010 = vsub.f32 1.0, %v1009
        %v1011 = vmul.f32 %v1008, %v1010
        %v1012 = vadd.f32 %v1008, %v1011
        %vm1013 = vweird.f32 %v1007
        %vm1014 = vweird.f32 %v1008
        %vm1015 = vmor %vm1013, %vm1014
        %v1016 = vsel %vm1015, %v1008, %v1012
        %v1017 = vand.u32 2147483647, %v1007
        %vm1018 = vcmp.eq.f32.partialorder %v1017, 8.507059e+37
        %v1019 = vand.u32 %v1007, 2147483648
        %v1020 = vor.u32 1.1754944e-38, %v1019
        %v1021 = vsel %vm1018, %v1020, %v1016
        %v1022 = vmul.f32 1.0, %v1021
        %v1023 = vxor.u32 %v983, 2147483648
        %v1024 = vmul.f32 %v1023, 1.442695
        %v1025 = vpow.pop %v1024
        %v1026 = vadd.f32 %v1025, 1.0
        %v1027 = vrcp.pop %v1026
        %v1028 = vmul.f32 %v1026, %v1027
        %v1029 = vsub.f32 1.0, %v1028
        %v1030 = vmul.f32 %v1027, %v1029
        %v1031 = vadd.f32 %v1027, %v1030
        %vm1032 = vweird.f32 %v1026
        %vm1033 = vweird.f32 %v1027
        %vm1034 = vmor %vm1032, %vm1033
        %v1035 = vsel %vm1034, %v1027, %v1031
        %v1036 = vand.u32 2147483647, %v1026
        %vm1037 = vcmp.eq.f32.partialorder %v1036, 8.507059e+37
        %v1038 = vand.u32 %v1026, 2147483648
        %v1039 = vor.u32 1.1754944e-38, %v1038
        %v1040 = vsel %vm1037, %v1039, %v1035
        %v1041 = vmul.f32 1.0, %v1040
        %v1042 = vtanh.pop %v984
        %v1043 = vmul.f32 %v651, %v1003
        %v1044 = vmul.f32 %v1022, %v1042
        %v1045 = vadd.f32 %v1043, %v1044
        %v1046 = vtanh.pop %v1045
        %v1047 = vmul.f32 %v1041, %v1046
        %v1048 = vsub.f32 %v1045, %v651
        %v1049 = vmul.f32 %v663, %v1048
        %v1050 = vadd.f32 %v651, %v1049
        %v1051 = vsub.f32 %v1047, %v649
        %v1052 = vmul.f32 %v663, %v1051
        %v1053 = vadd.f32 %v649, %v1052
        %v1054 = vpack.c.bf16 %v1053, %v1053
        %v1055 = vpack.c.bf16 %v650, %v650
        %v1088 = vunpack.c.l.b16 %v615
        %v1089 = vunpack.c.h.b16 %v615
        %v1090 = vunpack.c.l.b16 %v616
        %v1091 = vunpack.c.h.b16 %v616
        %v1092 = vunpack.c.l.b16 %v617
        %v1093 = vunpack.c.h.b16 %v617
        %v1094 = vunpack.c.l.b16 %v618
        %v1095 = vunpack.c.h.b16 %v618
        %v1096 = vunpack.c.l.b16 %v619
        %v1097 = vunpack.c.h.b16 %v619
        %v1098 = vunpack.c.l.b16 %v620
        %v1099 = vunpack.c.h.b16 %v620
        %v1100 = vunpack.c.l.b16 %v621
        %v1101 = vunpack.c.h.b16 %v621
        %v1102 = vunpack.c.l.b16 %v622
        %v1103 = vunpack.c.h.b16 %v622
        %v1104 = vunpack.c.l.b16 %v623
        %v1105 = vunpack.c.h.b16 %v623
        %v1106 = vunpack.c.l.b16 %v624
        %v1107 = vunpack.c.h.b16 %v624
        %v1108 = vunpack.c.l.b16 %v625
        %v1109 = vunpack.c.h.b16 %v625
        %v1110 = vunpack.c.l.b16 %v626
        %v1111 = vunpack.c.h.b16 %v626
        %v1112 = vunpack.c.l.b16 %v627
        %v1113 = vunpack.c.h.b16 %v627
        %v1114 = vunpack.c.l.b16 %v628
        %v1115 = vunpack.c.h.b16 %v628
        %v1116 = vunpack.c.l.b16 %v629
        %v1117 = vunpack.c.h.b16 %v629
        %v1118 = vunpack.c.l.b16 %v630
        %v1119 = vunpack.c.h.b16 %v630
        %v1120 = vunpack.c.l.b16 %v631
        %v1121 = vunpack.c.h.b16 %v631
        %v1122 = vunpack.c.l.b16 %v632
        %v1123 = vunpack.c.h.b16 %v632
        %v1124 = vunpack.c.l.b16 %v633
        %v1125 = vunpack.c.h.b16 %v633
        %v1126 = vunpack.c.l.b16 %v634
        %v1127 = vunpack.c.h.b16 %v634
        %v1128 = vunpack.c.l.b16 %v635
        %v1129 = vunpack.c.h.b16 %v635
        %v1130 = vunpack.c.l.b16 %v636
        %v1131 = vunpack.c.h.b16 %v636
        %v1132 = vunpack.c.l.b16 %v637
        %v1133 = vunpack.c.h.b16 %v637
        %v1134 = vunpack.c.l.b16 %v638
        %v1135 = vunpack.c.h.b16 %v638
        %v1136 = vunpack.c.l.b16 %v639
        %v1137 = vunpack.c.h.b16 %v639
        %v1138 = vunpack.c.l.b16 %v640
        %v1139 = vunpack.c.h.b16 %v640
        %v1140 = vunpack.c.l.b16 %v641
        %v1141 = vunpack.c.h.b16 %v641
        %v1142 = vunpack.c.l.b16 %v642
        %v1143 = vunpack.c.h.b16 %v642
        %v1144 = vunpack.c.l.b16 %v643
        %v1145 = vunpack.c.h.b16 %v643
        %v1146 = vunpack.c.l.b16 %v644
        %v1147 = vunpack.c.h.b16 %v644
        %v1148 = vunpack.c.l.b16 %v645
        %v1149 = vunpack.c.h.b16 %v645
        %v1150 = vunpack.c.l.b16 %v646
        %v1151 = vunpack.c.h.b16 %v646
        %v1152 = vpack.c.b16 %v1092, %v1088
        %v1153 = vpack.c.b16 %v1093, %v1089
        %v1154 = vpack.c.b16 %v1094, %v1090
        %v1155 = vpack.c.b16 %v1095, %v1091
        %v1156 = vpack.c.b16 %v1100, %v1096
        %v1157 = vpack.c.b16 %v1101, %v1097
        %v1158 = vpack.c.b16 %v1102, %v1098
        %v1159 = vpack.c.b16 %v1103, %v1099
        %v1160 = vpack.c.b16 %v1108, %v1104
        %v1161 = vpack.c.b16 %v1109, %v1105
        %v1162 = vpack.c.b16 %v1110, %v1106
        %v1163 = vpack.c.b16 %v1111, %v1107
        %v1164 = vpack.c.b16 %v1116, %v1112
        %v1165 = vpack.c.b16 %v1117, %v1113
        %v1166 = vpack.c.b16 %v1118, %v1114
        %v1167 = vpack.c.b16 %v1119, %v1115
        %v1168 = vpack.c.b16 %v1124, %v1120
        %v1169 = vpack.c.b16 %v1125, %v1121
        %v1170 = vpack.c.b16 %v1126, %v1122
        %v1171 = vpack.c.b16 %v1127, %v1123
        %v1172 = vpack.c.b16 %v1132, %v1128
        %v1173 = vpack.c.b16 %v1133, %v1129
        %v1174 = vpack.c.b16 %v1134, %v1130
        %v1175 = vpack.c.b16 %v1135, %v1131
        %v1176 = vpack.c.b16 %v1140, %v1136
        %v1177 = vpack.c.b16 %v1141, %v1137
        %v1178 = vpack.c.b16 %v1142, %v1138
        %v1179 = vpack.c.b16 %v1143, %v1139
        %v1180 = vpack.c.b16 %v1148, %v1144
        %v1181 = vpack.c.b16 %v1149, %v1145
        %v1182 = vpack.c.b16 %v1150, %v1146
        %v1183 = vpack.c.b16 %v1151, %v1147
        %1216 = vmatpush.bf16.msra.mxu0 %v1180
        %1217 = vmatpush.bf16.msra.mxu0 %v1176
        %1218 = vmatpush.bf16.msra.mxu0 %v1172
        %1219 = vmatpush.bf16.msra.mxu0 %v1168
        %1220 = vmatpush.bf16.msra.mxu0 %v1164
        %1221 = vmatpush.bf16.msra.mxu0 %v1160
        %1222 = vmatpush.bf16.msra.mxu0 %v1156
        %1223 = vmatpush.bf16.msra.mxu0 %v1152
        %1224 = vmatmul.bf16.gmra.mxu0 %v1055
        %v1225 = vpop.f32.mrf.mxu0
        %v1226 = vadd.f32 0.0, %v1225
        %v1227 = vpop.f32.mrf.mxu0
        %1228 = vdwg.mxu0
        %1229 = vmatpush.bf16.msra.mxu0 %v1181
        %1230 = vmatpush.bf16.msra.mxu0 %v1177
        %1231 = vmatpush.bf16.msra.mxu0 %v1173
        %1232 = vmatpush.bf16.msra.mxu0 %v1169
        %1233 = vmatpush.bf16.msra.mxu0 %v1165
        %1234 = vmatpush.bf16.msra.mxu0 %v1161
        %1235 = vmatpush.bf16.msra.mxu0 %v1157
        %1236 = vmatpush.bf16.msra.mxu0 %v1153
        %1237 = vmatmul.bf16.gmra.mxu0 %v1055
        %v1238 = vpop.f32.mrf.mxu0
        %v1239 = vadd.f32 0.0, %v1238
        %v1240 = vpop.f32.mrf.mxu0
        %1241 = vdwg.mxu0
        %1242 = vmatpush.bf16.msra.mxu0 %v1182
        %1243 = vmatpush.bf16.msra.mxu0 %v1178
        %1244 = vmatpush.bf16.msra.mxu0 %v1174
        %1245 = vmatpush.bf16.msra.mxu0 %v1170
        %1246 = vmatpush.bf16.msra.mxu0 %v1166
        %1247 = vmatpush.bf16.msra.mxu0 %v1162
        %1248 = vmatpush.bf16.msra.mxu0 %v1158
        %1249 = vmatpush.bf16.msra.mxu0 %v1154
        %1250 = vmatmul.bf16.gmra.mxu0 %v1055
        %v1251 = vpop.f32.mrf.mxu0
        %v1252 = vadd.f32 0.0, %v1251
        %v1253 = vpop.f32.mrf.mxu0
        %1254 = vdwg.mxu0
        %1255 = vmatpush.bf16.msra.mxu0 %v1183
        %1256 = vmatpush.bf16.msra.mxu0 %v1179
        %1257 = vmatpush.bf16.msra.mxu0 %v1175
        %1258 = vmatpush.bf16.msra.mxu0 %v1171
        %1259 = vmatpush.bf16.msra.mxu0 %v1167
        %1260 = vmatpush.bf16.msra.mxu0 %v1163
        %1261 = vmatpush.bf16.msra.mxu0 %v1159
        %1262 = vmatpush.bf16.msra.mxu0 %v1155
        %1263 = vmatmul.bf16.gmra.mxu0 %v1055
        %v1264 = vpop.f32.mrf.mxu0
        %v1265 = vadd.f32 0.0, %v1264
        %v1266 = vpop.f32.mrf.mxu0
        %1267 = vdwg.mxu0
        %v1300 = vunpack.c.l.b16 %v551
        %v1301 = vunpack.c.h.b16 %v551
        %v1302 = vunpack.c.l.b16 %v552
        %v1303 = vunpack.c.h.b16 %v552
        %v1304 = vunpack.c.l.b16 %v553
        %v1305 = vunpack.c.h.b16 %v553
        %v1306 = vunpack.c.l.b16 %v554
        %v1307 = vunpack.c.h.b16 %v554
        %v1308 = vunpack.c.l.b16 %v555
        %v1309 = vunpack.c.h.b16 %v555
        %v1310 = vunpack.c.l.b16 %v556
        %v1311 = vunpack.c.h.b16 %v556
        %v1312 = vunpack.c.l.b16 %v557
        %v1313 = vunpack.c.h.b16 %v557
        %v1314 = vunpack.c.l.b16 %v558
        %v1315 = vunpack.c.h.b16 %v558
        %v1316 = vunpack.c.l.b16 %v559
        %v1317 = vunpack.c.h.b16 %v559
        %v1318 = vunpack.c.l.b16 %v560
        %v1319 = vunpack.c.h.b16 %v560
        %v1320 = vunpack.c.l.b16 %v561
        %v1321 = vunpack.c.h.b16 %v561
        %v1322 = vunpack.c.l.b16 %v562
        %v1323 = vunpack.c.h.b16 %v562
        %v1324 = vunpack.c.l.b16 %v563
        %v1325 = vunpack.c.h.b16 %v563
        %v1326 = vunpack.c.l.b16 %v564
        %v1327 = vunpack.c.h.b16 %v564
        %v1328 = vunpack.c.l.b16 %v565
        %v1329 = vunpack.c.h.b16 %v565
        %v1330 = vunpack.c.l.b16 %v566
        %v1331 = vunpack.c.h.b16 %v566
        %v1332 = vunpack.c.l.b16 %v567
        %v1333 = vunpack.c.h.b16 %v567
        %v1334 = vunpack.c.l.b16 %v568
        %v1335 = vunpack.c.h.b16 %v568
        %v1336 = vunpack.c.l.b16 %v569
        %v1337 = vunpack.c.h.b16 %v569
        %v1338 = vunpack.c.l.b16 %v570
        %v1339 = vunpack.c.h.b16 %v570
        %v1340 = vunpack.c.l.b16 %v571
        %v1341 = vunpack.c.h.b16 %v571
        %v1342 = vunpack.c.l.b16 %v572
        %v1343 = vunpack.c.h.b16 %v572
        %v1344 = vunpack.c.l.b16 %v573
        %v1345 = vunpack.c.h.b16 %v573
        %v1346 = vunpack.c.l.b16 %v574
        %v1347 = vunpack.c.h.b16 %v574
        %v1348 = vunpack.c.l.b16 %v575
        %v1349 = vunpack.c.h.b16 %v575
        %v1350 = vunpack.c.l.b16 %v576
        %v1351 = vunpack.c.h.b16 %v576
        %v1352 = vunpack.c.l.b16 %v577
        %v1353 = vunpack.c.h.b16 %v577
        %v1354 = vunpack.c.l.b16 %v578
        %v1355 = vunpack.c.h.b16 %v578
        %v1356 = vunpack.c.l.b16 %v579
        %v1357 = vunpack.c.h.b16 %v579
        %v1358 = vunpack.c.l.b16 %v580
        %v1359 = vunpack.c.h.b16 %v580
        %v1360 = vunpack.c.l.b16 %v581
        %v1361 = vunpack.c.h.b16 %v581
        %v1362 = vunpack.c.l.b16 %v582
        %v1363 = vunpack.c.h.b16 %v582
        %v1364 = vpack.c.b16 %v1304, %v1300
        %v1365 = vpack.c.b16 %v1305, %v1301
        %v1366 = vpack.c.b16 %v1306, %v1302
        %v1367 = vpack.c.b16 %v1307, %v1303
        %v1368 = vpack.c.b16 %v1312, %v1308
        %v1369 = vpack.c.b16 %v1313, %v1309
        %v1370 = vpack.c.b16 %v1314, %v1310
        %v1371 = vpack.c.b16 %v1315, %v1311
        %v1372 = vpack.c.b16 %v1320, %v1316
        %v1373 = vpack.c.b16 %v1321, %v1317
        %v1374 = vpack.c.b16 %v1322, %v1318
        %v1375 = vpack.c.b16 %v1323, %v1319
        %v1376 = vpack.c.b16 %v1328, %v1324
        %v1377 = vpack.c.b16 %v1329, %v1325
        %v1378 = vpack.c.b16 %v1330, %v1326
        %v1379 = vpack.c.b16 %v1331, %v1327
        %v1380 = vpack.c.b16 %v1336, %v1332
        %v1381 = vpack.c.b16 %v1337, %v1333
        %v1382 = vpack.c.b16 %v1338, %v1334
        %v1383 = vpack.c.b16 %v1339, %v1335
        %v1384 = vpack.c.b16 %v1344, %v1340
        %v1385 = vpack.c.b16 %v1345, %v1341
        %v1386 = vpack.c.b16 %v1346, %v1342
        %v1387 = vpack.c.b16 %v1347, %v1343
        %v1388 = vpack.c.b16 %v1352, %v1348
        %v1389 = vpack.c.b16 %v1353, %v1349
        %v1390 = vpack.c.b16 %v1354, %v1350
        %v1391 = vpack.c.b16 %v1355, %v1351
        %v1392 = vpack.c.b16 %v1360, %v1356
        %v1393 = vpack.c.b16 %v1361, %v1357
        %v1394 = vpack.c.b16 %v1362, %v1358
        %v1395 = vpack.c.b16 %v1363, %v1359
        %1428 = vmatpush.bf16.msra.mxu0 %v1392
        %1429 = vmatpush.bf16.msra.mxu0 %v1388
        %1430 = vmatpush.bf16.msra.mxu0 %v1384
        %1431 = vmatpush.bf16.msra.mxu0 %v1380
        %1432 = vmatpush.bf16.msra.mxu0 %v1376
        %1433 = vmatpush.bf16.msra.mxu0 %v1372
        %1434 = vmatpush.bf16.msra.mxu0 %v1368
        %1435 = vmatpush.bf16.msra.mxu0 %v1364
        %1436 = vmatmul.bf16.gmra.mxu0 %v1054
        %v1437 = vpop.f32.mrf.mxu0
        %v1438 = vadd.f32 %v1226, %v1437
        %v1439 = vpop.f32.mrf.mxu0
        %1440 = vdwg.mxu0
        %1441 = vmatpush.bf16.msra.mxu0 %v1393
        %1442 = vmatpush.bf16.msra.mxu0 %v1389
        %1443 = vmatpush.bf16.msra.mxu0 %v1385
        %1444 = vmatpush.bf16.msra.mxu0 %v1381
        %1445 = vmatpush.bf16.msra.mxu0 %v1377
        %1446 = vmatpush.bf16.msra.mxu0 %v1373
        %1447 = vmatpush.bf16.msra.mxu0 %v1369
        %1448 = vmatpush.bf16.msra.mxu0 %v1365
        %1449 = vmatmul.bf16.gmra.mxu0 %v1054
        %v1450 = vpop.f32.mrf.mxu0
        %v1451 = vadd.f32 %v1239, %v1450
        %v1452 = vpop.f32.mrf.mxu0
        %1453 = vdwg.mxu0
        %1454 = vmatpush.bf16.msra.mxu0 %v1394
        %1455 = vmatpush.bf16.msra.mxu0 %v1390
        %1456 = vmatpush.bf16.msra.mxu0 %v1386
        %1457 = vmatpush.bf16.msra.mxu0 %v1382
        %1458 = vmatpush.bf16.msra.mxu0 %v1378
        %1459 = vmatpush.bf16.msra.mxu0 %v1374
        %1460 = vmatpush.bf16.msra.mxu0 %v1370
        %1461 = vmatpush.bf16.msra.mxu0 %v1366
        %1462 = vmatmul.bf16.gmra.mxu0 %v1054
        %v1463 = vpop.f32.mrf.mxu0
        %v1464 = vadd.f32 %v1252, %v1463
        %v1465 = vpop.f32.mrf.mxu0
        %1466 = vdwg.mxu0
        %1467 = vmatpush.bf16.msra.mxu0 %v1395
        %1468 = vmatpush.bf16.msra.mxu0 %v1391
        %1469 = vmatpush.bf16.msra.mxu0 %v1387
        %1470 = vmatpush.bf16.msra.mxu0 %v1383
        %1471 = vmatpush.bf16.msra.mxu0 %v1379
        %1472 = vmatpush.bf16.msra.mxu0 %v1375
        %1473 = vmatpush.bf16.msra.mxu0 %v1371
        %1474 = vmatpush.bf16.msra.mxu0 %v1367
        %1475 = vmatmul.bf16.gmra.mxu0 %v1054
        %v1476 = vpop.f32.mrf.mxu0
        %v1477 = vadd.f32 %v1265, %v1476
        %v1478 = vpop.f32.mrf.mxu0
        %1479 = vdwg.mxu0
        %v1481 = vperm.slane %v648, 0
        %v1482 = vperm.slane %v648, 1
        %v1483 = vperm.slane %v648, 2
        %v1484 = vperm.slane %v648, 3
        %v1489 = vadd.f32 %v1438, %v1481
        %v1490 = vadd.f32 %v1451, %v1482
        %v1491 = vadd.f32 %v1464, %v1483
        %v1492 = vadd.f32 %v1477, %v1484
        %v1493 = vxor.u32 %v1489, 2147483648
        %v1494 = vmul.f32 %v1493, 1.442695
        %v1495 = vpow.pop %v1494
        %v1496 = vadd.f32 %v1495, 1.0
        %v1497 = vrcp.pop %v1496
        %v1498 = vmul.f32 %v1496, %v1497
        %v1499 = vsub.f32 1.0, %v1498
        %v1500 = vmul.f32 %v1497, %v1499
        %v1501 = vadd.f32 %v1497, %v1500
        %vm1502 = vweird.f32 %v1496
        %vm1503 = vweird.f32 %v1497
        %vm1504 = vmor %vm1502, %vm1503
        %v1505 = vsel %vm1504, %v1497, %v1501
        %v1506 = vand.u32 2147483647, %v1496
        %vm1507 = vcmp.eq.f32.partialorder %v1506, 8.507059e+37
        %v1508 = vand.u32 %v1496, 2147483648
        %v1509 = vor.u32 1.1754944e-38, %v1508
        %v1510 = vsel %vm1507, %v1509, %v1505
        %v1511 = vmul.f32 1.0, %v1510
        %v1512 = vxor.u32 %v1490, 2147483648
        %v1513 = vmul.f32 %v1512, 1.442695
        %v1514 = vpow.pop %v1513
        %v1515 = vadd.f32 %v1514, 1.0
        %v1516 = vrcp.pop %v1515
        %v1517 = vmul.f32 %v1515, %v1516
        %v1518 = vsub.f32 1.0, %v1517
        %v1519 = vmul.f32 %v1516, %v1518
        %v1520 = vadd.f32 %v1516, %v1519
        %vm1521 = vweird.f32 %v1515
        %vm1522 = vweird.f32 %v1516
        %vm1523 = vmor %vm1521, %vm1522
        %v1524 = vsel %vm1523, %v1516, %v1520
        %v1525 = vand.u32 2147483647, %v1515
        %vm1526 = vcmp.eq.f32.partialorder %v1525, 8.507059e+37
        %v1527 = vand.u32 %v1515, 2147483648
        %v1528 = vor.u32 1.1754944e-38, %v1527
        %v1529 = vsel %vm1526, %v1528, %v1524
        %v1530 = vmul.f32 1.0, %v1529
        %v1531 = vxor.u32 %v1491, 2147483648
        %v1532 = vmul.f32 %v1531, 1.442695
        %v1533 = vpow.pop %v1532
        %v1534 = vadd.f32 %v1533, 1.0
        %v1535 = vrcp.pop %v1534
        %v1536 = vmul.f32 %v1534, %v1535
        %v1537 = vsub.f32 1.0, %v1536
        %v1538 = vmul.f32 %v1535, %v1537
        %v1539 = vadd.f32 %v1535, %v1538
        %vm1540 = vweird.f32 %v1534
        %vm1541 = vweird.f32 %v1535
        %vm1542 = vmor %vm1540, %vm1541
        %v1543 = vsel %vm1542, %v1535, %v1539
        %v1544 = vand.u32 2147483647, %v1534
        %vm1545 = vcmp.eq.f32.partialorder %v1544, 8.507059e+37
        %v1546 = vand.u32 %v1534, 2147483648
        %v1547 = vor.u32 1.1754944e-38, %v1546
        %v1548 = vsel %vm1545, %v1547, %v1543
        %v1549 = vmul.f32 1.0, %v1548
        %v1550 = vtanh.pop %v1492
        %v1551 = vmul.f32 %v652, %v1511
        %v1552 = vmul.f32 %v1530, %v1550
        %v1553 = vadd.f32 %v1551, %v1552
        %v1554 = vtanh.pop %v1553
        %v1555 = vmul.f32 %v1549, %v1554
        %v1556 = vsub.f32 %v1553, %v652
        %v1557 = vmul.f32 %v663, %v1556
        %v1558 = vadd.f32 %v652, %v1557
        %v1559 = vsub.f32 %v1555, %v650
        %v1560 = vmul.f32 %v663, %v1559
        %v1561 = vadd.f32 %v650, %v1560
        %s1562 = scalar_lea.vmem %s449, 4 [#allocation6]
        %v1563 = vld [vmem:[%s1562] sm:$0xf]
        %v1564 = vunpack.c.l.bf16 %v1563
        %vm1565 = vcmp.ne.f32.partialorder %v1564, %v655
        %v1566 = vsel %vm1565, 1, 0
        %v1567 = vcvt.s32.f32 %v1566
        %v1568 = vsel %vm659, %v1567, 0.0
        %1569 = vadd.xlane.f32.xlu0 %v1568
        %v1570 = vpop.xlane.xlu0 %1569
        %v1571 = vmin.f32 %v1570, 1.0
        %1572 = vmatpush.bf16.msra.mxu0 %v789
        %1573 = vmatpush.bf16.msra.mxu0 %v785
        %1574 = vmatpush.bf16.msra.mxu0 %v781
        %1575 = vmatpush.bf16.msra.mxu0 %v777
        %1576 = vmatpush.bf16.msra.mxu0 %v773
        %1577 = vmatpush.bf16.msra.mxu0 %v769
        %1578 = vmatpush.bf16.msra.mxu0 %v765
        %1579 = vmatpush.bf16.msra.mxu0 %v761
        %1580 = vmatmul.bf16.gmra.mxu0 %v1054
        %v1581 = vpop.f32.mrf.mxu0
        %v1582 = vadd.f32 0.0, %v1581
        %v1583 = vpop.f32.mrf.mxu0
        %1584 = vdwg.mxu0
        %1585 = vmatpush.bf16.msra.mxu0 %v790
        %1586 = vmatpush.bf16.msra.mxu0 %v786
        %1587 = vmatpush.bf16.msra.mxu0 %v782
        %1588 = vmatpush.bf16.msra.mxu0 %v778
        %1589 = vmatpush.bf16.msra.mxu0 %v774
        %1590 = vmatpush.bf16.msra.mxu0 %v770
        %1591 = vmatpush.bf16.msra.mxu0 %v766
        %1592 = vmatpush.bf16.msra.mxu0 %v762
        %1593 = vmatmul.bf16.gmra.mxu0 %v1054
        %v1594 = vpop.f32.mrf.mxu0
        %v1595 = vadd.f32 0.0, %v1594
        %v1596 = vpop.f32.mrf.mxu0
        %1597 = vdwg.mxu0
        %1598 = vmatpush.bf16.msra.mxu0 %v791
        %1599 = vmatpush.bf16.msra.mxu0 %v787
        %1600 = vmatpush.bf16.msra.mxu0 %v783
        %1601 = vmatpush.bf16.msra.mxu0 %v779
        %1602 = vmatpush.bf16.msra.mxu0 %v775
        %1603 = vmatpush.bf16.msra.mxu0 %v771
        %1604 = vmatpush.bf16.msra.mxu0 %v767
        %1605 = vmatpush.bf16.msra.mxu0 %v763
        %1606 = vmatmul.bf16.gmra.mxu0 %v1054
        %v1607 = vpop.f32.mrf.mxu0
        %v1608 = vadd.f32 0.0, %v1607
        %v1609 = vpop.f32.mrf.mxu0
        %1610 = vdwg.mxu0
        %1611 = vmatpush.bf16.msra.mxu0 %v792
        %1612 = vmatpush.bf16.msra.mxu0 %v788
        %1613 = vmatpush.bf16.msra.mxu0 %v784
        %1614 = vmatpush.bf16.msra.mxu0 %v780
        %1615 = vmatpush.bf16.msra.mxu0 %v776
        %1616 = vmatpush.bf16.msra.mxu0 %v772
        %1617 = vmatpush.bf16.msra.mxu0 %v768
        %1618 = vmatpush.bf16.msra.mxu0 %v764
        %1619 = vmatmul.bf16.gmra.mxu0 %v1054
        %v1620 = vpop.f32.mrf.mxu0
        %v1621 = vadd.f32 0.0, %v1620
        %v1622 = vpop.f32.mrf.mxu0
        %1623 = vdwg.mxu0
        %v1625 = vsel %vm659, %v1563, 0
        %1627 = vmatpush.bf16.msra.mxu0 0
        %1628 = vmatpush.bf16.msra.mxu0 0
        %1629 = vmatpush.bf16.msra.mxu0 0
        %1630 = vmatpush.bf16.msra.mxu0 0
        %1631 = vmatpush.bf16.msra.mxu0 0
        %1632 = vmatpush.bf16.msra.mxu0 0
        %1633 = vmatpush.bf16.msra.mxu0 %v905
        %1634 = vmatpush.bf16.msra.mxu0 %v901
        %1635 = vmatmul.bf16.gmra.mxu0 %v1625
        %v1636 = vpop.f32.mrf.mxu0
        %v1637 = vadd.f32 %v1582, %v1636
        %v1638 = vpop.f32.mrf.mxu0
        %1639 = vdwg.mxu0
        %1640 = vmatpush.bf16.msra.mxu0 0
        %1641 = vmatpush.bf16.msra.mxu0 0
        %1642 = vmatpush.bf16.msra.mxu0 0
        %1643 = vmatpush.bf16.msra.mxu0 0
        %1644 = vmatpush.bf16.msra.mxu0 0
        %1645 = vmatpush.bf16.msra.mxu0 0
        %1646 = vmatpush.bf16.msra.mxu0 %v906
        %1647 = vmatpush.bf16.msra.mxu0 %v902
        %1648 = vmatmul.bf16.gmra.mxu0 %v1625
        %v1649 = vpop.f32.mrf.mxu0
        %v1650 = vadd.f32 %v1595, %v1649
        %v1651 = vpop.f32.mrf.mxu0
        %1652 = vdwg.mxu0
        %1653 = vmatpush.bf16.msra.mxu0 0
        %1654 = vmatpush.bf16.msra.mxu0 0
        %1655 = vmatpush.bf16.msra.mxu0 0
        %1656 = vmatpush.bf16.msra.mxu0 0
        %1657 = vmatpush.bf16.msra.mxu0 0
        %1658 = vmatpush.bf16.msra.mxu0 0
        %1659 = vmatpush.bf16.msra.mxu0 %v907
        %1660 = vmatpush.bf16.msra.mxu0 %v903
        %1661 = vmatmul.bf16.gmra.mxu0 %v1625
        %v1662 = vpop.f32.mrf.mxu0
        %v1663 = vadd.f32 %v1608, %v1662
        %v1664 = vpop.f32.mrf.mxu0
        %1665 = vdwg.mxu0
        %1666 = vmatpush.bf16.msra.mxu0 0
        %1667 = vmatpush.bf16.msra.mxu0 0
        %1668 = vmatpush.bf16.msra.mxu0 0
        %1669 = vmatpush.bf16.msra.mxu0 0
        %1670 = vmatpush.bf16.msra.mxu0 0
        %1671 = vmatpush.bf16.msra.mxu0 0
        %1672 = vmatpush.bf16.msra.mxu0 %v908
        %1673 = vmatpush.bf16.msra.mxu0 %v904
        %1674 = vmatmul.bf16.gmra.mxu0 %v1625
        %v1675 = vpop.f32.mrf.mxu0
        %v1676 = vadd.f32 %v1621, %v1675
        %v1677 = vpop.f32.mrf.mxu0
        %1678 = vdwg.mxu0
        %v1679 = vadd.f32 %v1637, %v973
        %v1680 = vadd.f32 %v1650, %v974
        %v1681 = vadd.f32 %v1663, %v975
        %v1682 = vadd.f32 %v1676, %v976
        %v1683 = vxor.u32 %v1679, 2147483648
        %v1684 = vmul.f32 %v1683, 1.442695
        %v1685 = vpow.pop %v1684
        %v1686 = vadd.f32 %v1685, 1.0
        %v1687 = vrcp.pop %v1686
        %v1688 = vmul.f32 %v1686, %v1687
        %v1689 = vsub.f32 1.0, %v1688
        %v1690 = vmul.f32 %v1687, %v1689
        %v1691 = vadd.f32 %v1687, %v1690
        %vm1692 = vweird.f32 %v1686
        %vm1693 = vweird.f32 %v1687
        %vm1694 = vmor %vm1692, %vm1693
        %v1695 = vsel %vm1694, %v1687, %v1691
        %v1696 = vand.u32 2147483647, %v1686
        %vm1697 = vcmp.eq.f32.partialorder %v1696, 8.507059e+37
        %v1698 = vand.u32 %v1686, 2147483648
        %v1699 = vor.u32 1.1754944e-38, %v1698
        %v1700 = vsel %vm1697, %v1699, %v1695
        %v1701 = vmul.f32 1.0, %v1700
        %v1702 = vxor.u32 %v1680, 2147483648
        %v1703 = vmul.f32 %v1702, 1.442695
        %v1704 = vpow.pop %v1703
        %v1705 = vadd.f32 %v1704, 1.0
        %v1706 = vrcp.pop %v1705
        %v1707 = vmul.f32 %v1705, %v1706
        %v1708 = vsub.f32 1.0, %v1707
        %v1709 = vmul.f32 %v1706, %v1708
        %v1710 = vadd.f32 %v1706, %v1709
        %vm1711 = vweird.f32 %v1705
        %vm1712 = vweird.f32 %v1706
        %vm1713 = vmor %vm1711, %vm1712
        %v1714 = vsel %vm1713, %v1706, %v1710
        %v1715 = vand.u32 2147483647, %v1705
        %vm1716 = vcmp.eq.f32.partialorder %v1715, 8.507059e+37
        %v1717 = vand.u32 %v1705, 2147483648
        %v1718 = vor.u32 1.1754944e-38, %v1717
        %v1719 = vsel %vm1716, %v1718, %v1714
        %v1720 = vmul.f32 1.0, %v1719
        %v1721 = vxor.u32 %v1681, 2147483648
        %v1722 = vmul.f32 %v1721, 1.442695
        %v1723 = vpow.pop %v1722
        %v1724 = vadd.f32 %v1723, 1.0
        %v1725 = vrcp.pop %v1724
        %v1726 = vmul.f32 %v1724, %v1725
        %v1727 = vsub.f32 1.0, %v1726
        %v1728 = vmul.f32 %v1725, %v1727
        %v1729 = vadd.f32 %v1725, %v1728
        %vm1730 = vweird.f32 %v1724
        %vm1731 = vweird.f32 %v1725
        %vm1732 = vmor %vm1730, %vm1731
        %v1733 = vsel %vm1732, %v1725, %v1729
        %v1734 = vand.u32 2147483647, %v1724
        %vm1735 = vcmp.eq.f32.partialorder %v1734, 8.507059e+37
        %v1736 = vand.u32 %v1724, 2147483648
        %v1737 = vor.u32 1.1754944e-38, %v1736
        %v1738 = vsel %vm1735, %v1737, %v1733
        %v1739 = vmul.f32 1.0, %v1738
        %v1740 = vtanh.pop %v1682
        %v1741 = vmul.f32 %v1050, %v1701
        %v1742 = vmul.f32 %v1720, %v1740
        %v1743 = vadd.f32 %v1741, %v1742
        %v1744 = vtanh.pop %v1743
        %v1745 = vmul.f32 %v1739, %v1744
        %v1746 = vsub.f32 %v1743, %v1050
        %v1747 = vmul.f32 %v1571, %v1746
        %v1748 = vadd.f32 %v1050, %v1747
        %v1749 = vsub.f32 %v1745, %v1053
        %v1750 = vmul.f32 %v1571, %v1749
        %v1751 = vadd.f32 %v1053, %v1750
        %v1752 = vpack.c.bf16 %v1751, %v1751
        %v1753 = vpack.c.bf16 %v1561, %v1561
        %1754 = vmatpush.bf16.msra.mxu0 %v1180
        %1755 = vmatpush.bf16.msra.mxu0 %v1176
        %1756 = vmatpush.bf16.msra.mxu0 %v1172
        %1757 = vmatpush.bf16.msra.mxu0 %v1168
        %1758 = vmatpush.bf16.msra.mxu0 %v1164
        %1759 = vmatpush.bf16.msra.mxu0 %v1160
        %1760 = vmatpush.bf16.msra.mxu0 %v1156
        %1761 = vmatpush.bf16.msra.mxu0 %v1152
        %1762 = vmatmul.bf16.gmra.mxu0 %v1753
        %v1763 = vpop.f32.mrf.mxu0
        %v1764 = vadd.f32 0.0, %v1763
        %v1765 = vpop.f32.mrf.mxu0
        %1766 = vdwg.mxu0
        %1767 = vmatpush.bf16.msra.mxu0 %v1181
        %1768 = vmatpush.bf16.msra.mxu0 %v1177
        %1769 = vmatpush.bf16.msra.mxu0 %v1173
        %1770 = vmatpush.bf16.msra.mxu0 %v1169
        %1771 = vmatpush.bf16.msra.mxu0 %v1165
        %1772 = vmatpush.bf16.msra.mxu0 %v1161
        %1773 = vmatpush.bf16.msra.mxu0 %v1157
        %1774 = vmatpush.bf16.msra.mxu0 %v1153
        %1775 = vmatmul.bf16.gmra.mxu0 %v1753
        %v1776 = vpop.f32.mrf.mxu0
        %v1777 = vadd.f32 0.0, %v1776
        %v1778 = vpop.f32.mrf.mxu0
        %1779 = vdwg.mxu0
        %1780 = vmatpush.bf16.msra.mxu0 %v1182
        %1781 = vmatpush.bf16.msra.mxu0 %v1178
        %1782 = vmatpush.bf16.msra.mxu0 %v1174
        %1783 = vmatpush.bf16.msra.mxu0 %v1170
        %1784 = vmatpush.bf16.msra.mxu0 %v1166
        %1785 = vmatpush.bf16.msra.mxu0 %v1162
        %1786 = vmatpush.bf16.msra.mxu0 %v1158
        %1787 = vmatpush.bf16.msra.mxu0 %v1154
        %1788 = vmatmul.bf16.gmra.mxu0 %v1753
        %v1789 = vpop.f32.mrf.mxu0
        %v1790 = vadd.f32 0.0, %v1789
        %v1791 = vpop.f32.mrf.mxu0
        %1792 = vdwg.mxu0
        %1793 = vmatpush.bf16.msra.mxu0 %v1183
        %1794 = vmatpush.bf16.msra.mxu0 %v1179
        %1795 = vmatpush.bf16.msra.mxu0 %v1175
        %1796 = vmatpush.bf16.msra.mxu0 %v1171
        %1797 = vmatpush.bf16.msra.mxu0 %v1167
        %1798 = vmatpush.bf16.msra.mxu0 %v1163
        %1799 = vmatpush.bf16.msra.mxu0 %v1159
        %1800 = vmatpush.bf16.msra.mxu0 %v1155
        %1801 = vmatmul.bf16.gmra.mxu0 %v1753
        %v1802 = vpop.f32.mrf.mxu0
        %v1803 = vadd.f32 0.0, %v1802
        %v1804 = vpop.f32.mrf.mxu0
        %1805 = vdwg.mxu0
        %1806 = vmatpush.bf16.msra.mxu0 %v1392
        %1807 = vmatpush.bf16.msra.mxu0 %v1388
        %1808 = vmatpush.bf16.msra.mxu0 %v1384
        %1809 = vmatpush.bf16.msra.mxu0 %v1380
        %1810 = vmatpush.bf16.msra.mxu0 %v1376
        %1811 = vmatpush.bf16.msra.mxu0 %v1372
        %1812 = vmatpush.bf16.msra.mxu0 %v1368
        %1813 = vmatpush.bf16.msra.mxu0 %v1364
        %1814 = vmatmul.bf16.gmra.mxu0 %v1752
        %v1815 = vpop.f32.mrf.mxu0
        %v1816 = vadd.f32 %v1764, %v1815
        %v1817 = vpop.f32.mrf.mxu0
        %1818 = vdwg.mxu0
        %1819 = vmatpush.bf16.msra.mxu0 %v1393
        %1820 = vmatpush.bf16.msra.mxu0 %v1389
        %1821 = vmatpush.bf16.msra.mxu0 %v1385
        %1822 = vmatpush.bf16.msra.mxu0 %v1381
        %1823 = vmatpush.bf16.msra.mxu0 %v1377
        %1824 = vmatpush.bf16.msra.mxu0 %v1373
        %1825 = vmatpush.bf16.msra.mxu0 %v1369
        %1826 = vmatpush.bf16.msra.mxu0 %v1365
        %1827 = vmatmul.bf16.gmra.mxu0 %v1752
        %v1828 = vpop.f32.mrf.mxu0
        %v1829 = vadd.f32 %v1777, %v1828
        %v1830 = vpop.f32.mrf.mxu0
        %1831 = vdwg.mxu0
        %1832 = vmatpush.bf16.msra.mxu0 %v1394
        %1833 = vmatpush.bf16.msra.mxu0 %v1390
        %1834 = vmatpush.bf16.msra.mxu0 %v1386
        %1835 = vmatpush.bf16.msra.mxu0 %v1382
        %1836 = vmatpush.bf16.msra.mxu0 %v1378
        %1837 = vmatpush.bf16.msra.mxu0 %v1374
        %1838 = vmatpush.bf16.msra.mxu0 %v1370
        %1839 = vmatpush.bf16.msra.mxu0 %v1366
        %1840 = vmatmul.bf16.gmra.mxu0 %v1752
        %v1841 = vpop.f32.mrf.mxu0
        %v1842 = vadd.f32 %v1790, %v1841
        %v1843 = vpop.f32.mrf.mxu0
        %1844 = vdwg.mxu0
        %1845 = vmatpush.bf16.msra.mxu0 %v1395
        %1846 = vmatpush.bf16.msra.mxu0 %v1391
        %1847 = vmatpush.bf16.msra.mxu0 %v1387
        %1848 = vmatpush.bf16.msra.mxu0 %v1383
        %1849 = vmatpush.bf16.msra.mxu0 %v1379
        %1850 = vmatpush.bf16.msra.mxu0 %v1375
        %1851 = vmatpush.bf16.msra.mxu0 %v1371
        %1852 = vmatpush.bf16.msra.mxu0 %v1367
        %1853 = vmatmul.bf16.gmra.mxu0 %v1752
        %v1854 = vpop.f32.mrf.mxu0
        %v1855 = vadd.f32 %v1803, %v1854
        %v1856 = vpop.f32.mrf.mxu0
        %1857 = vdwg.mxu0
        %v1858 = vadd.f32 %v1816, %v1481
        %v1859 = vadd.f32 %v1829, %v1482
        %v1860 = vadd.f32 %v1842, %v1483
        %v1861 = vadd.f32 %v1855, %v1484
        %v1862 = vxor.u32 %v1858, 2147483648
        %v1863 = vmul.f32 %v1862, 1.442695
        %v1864 = vpow.pop %v1863
        %v1865 = vadd.f32 %v1864, 1.0
        %v1866 = vrcp.pop %v1865
        %v1867 = vmul.f32 %v1865, %v1866
        %v1868 = vsub.f32 1.0, %v1867
        %v1869 = vmul.f32 %v1866, %v1868
        %v1870 = vadd.f32 %v1866, %v1869
        %vm1871 = vweird.f32 %v1865
        %vm1872 = vweird.f32 %v1866
        %vm1873 = vmor %vm1871, %vm1872
        %v1874 = vsel %vm1873, %v1866, %v1870
        %v1875 = vand.u32 2147483647, %v1865
        %vm1876 = vcmp.eq.f32.partialorder %v1875, 8.507059e+37
        %v1877 = vand.u32 %v1865, 2147483648
        %v1878 = vor.u32 1.1754944e-38, %v1877
        %v1879 = vsel %vm1876, %v1878, %v1874
        %v1880 = vmul.f32 1.0, %v1879
        %v1881 = vxor.u32 %v1859, 2147483648
        %v1882 = vmul.f32 %v1881, 1.442695
        %v1883 = vpow.pop %v1882
        %v1884 = vadd.f32 %v1883, 1.0
        %v1885 = vrcp.pop %v1884
        %v1886 = vmul.f32 %v1884, %v1885
        %v1887 = vsub.f32 1.0, %v1886
        %v1888 = vmul.f32 %v1885, %v1887
        %v1889 = vadd.f32 %v1885, %v1888
        %vm1890 = vweird.f32 %v1884
        %vm1891 = vweird.f32 %v1885
        %vm1892 = vmor %vm1890, %vm1891
        %v1893 = vsel %vm1892, %v1885, %v1889
        %v1894 = vand.u32 2147483647, %v1884
        %vm1895 = vcmp.eq.f32.partialorder %v1894, 8.507059e+37
        %v1896 = vand.u32 %v1884, 2147483648
        %v1897 = vor.u32 1.1754944e-38, %v1896
        %v1898 = vsel %vm1895, %v1897, %v1893
        %v1899 = vmul.f32 1.0, %v1898
        %v1900 = vxor.u32 %v1860, 2147483648
        %v1901 = vmul.f32 %v1900, 1.442695
        %v1902 = vpow.pop %v1901
        %v1903 = vadd.f32 %v1902, 1.0
        %v1904 = vrcp.pop %v1903
        %v1905 = vmul.f32 %v1903, %v1904
        %v1906 = vsub.f32 1.0, %v1905
        %v1907 = vmul.f32 %v1904, %v1906
        %v1908 = vadd.f32 %v1904, %v1907
        %vm1909 = vweird.f32 %v1903
        %vm1910 = vweird.f32 %v1904
        %vm1911 = vmor %vm1909, %vm1910
        %v1912 = vsel %vm1911, %v1904, %v1908
        %v1913 = vand.u32 2147483647, %v1903
        %vm1914 = vcmp.eq.f32.partialorder %v1913, 8.507059e+37
        %v1915 = vand.u32 %v1903, 2147483648
        %v1916 = vor.u32 1.1754944e-38, %v1915
        %v1917 = vsel %vm1914, %v1916, %v1912
        %v1918 = vmul.f32 1.0, %v1917
        %v1919 = vtanh.pop %v1861
        %v1920 = vmul.f32 %v1558, %v1880
        %v1921 = vmul.f32 %v1899, %v1919
        %v1922 = vadd.f32 %v1920, %v1921
        %v1923 = vtanh.pop %v1922
        %v1924 = vmul.f32 %v1918, %v1923
        %v1925 = vsub.f32 %v1922, %v1558
        %v1926 = vmul.f32 %v1571, %v1925
        %v1927 = vadd.f32 %v1558, %v1926
        %v1928 = vsub.f32 %v1924, %v1561
        %v1929 = vmul.f32 %v1571, %v1928
        %v1930 = vadd.f32 %v1561, %v1929
        %s1931 = scalar_lea.vmem %s449, 8 [#allocation6]
        %v1932 = vld [vmem:[%s1931] sm:$0xf]
        %v1933 = vunpack.c.l.bf16 %v1932
        %vm1934 = vcmp.ne.f32.partialorder %v1933, %v655
        %v1935 = vsel %vm1934, 1, 0
        %v1936 = vcvt.s32.f32 %v1935
        %v1937 = vsel %vm659, %v1936, 0.0
        %1938 = vadd.xlane.f32.xlu0 %v1937
        %v1939 = vpop.xlane.xlu0 %1938
        %v1940 = vmin.f32 %v1939, 1.0
        %1941 = vmatpush.bf16.msra.mxu0 %v789
        %1942 = vmatpush.bf16.msra.mxu0 %v785
        %1943 = vmatpush.bf16.msra.mxu0 %v781
        %1944 = vmatpush.bf16.msra.mxu0 %v777
        %1945 = vmatpush.bf16.msra.mxu0 %v773
        %1946 = vmatpush.bf16.msra.mxu0 %v769
        %1947 = vmatpush.bf16.msra.mxu0 %v765
        %1948 = vmatpush.bf16.msra.mxu0 %v761
        %1949 = vmatmul.bf16.gmra.mxu0 %v1752
        %v1950 = vpop.f32.mrf.mxu0
        %v1951 = vadd.f32 0.0, %v1950
        %v1952 = vpop.f32.mrf.mxu0
        %1953 = vdwg.mxu0
        %1954 = vmatpush.bf16.msra.mxu0 %v790
        %1955 = vmatpush.bf16.msra.mxu0 %v786
        %1956 = vmatpush.bf16.msra.mxu0 %v782
        %1957 = vmatpush.bf16.msra.mxu0 %v778
        %1958 = vmatpush.bf16.msra.mxu0 %v774
        %1959 = vmatpush.bf16.msra.mxu0 %v770
        %1960 = vmatpush.bf16.msra.mxu0 %v766
        %1961 = vmatpush.bf16.msra.mxu0 %v762
        %1962 = vmatmul.bf16.gmra.mxu0 %v1752
        %v1963 = vpop.f32.mrf.mxu0
        %v1964 = vadd.f32 0.0, %v1963
        %v1965 = vpop.f32.mrf.mxu0
        %1966 = vdwg.mxu0
        %1967 = vmatpush.bf16.msra.mxu0 %v791
        %1968 = vmatpush.bf16.msra.mxu0 %v787
        %1969 = vmatpush.bf16.msra.mxu0 %v783
        %1970 = vmatpush.bf16.msra.mxu0 %v779
        %1971 = vmatpush.bf16.msra.mxu0 %v775
        %1972 = vmatpush.bf16.msra.mxu0 %v771
        %1973 = vmatpush.bf16.msra.mxu0 %v767
        %1974 = vmatpush.bf16.msra.mxu0 %v763
        %1975 = vmatmul.bf16.gmra.mxu0 %v1752
        %v1976 = vpop.f32.mrf.mxu0
        %v1977 = vadd.f32 0.0, %v1976
        %v1978 = vpop.f32.mrf.mxu0
        %1979 = vdwg.mxu0
        %1980 = vmatpush.bf16.msra.mxu0 %v792
        %1981 = vmatpush.bf16.msra.mxu0 %v788
        %1982 = vmatpush.bf16.msra.mxu0 %v784
        %1983 = vmatpush.bf16.msra.mxu0 %v780
        %1984 = vmatpush.bf16.msra.mxu0 %v776
        %1985 = vmatpush.bf16.msra.mxu0 %v772
        %1986 = vmatpush.bf16.msra.mxu0 %v768
        %1987 = vmatpush.bf16.msra.mxu0 %v764
        %1988 = vmatmul.bf16.gmra.mxu0 %v1752
        %v1989 = vpop.f32.mrf.mxu0
        %v1990 = vadd.f32 0.0, %v1989
        %v1991 = vpop.f32.mrf.mxu0
        %1992 = vdwg.mxu0
        %v1994 = vsel %vm659, %v1932, 0
        %1996 = vmatpush.bf16.msra.mxu0 0
        %1997 = vmatpush.bf16.msra.mxu0 0
        %1998 = vmatpush.bf16.msra.mxu0 0
        %1999 = vmatpush.bf16.msra.mxu0 0
        %2000 = vmatpush.bf16.msra.mxu0 0
        %2001 = vmatpush.bf16.msra.mxu0 0
        %2002 = vmatpush.bf16.msra.mxu0 %v905
        %2003 = vmatpush.bf16.msra.mxu0 %v901
        %2004 = vmatmul.bf16.gmra.mxu0 %v1994
        %v2005 = vpop.f32.mrf.mxu0
        %v2006 = vadd.f32 %v1951, %v2005
        %v2007 = vpop.f32.mrf.mxu0
        %2008 = vdwg.mxu0
        %2009 = vmatpush.bf16.msra.mxu0 0
        %2010 = vmatpush.bf16.msra.mxu0 0
        %2011 = vmatpush.bf16.msra.mxu0 0
        %2012 = vmatpush.bf16.msra.mxu0 0
        %2013 = vmatpush.bf16.msra.mxu0 0
        %2014 = vmatpush.bf16.msra.mxu0 0
        %2015 = vmatpush.bf16.msra.mxu0 %v906
        %2016 = vmatpush.bf16.msra.mxu0 %v902
        %2017 = vmatmul.bf16.gmra.mxu0 %v1994
        %v2018 = vpop.f32.mrf.mxu0
        %v2019 = vadd.f32 %v1964, %v2018
        %v2020 = vpop.f32.mrf.mxu0
        %2021 = vdwg.mxu0
        %2022 = vmatpush.bf16.msra.mxu0 0
        %2023 = vmatpush.bf16.msra.mxu0 0
        %2024 = vmatpush.bf16.msra.mxu0 0
        %2025 = vmatpush.bf16.msra.mxu0 0
        %2026 = vmatpush.bf16.msra.mxu0 0
        %2027 = vmatpush.bf16.msra.mxu0 0
        %2028 = vmatpush.bf16.msra.mxu0 %v907
        %2029 = vmatpush.bf16.msra.mxu0 %v903
        %2030 = vmatmul.bf16.gmra.mxu0 %v1994
        %v2031 = vpop.f32.mrf.mxu0
        %v2032 = vadd.f32 %v1977, %v2031
        %v2033 = vpop.f32.mrf.mxu0
        %2034 = vdwg.mxu0
        %2035 = vmatpush.bf16.msra.mxu0 0
        %2036 = vmatpush.bf16.msra.mxu0 0
        %2037 = vmatpush.bf16.msra.mxu0 0
        %2038 = vmatpush.bf16.msra.mxu0 0
        %2039 = vmatpush.bf16.msra.mxu0 0
        %2040 = vmatpush.bf16.msra.mxu0 0
        %2041 = vmatpush.bf16.msra.mxu0 %v908
        %2042 = vmatpush.bf16.msra.mxu0 %v904
        %2043 = vmatmul.bf16.gmra.mxu0 %v1994
        %v2044 = vpop.f32.mrf.mxu0
        %v2045 = vadd.f32 %v1990, %v2044
        %v2046 = vpop.f32.mrf.mxu0
        %2047 = vdwg.mxu0
        %v2048 = vadd.f32 %v2006, %v973
        %v2049 = vadd.f32 %v2019, %v974
        %v2050 = vadd.f32 %v2032, %v975
        %v2051 = vadd.f32 %v2045, %v976
        %v2052 = vxor.u32 %v2048, 2147483648
        %v2053 = vmul.f32 %v2052, 1.442695
        %v2054 = vpow.pop %v2053
        %v2055 = vadd.f32 %v2054, 1.0
        %v2056 = vrcp.pop %v2055
        %v2057 = vmul.f32 %v2055, %v2056
        %v2058 = vsub.f32 1.0, %v2057
        %v2059 = vmul.f32 %v2056, %v2058
        %v2060 = vadd.f32 %v2056, %v2059
        %vm2061 = vweird.f32 %v2055
        %vm2062 = vweird.f32 %v2056
        %vm2063 = vmor %vm2061, %vm2062
        %v2064 = vsel %vm2063, %v2056, %v2060
        %v2065 = vand.u32 2147483647, %v2055
        %vm2066 = vcmp.eq.f32.partialorder %v2065, 8.507059e+37
        %v2067 = vand.u32 %v2055, 2147483648
        %v2068 = vor.u32 1.1754944e-38, %v2067
        %v2069 = vsel %vm2066, %v2068, %v2064
        %v2070 = vmul.f32 1.0, %v2069
        %v2071 = vxor.u32 %v2049, 2147483648
        %v2072 = vmul.f32 %v2071, 1.442695
        %v2073 = vpow.pop %v2072
        %v2074 = vadd.f32 %v2073, 1.0
        %v2075 = vrcp.pop %v2074
        %v2076 = vmul.f32 %v2074, %v2075
        %v2077 = vsub.f32 1.0, %v2076
        %v2078 = vmul.f32 %v2075, %v2077
        %v2079 = vadd.f32 %v2075, %v2078
        %vm2080 = vweird.f32 %v2074
        %vm2081 = vweird.f32 %v2075
        %vm2082 = vmor %vm2080, %vm2081
        %v2083 = vsel %vm2082, %v2075, %v2079
        %v2084 = vand.u32 2147483647, %v2074
        %vm2085 = vcmp.eq.f32.partialorder %v2084, 8.507059e+37
        %v2086 = vand.u32 %v2074, 2147483648
        %v2087 = vor.u32 1.1754944e-38, %v2086
        %v2088 = vsel %vm2085, %v2087, %v2083
        %v2089 = vmul.f32 1.0, %v2088
        %v2090 = vxor.u32 %v2050, 2147483648
        %v2091 = vmul.f32 %v2090, 1.442695
        %v2092 = vpow.pop %v2091
        %v2093 = vadd.f32 %v2092, 1.0
        %v2094 = vrcp.pop %v2093
        %v2095 = vmul.f32 %v2093, %v2094
        %v2096 = vsub.f32 1.0, %v2095
        %v2097 = vmul.f32 %v2094, %v2096
        %v2098 = vadd.f32 %v2094, %v2097
        %vm2099 = vweird.f32 %v2093
        %vm2100 = vweird.f32 %v2094
        %vm2101 = vmor %vm2099, %vm2100
        %v2102 = vsel %vm2101, %v2094, %v2098
        %v2103 = vand.u32 2147483647, %v2093
        %vm2104 = vcmp.eq.f32.partialorder %v2103, 8.507059e+37
        %v2105 = vand.u32 %v2093, 2147483648
        %v2106 = vor.u32 1.1754944e-38, %v2105
        %v2107 = vsel %vm2104, %v2106, %v2102
        %v2108 = vmul.f32 1.0, %v2107
        %v2109 = vtanh.pop %v2051
        %v2110 = vmul.f32 %v1748, %v2070
        %v2111 = vmul.f32 %v2089, %v2109
        %v2112 = vadd.f32 %v2110, %v2111
        %v2113 = vtanh.pop %v2112
        %v2114 = vmul.f32 %v2108, %v2113
        %v2115 = vsub.f32 %v2112, %v1748
        %v2116 = vmul.f32 %v1940, %v2115
        %v2117 = vadd.f32 %v1748, %v2116
        %v2118 = vsub.f32 %v2114, %v1751
        %v2119 = vmul.f32 %v1940, %v2118
        %v2120 = vadd.f32 %v1751, %v2119
        %v2121 = vpack.c.bf16 %v2120, %v2120
        %v2122 = vpack.c.bf16 %v1930, %v1930
        %2123 = vmatpush.bf16.msra.mxu0 %v1180
        %2124 = vmatpush.bf16.msra.mxu0 %v1176
        %2125 = vmatpush.bf16.msra.mxu0 %v1172
        %2126 = vmatpush.bf16.msra.mxu0 %v1168
        %2127 = vmatpush.bf16.msra.mxu0 %v1164
        %2128 = vmatpush.bf16.msra.mxu0 %v1160
        %2129 = vmatpush.bf16.msra.mxu0 %v1156
        %2130 = vmatpush.bf16.msra.mxu0 %v1152
        %2131 = vmatmul.bf16.gmra.mxu0 %v2122
        %v2132 = vpop.f32.mrf.mxu0
        %v2133 = vadd.f32 0.0, %v2132
        %v2134 = vpop.f32.mrf.mxu0
        %2135 = vdwg.mxu0
        %2136 = vmatpush.bf16.msra.mxu0 %v1181
        %2137 = vmatpush.bf16.msra.mxu0 %v1177
        %2138 = vmatpush.bf16.msra.mxu0 %v1173
        %2139 = vmatpush.bf16.msra.mxu0 %v1169
        %2140 = vmatpush.bf16.msra.mxu0 %v1165
        %2141 = vmatpush.bf16.msra.mxu0 %v1161
        %2142 = vmatpush.bf16.msra.mxu0 %v1157
        %2143 = vmatpush.bf16.msra.mxu0 %v1153
        %2144 = vmatmul.bf16.gmra.mxu0 %v2122
        %v2145 = vpop.f32.mrf.mxu0
        %v2146 = vadd.f32 0.0, %v2145
        %v2147 = vpop.f32.mrf.mxu0
        %2148 = vdwg.mxu0
        %2149 = vmatpush.bf16.msra.mxu0 %v1182
        %2150 = vmatpush.bf16.msra.mxu0 %v1178
        %2151 = vmatpush.bf16.msra.mxu0 %v1174
        %2152 = vmatpush.bf16.msra.mxu0 %v1170
        %2153 = vmatpush.bf16.msra.mxu0 %v1166
        %2154 = vmatpush.bf16.msra.mxu0 %v1162
        %2155 = vmatpush.bf16.msra.mxu0 %v1158
        %2156 = vmatpush.bf16.msra.mxu0 %v1154
        %2157 = vmatmul.bf16.gmra.mxu0 %v2122
        %v2158 = vpop.f32.mrf.mxu0
        %v2159 = vadd.f32 0.0, %v2158
        %v2160 = vpop.f32.mrf.mxu0
        %2161 = vdwg.mxu0
        %2162 = vmatpush.bf16.msra.mxu0 %v1183
        %2163 = vmatpush.bf16.msra.mxu0 %v1179
        %2164 = vmatpush.bf16.msra.mxu0 %v1175
        %2165 = vmatpush.bf16.msra.mxu0 %v1171
        %2166 = vmatpush.bf16.msra.mxu0 %v1167
        %2167 = vmatpush.bf16.msra.mxu0 %v1163
        %2168 = vmatpush.bf16.msra.mxu0 %v1159
        %2169 = vmatpush.bf16.msra.mxu0 %v1155
        %2170 = vmatmul.bf16.gmra.mxu0 %v2122
        %v2171 = vpop.f32.mrf.mxu0
        %v2172 = vadd.f32 0.0, %v2171
        %v2173 = vpop.f32.mrf.mxu0
        %2174 = vdwg.mxu0
        %2175 = vmatpush.bf16.msra.mxu0 %v1392
        %2176 = vmatpush.bf16.msra.mxu0 %v1388
        %2177 = vmatpush.bf16.msra.mxu0 %v1384
        %2178 = vmatpush.bf16.msra.mxu0 %v1380
        %2179 = vmatpush.bf16.msra.mxu0 %v1376
        %2180 = vmatpush.bf16.msra.mxu0 %v1372
        %2181 = vmatpush.bf16.msra.mxu0 %v1368
        %2182 = vmatpush.bf16.msra.mxu0 %v1364
        %2183 = vmatmul.bf16.gmra.mxu0 %v2121
        %v2184 = vpop.f32.mrf.mxu0
        %v2185 = vadd.f32 %v2133, %v2184
        %v2186 = vpop.f32.mrf.mxu0
        %2187 = vdwg.mxu0
        %2188 = vmatpush.bf16.msra.mxu0 %v1393
        %2189 = vmatpush.bf16.msra.mxu0 %v1389
        %2190 = vmatpush.bf16.msra.mxu0 %v1385
        %2191 = vmatpush.bf16.msra.mxu0 %v1381
        %2192 = vmatpush.bf16.msra.mxu0 %v1377
        %2193 = vmatpush.bf16.msra.mxu0 %v1373
        %2194 = vmatpush.bf16.msra.mxu0 %v1369
        %2195 = vmatpush.bf16.msra.mxu0 %v1365
        %2196 = vmatmul.bf16.gmra.mxu0 %v2121
        %v2197 = vpop.f32.mrf.mxu0
        %v2198 = vadd.f32 %v2146, %v2197
        %v2199 = vpop.f32.mrf.mxu0
        %2200 = vdwg.mxu0
        %2201 = vmatpush.bf16.msra.mxu0 %v1394
        %2202 = vmatpush.bf16.msra.mxu0 %v1390
        %2203 = vmatpush.bf16.msra.mxu0 %v1386
        %2204 = vmatpush.bf16.msra.mxu0 %v1382
        %2205 = vmatpush.bf16.msra.mxu0 %v1378
        %2206 = vmatpush.bf16.msra.mxu0 %v1374
        %2207 = vmatpush.bf16.msra.mxu0 %v1370
        %2208 = vmatpush.bf16.msra.mxu0 %v1366
        %2209 = vmatmul.bf16.gmra.mxu0 %v2121
        %v2210 = vpop.f32.mrf.mxu0
        %v2211 = vadd.f32 %v2159, %v2210
        %v2212 = vpop.f32.mrf.mxu0
        %2213 = vdwg.mxu0
        %2214 = vmatpush.bf16.msra.mxu0 %v1395
        %2215 = vmatpush.bf16.msra.mxu0 %v1391
        %2216 = vmatpush.bf16.msra.mxu0 %v1387
        %2217 = vmatpush.bf16.msra.mxu0 %v1383
        %2218 = vmatpush.bf16.msra.mxu0 %v1379
        %2219 = vmatpush.bf16.msra.mxu0 %v1375
        %2220 = vmatpush.bf16.msra.mxu0 %v1371
        %2221 = vmatpush.bf16.msra.mxu0 %v1367
        %2222 = vmatmul.bf16.gmra.mxu0 %v2121
        %v2223 = vpop.f32.mrf.mxu0
        %v2224 = vadd.f32 %v2172, %v2223
        %v2225 = vpop.f32.mrf.mxu0
        %2226 = vdwg.mxu0
        %v2227 = vadd.f32 %v2185, %v1481
        %v2228 = vadd.f32 %v2198, %v1482
        %v2229 = vadd.f32 %v2211, %v1483
        %v2230 = vadd.f32 %v2224, %v1484
        %v2231 = vxor.u32 %v2227, 2147483648
        %v2232 = vmul.f32 %v2231, 1.442695
        %v2233 = vpow.pop %v2232
        %v2234 = vadd.f32 %v2233, 1.0
        %v2235 = vrcp.pop %v2234
        %v2236 = vmul.f32 %v2234, %v2235
        %v2237 = vsub.f32 1.0, %v2236
        %v2238 = vmul.f32 %v2235, %v2237
        %v2239 = vadd.f32 %v2235, %v2238
        %vm2240 = vweird.f32 %v2234
        %vm2241 = vweird.f32 %v2235
        %vm2242 = vmor %vm2240, %vm2241
        %v2243 = vsel %vm2242, %v2235, %v2239
        %v2244 = vand.u32 2147483647, %v2234
        %vm2245 = vcmp.eq.f32.partialorder %v2244, 8.507059e+37
        %v2246 = vand.u32 %v2234, 2147483648
        %v2247 = vor.u32 1.1754944e-38, %v2246
        %v2248 = vsel %vm2245, %v2247, %v2243
        %v2249 = vmul.f32 1.0, %v2248
        %v2250 = vxor.u32 %v2228, 2147483648
        %v2251 = vmul.f32 %v2250, 1.442695
        %v2252 = vpow.pop %v2251
        %v2253 = vadd.f32 %v2252, 1.0
        %v2254 = vrcp.pop %v2253
        %v2255 = vmul.f32 %v2253, %v2254
        %v2256 = vsub.f32 1.0, %v2255
        %v2257 = vmul.f32 %v2254, %v2256
        %v2258 = vadd.f32 %v2254, %v2257
        %vm2259 = vweird.f32 %v2253
        %vm2260 = vweird.f32 %v2254
        %vm2261 = vmor %vm2259, %vm2260
        %v2262 = vsel %vm2261, %v2254, %v2258
        %v2263 = vand.u32 2147483647, %v2253
        %vm2264 = vcmp.eq.f32.partialorder %v2263, 8.507059e+37
        %v2265 = vand.u32 %v2253, 2147483648
        %v2266 = vor.u32 1.1754944e-38, %v2265
        %v2267 = vsel %vm2264, %v2266, %v2262
        %v2268 = vmul.f32 1.0, %v2267
        %v2269 = vxor.u32 %v2229, 2147483648
        %v2270 = vmul.f32 %v2269, 1.442695
        %v2271 = vpow.pop %v2270
        %v2272 = vadd.f32 %v2271, 1.0
        %v2273 = vrcp.pop %v2272
        %v2274 = vmul.f32 %v2272, %v2273
        %v2275 = vsub.f32 1.0, %v2274
        %v2276 = vmul.f32 %v2273, %v2275
        %v2277 = vadd.f32 %v2273, %v2276
        %vm2278 = vweird.f32 %v2272
        %vm2279 = vweird.f32 %v2273
        %vm2280 = vmor %vm2278, %vm2279
        %v2281 = vsel %vm2280, %v2273, %v2277
        %v2282 = vand.u32 2147483647, %v2272
        %vm2283 = vcmp.eq.f32.partialorder %v2282, 8.507059e+37
        %v2284 = vand.u32 %v2272, 2147483648
        %v2285 = vor.u32 1.1754944e-38, %v2284
        %v2286 = vsel %vm2283, %v2285, %v2281
        %v2287 = vmul.f32 1.0, %v2286
        %v2288 = vtanh.pop %v2230
        %v2289 = vmul.f32 %v1927, %v2249
        %v2290 = vmul.f32 %v2268, %v2288
        %v2291 = vadd.f32 %v2289, %v2290
        %v2292 = vtanh.pop %v2291
        %v2293 = vmul.f32 %v2287, %v2292
        %v2294 = vsub.f32 %v2291, %v1927
        %v2295 = vmul.f32 %v1940, %v2294
        %v2296 = vadd.f32 %v1927, %v2295
        %v2297 = vsub.f32 %v2293, %v1930
        %v2298 = vmul.f32 %v1940, %v2297
        %v2299 = vadd.f32 %v1930, %v2298
        %s2300 = scalar_lea.vmem %s449, 12 [#allocation6]
        %v2301 = vld [vmem:[%s2300] sm:$0xf]
        %v2302 = vunpack.c.l.bf16 %v2301
        %vm2303 = vcmp.ne.f32.partialorder %v2302, %v655
        %v2304 = vsel %vm2303, 1, 0
        %v2305 = vcvt.s32.f32 %v2304
        %v2306 = vsel %vm659, %v2305, 0.0
        %2307 = vadd.xlane.f32.xlu0 %v2306
        %v2308 = vpop.xlane.xlu0 %2307
        %v2309 = vmin.f32 %v2308, 1.0
        %2310 = vmatpush.bf16.msra.mxu0 %v789
        %2311 = vmatpush.bf16.msra.mxu0 %v785
        %2312 = vmatpush.bf16.msra.mxu0 %v781
        %2313 = vmatpush.bf16.msra.mxu0 %v777
        %2314 = vmatpush.bf16.msra.mxu0 %v773
        %2315 = vmatpush.bf16.msra.mxu0 %v769
        %2316 = vmatpush.bf16.msra.mxu0 %v765
        %2317 = vmatpush.bf16.msra.mxu0 %v761
        %2318 = vmatmul.bf16.gmra.mxu0 %v2121
        %v2319 = vpop.f32.mrf.mxu0
        %v2320 = vadd.f32 0.0, %v2319
        %v2321 = vpop.f32.mrf.mxu0
        %2322 = vdwg.mxu0
        %2323 = vmatpush.bf16.msra.mxu0 %v790
        %2324 = vmatpush.bf16.msra.mxu0 %v786
        %2325 = vmatpush.bf16.msra.mxu0 %v782
        %2326 = vmatpush.bf16.msra.mxu0 %v778
        %2327 = vmatpush.bf16.msra.mxu0 %v774
        %2328 = vmatpush.bf16.msra.mxu0 %v770
        %2329 = vmatpush.bf16.msra.mxu0 %v766
        %2330 = vmatpush.bf16.msra.mxu0 %v762
        %2331 = vmatmul.bf16.gmra.mxu0 %v2121
        %v2332 = vpop.f32.mrf.mxu0
        %v2333 = vadd.f32 0.0, %v2332
        %v2334 = vpop.f32.mrf.mxu0
        %2335 = vdwg.mxu0
        %2336 = vmatpush.bf16.msra.mxu0 %v791
        %2337 = vmatpush.bf16.msra.mxu0 %v787
        %2338 = vmatpush.bf16.msra.mxu0 %v783
        %2339 = vmatpush.bf16.msra.mxu0 %v779
        %2340 = vmatpush.bf16.msra.mxu0 %v775
        %2341 = vmatpush.bf16.msra.mxu0 %v771
        %2342 = vmatpush.bf16.msra.mxu0 %v767
        %2343 = vmatpush.bf16.msra.mxu0 %v763
        %2344 = vmatmul.bf16.gmra.mxu0 %v2121
        %v2345 = vpop.f32.mrf.mxu0
        %v2346 = vadd.f32 0.0, %v2345
        %v2347 = vpop.f32.mrf.mxu0
        %2348 = vdwg.mxu0
        %2349 = vmatpush.bf16.msra.mxu0 %v792
        %2350 = vmatpush.bf16.msra.mxu0 %v788
        %2351 = vmatpush.bf16.msra.mxu0 %v784
        %2352 = vmatpush.bf16.msra.mxu0 %v780
        %2353 = vmatpush.bf16.msra.mxu0 %v776
        %2354 = vmatpush.bf16.msra.mxu0 %v772
        %2355 = vmatpush.bf16.msra.mxu0 %v768
        %2356 = vmatpush.bf16.msra.mxu0 %v764
        %2357 = vmatmul.bf16.gmra.mxu0 %v2121
        %v2358 = vpop.f32.mrf.mxu0
        %v2359 = vadd.f32 0.0, %v2358
        %v2360 = vpop.f32.mrf.mxu0
        %2361 = vdwg.mxu0
        %v2363 = vsel %vm659, %v2301, 0
        %2365 = vmatpush.bf16.msra.mxu0 0
        %2366 = vmatpush.bf16.msra.mxu0 0
        %2367 = vmatpush.bf16.msra.mxu0 0
        %2368 = vmatpush.bf16.msra.mxu0 0
        %2369 = vmatpush.bf16.msra.mxu0 0
        %2370 = vmatpush.bf16.msra.mxu0 0
        %2371 = vmatpush.bf16.msra.mxu0 %v905
        %2372 = vmatpush.bf16.msra.mxu0 %v901
        %2373 = vmatmul.bf16.gmra.mxu0 %v2363
        %v2374 = vpop.f32.mrf.mxu0
        %v2375 = vadd.f32 %v2320, %v2374
        %v2376 = vpop.f32.mrf.mxu0
        %2377 = vdwg.mxu0
        %2378 = vmatpush.bf16.msra.mxu0 0
        %2379 = vmatpush.bf16.msra.mxu0 0
        %2380 = vmatpush.bf16.msra.mxu0 0
        %2381 = vmatpush.bf16.msra.mxu0 0
        %2382 = vmatpush.bf16.msra.mxu0 0
        %2383 = vmatpush.bf16.msra.mxu0 0
        %2384 = vmatpush.bf16.msra.mxu0 %v906
        %2385 = vmatpush.bf16.msra.mxu0 %v902
        %2386 = vmatmul.bf16.gmra.mxu0 %v2363
        %v2387 = vpop.f32.mrf.mxu0
        %v2388 = vadd.f32 %v2333, %v2387
        %v2389 = vpop.f32.mrf.mxu0
        %2390 = vdwg.mxu0
        %2391 = vmatpush.bf16.msra.mxu0 0
        %2392 = vmatpush.bf16.msra.mxu0 0
        %2393 = vmatpush.bf16.msra.mxu0 0
        %2394 = vmatpush.bf16.msra.mxu0 0
        %2395 = vmatpush.bf16.msra.mxu0 0
        %2396 = vmatpush.bf16.msra.mxu0 0
        %2397 = vmatpush.bf16.msra.mxu0 %v907
        %2398 = vmatpush.bf16.msra.mxu0 %v903
        %2399 = vmatmul.bf16.gmra.mxu0 %v2363
        %v2400 = vpop.f32.mrf.mxu0
        %v2401 = vadd.f32 %v2346, %v2400
        %v2402 = vpop.f32.mrf.mxu0
        %2403 = vdwg.mxu0
        %2404 = vmatpush.bf16.msra.mxu0 0
        %2405 = vmatpush.bf16.msra.mxu0 0
        %2406 = vmatpush.bf16.msra.mxu0 0
        %2407 = vmatpush.bf16.msra.mxu0 0
        %2408 = vmatpush.bf16.msra.mxu0 0
        %2409 = vmatpush.bf16.msra.mxu0 0
        %2410 = vmatpush.bf16.msra.mxu0 %v908
        %2411 = vmatpush.bf16.msra.mxu0 %v904
        %2412 = vmatmul.bf16.gmra.mxu0 %v2363
        %v2413 = vpop.f32.mrf.mxu0
        %v2414 = vadd.f32 %v2359, %v2413
        %v2415 = vpop.f32.mrf.mxu0
        %2416 = vdwg.mxu0
        %v2417 = vadd.f32 %v2375, %v973
        %v2418 = vadd.f32 %v2388, %v974
        %v2419 = vadd.f32 %v2401, %v975
        %v2420 = vadd.f32 %v2414, %v976
        %v2421 = vxor.u32 %v2417, 2147483648
        %v2422 = vmul.f32 %v2421, 1.442695
        %v2423 = vpow.pop %v2422
        %v2424 = vadd.f32 %v2423, 1.0
        %v2425 = vrcp.pop %v2424
        %v2426 = vmul.f32 %v2424, %v2425
        %v2427 = vsub.f32 1.0, %v2426
        %v2428 = vmul.f32 %v2425, %v2427
        %v2429 = vadd.f32 %v2425, %v2428
        %vm2430 = vweird.f32 %v2424
        %vm2431 = vweird.f32 %v2425
        %vm2432 = vmor %vm2430, %vm2431
        %v2433 = vsel %vm2432, %v2425, %v2429
        %v2434 = vand.u32 2147483647, %v2424
        %vm2435 = vcmp.eq.f32.partialorder %v2434, 8.507059e+37
        %v2436 = vand.u32 %v2424, 2147483648
        %v2437 = vor.u32 1.1754944e-38, %v2436
        %v2438 = vsel %vm2435, %v2437, %v2433
        %v2439 = vmul.f32 1.0, %v2438
        %v2440 = vxor.u32 %v2418, 2147483648
        %v2441 = vmul.f32 %v2440, 1.442695
        %v2442 = vpow.pop %v2441
        %v2443 = vadd.f32 %v2442, 1.0
        %v2444 = vrcp.pop %v2443
        %v2445 = vmul.f32 %v2443, %v2444
        %v2446 = vsub.f32 1.0, %v2445
        %v2447 = vmul.f32 %v2444, %v2446
        %v2448 = vadd.f32 %v2444, %v2447
        %vm2449 = vweird.f32 %v2443
        %vm2450 = vweird.f32 %v2444
        %vm2451 = vmor %vm2449, %vm2450
        %v2452 = vsel %vm2451, %v2444, %v2448
        %v2453 = vand.u32 2147483647, %v2443
        %vm2454 = vcmp.eq.f32.partialorder %v2453, 8.507059e+37
        %v2455 = vand.u32 %v2443, 2147483648
        %v2456 = vor.u32 1.1754944e-38, %v2455
        %v2457 = vsel %vm2454, %v2456, %v2452
        %v2458 = vmul.f32 1.0, %v2457
        %v2459 = vxor.u32 %v2419, 2147483648
        %v2460 = vmul.f32 %v2459, 1.442695
        %v2461 = vpow.pop %v2460
        %v2462 = vadd.f32 %v2461, 1.0
        %v2463 = vrcp.pop %v2462
        %v2464 = vmul.f32 %v2462, %v2463
        %v2465 = vsub.f32 1.0, %v2464
        %v2466 = vmul.f32 %v2463, %v2465
        %v2467 = vadd.f32 %v2463, %v2466
        %vm2468 = vweird.f32 %v2462
        %vm2469 = vweird.f32 %v2463
        %vm2470 = vmor %vm2468, %vm2469
        %v2471 = vsel %vm2470, %v2463, %v2467
        %v2472 = vand.u32 2147483647, %v2462
        %vm2473 = vcmp.eq.f32.partialorder %v2472, 8.507059e+37
        %v2474 = vand.u32 %v2462, 2147483648
        %v2475 = vor.u32 1.1754944e-38, %v2474
        %v2476 = vsel %vm2473, %v2475, %v2471
        %v2477 = vmul.f32 1.0, %v2476
        %v2478 = vtanh.pop %v2420
        %v2479 = vmul.f32 %v2117, %v2439
        %v2480 = vmul.f32 %v2458, %v2478
        %v2481 = vadd.f32 %v2479, %v2480
        %v2482 = vtanh.pop %v2481
        %v2483 = vmul.f32 %v2477, %v2482
        %v2484 = vsub.f32 %v2481, %v2117
        %v2485 = vmul.f32 %v2309, %v2484
        %v2486 = vadd.f32 %v2117, %v2485
        %v2487 = vsub.f32 %v2483, %v2120
        %v2488 = vmul.f32 %v2309, %v2487
        %v2489 = vadd.f32 %v2120, %v2488
        %v2490 = vpack.c.bf16 %v2489, %v2489
        %v2491 = vpack.c.bf16 %v2299, %v2299
        %2492 = vmatpush.bf16.msra.mxu0 %v1180
        %2493 = vmatpush.bf16.msra.mxu0 %v1176
        %2494 = vmatpush.bf16.msra.mxu0 %v1172
        %2495 = vmatpush.bf16.msra.mxu0 %v1168
        %2496 = vmatpush.bf16.msra.mxu0 %v1164
        %2497 = vmatpush.bf16.msra.mxu0 %v1160
        %2498 = vmatpush.bf16.msra.mxu0 %v1156
        %2499 = vmatpush.bf16.msra.mxu0 %v1152
        %2500 = vmatmul.bf16.gmra.mxu0 %v2491
        %v2501 = vpop.f32.mrf.mxu0
        %v2502 = vadd.f32 0.0, %v2501
        %v2503 = vpop.f32.mrf.mxu0
        %2504 = vdwg.mxu0
        %2505 = vmatpush.bf16.msra.mxu0 %v1181
        %2506 = vmatpush.bf16.msra.mxu0 %v1177
        %2507 = vmatpush.bf16.msra.mxu0 %v1173
        %2508 = vmatpush.bf16.msra.mxu0 %v1169
        %2509 = vmatpush.bf16.msra.mxu0 %v1165
        %2510 = vmatpush.bf16.msra.mxu0 %v1161
        %2511 = vmatpush.bf16.msra.mxu0 %v1157
        %2512 = vmatpush.bf16.msra.mxu0 %v1153
        %2513 = vmatmul.bf16.gmra.mxu0 %v2491
        %v2514 = vpop.f32.mrf.mxu0
        %v2515 = vadd.f32 0.0, %v2514
        %v2516 = vpop.f32.mrf.mxu0
        %2517 = vdwg.mxu0
        %2518 = vmatpush.bf16.msra.mxu0 %v1182
        %2519 = vmatpush.bf16.msra.mxu0 %v1178
        %2520 = vmatpush.bf16.msra.mxu0 %v1174
        %2521 = vmatpush.bf16.msra.mxu0 %v1170
        %2522 = vmatpush.bf16.msra.mxu0 %v1166
        %2523 = vmatpush.bf16.msra.mxu0 %v1162
        %2524 = vmatpush.bf16.msra.mxu0 %v1158
        %2525 = vmatpush.bf16.msra.mxu0 %v1154
        %2526 = vmatmul.bf16.gmra.mxu0 %v2491
        %v2527 = vpop.f32.mrf.mxu0
        %v2528 = vadd.f32 0.0, %v2527
        %v2529 = vpop.f32.mrf.mxu0
        %2530 = vdwg.mxu0
        %2531 = vmatpush.bf16.msra.mxu0 %v1183
        %2532 = vmatpush.bf16.msra.mxu0 %v1179
        %2533 = vmatpush.bf16.msra.mxu0 %v1175
        %2534 = vmatpush.bf16.msra.mxu0 %v1171
        %2535 = vmatpush.bf16.msra.mxu0 %v1167
        %2536 = vmatpush.bf16.msra.mxu0 %v1163
        %2537 = vmatpush.bf16.msra.mxu0 %v1159
        %2538 = vmatpush.bf16.msra.mxu0 %v1155
        %2539 = vmatmul.bf16.gmra.mxu0 %v2491
        %v2540 = vpop.f32.mrf.mxu0
        %v2541 = vadd.f32 0.0, %v2540
        %v2542 = vpop.f32.mrf.mxu0
        %2543 = vdwg.mxu0
        %2544 = vmatpush.bf16.msra.mxu0 %v1392
        %2545 = vmatpush.bf16.msra.mxu0 %v1388
        %2546 = vmatpush.bf16.msra.mxu0 %v1384
        %2547 = vmatpush.bf16.msra.mxu0 %v1380
        %2548 = vmatpush.bf16.msra.mxu0 %v1376
        %2549 = vmatpush.bf16.msra.mxu0 %v1372
        %2550 = vmatpush.bf16.msra.mxu0 %v1368
        %2551 = vmatpush.bf16.msra.mxu0 %v1364
        %2552 = vmatmul.bf16.gmra.mxu0 %v2490
        %v2553 = vpop.f32.mrf.mxu0
        %v2554 = vadd.f32 %v2502, %v2553
        %v2555 = vpop.f32.mrf.mxu0
        %2556 = vdwg.mxu0
        %2557 = vmatpush.bf16.msra.mxu0 %v1393
        %2558 = vmatpush.bf16.msra.mxu0 %v1389
        %2559 = vmatpush.bf16.msra.mxu0 %v1385
        %2560 = vmatpush.bf16.msra.mxu0 %v1381
        %2561 = vmatpush.bf16.msra.mxu0 %v1377
        %2562 = vmatpush.bf16.msra.mxu0 %v1373
        %2563 = vmatpush.bf16.msra.mxu0 %v1369
        %2564 = vmatpush.bf16.msra.mxu0 %v1365
        %2565 = vmatmul.bf16.gmra.mxu0 %v2490
        %v2566 = vpop.f32.mrf.mxu0
        %v2567 = vadd.f32 %v2515, %v2566
        %v2568 = vpop.f32.mrf.mxu0
        %2569 = vdwg.mxu0
        %2570 = vmatpush.bf16.msra.mxu0 %v1394
        %2571 = vmatpush.bf16.msra.mxu0 %v1390
        %2572 = vmatpush.bf16.msra.mxu0 %v1386
        %2573 = vmatpush.bf16.msra.mxu0 %v1382
        %2574 = vmatpush.bf16.msra.mxu0 %v1378
        %2575 = vmatpush.bf16.msra.mxu0 %v1374
        %2576 = vmatpush.bf16.msra.mxu0 %v1370
        %2577 = vmatpush.bf16.msra.mxu0 %v1366
        %2578 = vmatmul.bf16.gmra.mxu0 %v2490
        %v2579 = vpop.f32.mrf.mxu0
        %v2580 = vadd.f32 %v2528, %v2579
        %v2581 = vpop.f32.mrf.mxu0
        %2582 = vdwg.mxu0
        %2583 = vmatpush.bf16.msra.mxu0 %v1395
        %2584 = vmatpush.bf16.msra.mxu0 %v1391
        %2585 = vmatpush.bf16.msra.mxu0 %v1387
        %2586 = vmatpush.bf16.msra.mxu0 %v1383
        %2587 = vmatpush.bf16.msra.mxu0 %v1379
        %2588 = vmatpush.bf16.msra.mxu0 %v1375
        %2589 = vmatpush.bf16.msra.mxu0 %v1371
        %2590 = vmatpush.bf16.msra.mxu0 %v1367
        %2591 = vmatmul.bf16.gmra.mxu0 %v2490
        %v2592 = vpop.f32.mrf.mxu0
        %v2593 = vadd.f32 %v2541, %v2592
        %v2594 = vpop.f32.mrf.mxu0
        %2595 = vdwg.mxu0
        %v2596 = vadd.f32 %v2554, %v1481
        %v2597 = vadd.f32 %v2567, %v1482
        %v2598 = vadd.f32 %v2580, %v1483
        %v2599 = vadd.f32 %v2593, %v1484
        %v2600 = vxor.u32 %v2596, 2147483648
        %v2601 = vmul.f32 %v2600, 1.442695
        %v2602 = vpow.pop %v2601
        %v2603 = vadd.f32 %v2602, 1.0
        %v2604 = vrcp.pop %v2603
        %v2605 = vmul.f32 %v2603, %v2604
        %v2606 = vsub.f32 1.0, %v2605
        %v2607 = vmul.f32 %v2604, %v2606
        %v2608 = vadd.f32 %v2604, %v2607
        %vm2609 = vweird.f32 %v2603
        %vm2610 = vweird.f32 %v2604
        %vm2611 = vmor %vm2609, %vm2610
        %v2612 = vsel %vm2611, %v2604, %v2608
        %v2613 = vand.u32 2147483647, %v2603
        %vm2614 = vcmp.eq.f32.partialorder %v2613, 8.507059e+37
        %v2615 = vand.u32 %v2603, 2147483648
        %v2616 = vor.u32 1.1754944e-38, %v2615
        %v2617 = vsel %vm2614, %v2616, %v2612
        %v2618 = vmul.f32 1.0, %v2617
        %v2619 = vxor.u32 %v2597, 2147483648
        %v2620 = vmul.f32 %v2619, 1.442695
        %v2621 = vpow.pop %v2620
        %v2622 = vadd.f32 %v2621, 1.0
        %v2623 = vrcp.pop %v2622
        %v2624 = vmul.f32 %v2622, %v2623
        %v2625 = vsub.f32 1.0, %v2624
        %v2626 = vmul.f32 %v2623, %v2625
        %v2627 = vadd.f32 %v2623, %v2626
        %vm2628 = vweird.f32 %v2622
        %vm2629 = vweird.f32 %v2623
        %vm2630 = vmor %vm2628, %vm2629
        %v2631 = vsel %vm2630, %v2623, %v2627
        %v2632 = vand.u32 2147483647, %v2622
        %vm2633 = vcmp.eq.f32.partialorder %v2632, 8.507059e+37
        %v2634 = vand.u32 %v2622, 2147483648
        %v2635 = vor.u32 1.1754944e-38, %v2634
        %v2636 = vsel %vm2633, %v2635, %v2631
        %v2637 = vmul.f32 1.0, %v2636
        %v2638 = vxor.u32 %v2598, 2147483648
        %v2639 = vmul.f32 %v2638, 1.442695
        %v2640 = vpow.pop %v2639
        %v2641 = vadd.f32 %v2640, 1.0
        %v2642 = vrcp.pop %v2641
        %v2643 = vmul.f32 %v2641, %v2642
        %v2644 = vsub.f32 1.0, %v2643
        %v2645 = vmul.f32 %v2642, %v2644
        %v2646 = vadd.f32 %v2642, %v2645
        %vm2647 = vweird.f32 %v2641
        %vm2648 = vweird.f32 %v2642
        %vm2649 = vmor %vm2647, %vm2648
        %v2650 = vsel %vm2649, %v2642, %v2646
        %v2651 = vand.u32 2147483647, %v2641
        %vm2652 = vcmp.eq.f32.partialorder %v2651, 8.507059e+37
        %v2653 = vand.u32 %v2641, 2147483648
        %v2654 = vor.u32 1.1754944e-38, %v2653
        %v2655 = vsel %vm2652, %v2654, %v2650
        %v2656 = vmul.f32 1.0, %v2655
        %v2657 = vtanh.pop %v2599
        %v2658 = vmul.f32 %v2296, %v2618
        %v2659 = vmul.f32 %v2637, %v2657
        %v2660 = vadd.f32 %v2658, %v2659
        %v2661 = vtanh.pop %v2660
        %v2662 = vmul.f32 %v2656, %v2661
        %v2663 = vsub.f32 %v2660, %v2296
        %v2664 = vmul.f32 %v2309, %v2663
        %v2665 = vadd.f32 %v2296, %v2664
        %v2666 = vsub.f32 %v2662, %v2299
        %v2667 = vmul.f32 %v2309, %v2666
        %v2668 = vadd.f32 %v2299, %v2667
        %s2669 = scalar_lea.vmem %s449, 16 [#allocation6]
        %v2670 = vld [vmem:[%s2669] sm:$0xf]
        %v2671 = vunpack.c.l.bf16 %v2670
        %vm2672 = vcmp.ne.f32.partialorder %v2671, %v655
        %v2673 = vsel %vm2672, 1, 0
        %v2674 = vcvt.s32.f32 %v2673
        %v2675 = vsel %vm659, %v2674, 0.0
        %2676 = vadd.xlane.f32.xlu0 %v2675
        %v2677 = vpop.xlane.xlu0 %2676
        %v2678 = vmin.f32 %v2677, 1.0
        %2679 = vmatpush.bf16.msra.mxu0 %v789
        %2680 = vmatpush.bf16.msra.mxu0 %v785
        %2681 = vmatpush.bf16.msra.mxu0 %v781
        %2682 = vmatpush.bf16.msra.mxu0 %v777
        %2683 = vmatpush.bf16.msra.mxu0 %v773
        %2684 = vmatpush.bf16.msra.mxu0 %v769
        %2685 = vmatpush.bf16.msra.mxu0 %v765
        %2686 = vmatpush.bf16.msra.mxu0 %v761
        %2687 = vmatmul.bf16.gmra.mxu0 %v2490
        %v2688 = vpop.f32.mrf.mxu0
        %v2689 = vadd.f32 0.0, %v2688
        %v2690 = vpop.f32.mrf.mxu0
        %2691 = vdwg.mxu0
        %2692 = vmatpush.bf16.msra.mxu0 %v790
        %2693 = vmatpush.bf16.msra.mxu0 %v786
        %2694 = vmatpush.bf16.msra.mxu0 %v782
        %2695 = vmatpush.bf16.msra.mxu0 %v778
        %2696 = vmatpush.bf16.msra.mxu0 %v774
        %2697 = vmatpush.bf16.msra.mxu0 %v770
        %2698 = vmatpush.bf16.msra.mxu0 %v766
        %2699 = vmatpush.bf16.msra.mxu0 %v762
        %2700 = vmatmul.bf16.gmra.mxu0 %v2490
        %v2701 = vpop.f32.mrf.mxu0
        %v2702 = vadd.f32 0.0, %v2701
        %v2703 = vpop.f32.mrf.mxu0
        %2704 = vdwg.mxu0
        %2705 = vmatpush.bf16.msra.mxu0 %v791
        %2706 = vmatpush.bf16.msra.mxu0 %v787
        %2707 = vmatpush.bf16.msra.mxu0 %v783
        %2708 = vmatpush.bf16.msra.mxu0 %v779
        %2709 = vmatpush.bf16.msra.mxu0 %v775
        %2710 = vmatpush.bf16.msra.mxu0 %v771
        %2711 = vmatpush.bf16.msra.mxu0 %v767
        %2712 = vmatpush.bf16.msra.mxu0 %v763
        %2713 = vmatmul.bf16.gmra.mxu0 %v2490
        %v2714 = vpop.f32.mrf.mxu0
        %v2715 = vadd.f32 0.0, %v2714
        %v2716 = vpop.f32.mrf.mxu0
        %2717 = vdwg.mxu0
        %2718 = vmatpush.bf16.msra.mxu0 %v792
        %2719 = vmatpush.bf16.msra.mxu0 %v788
        %2720 = vmatpush.bf16.msra.mxu0 %v784
        %2721 = vmatpush.bf16.msra.mxu0 %v780
        %2722 = vmatpush.bf16.msra.mxu0 %v776
        %2723 = vmatpush.bf16.msra.mxu0 %v772
        %2724 = vmatpush.bf16.msra.mxu0 %v768
        %2725 = vmatpush.bf16.msra.mxu0 %v764
        %2726 = vmatmul.bf16.gmra.mxu0 %v2490
        %v2727 = vpop.f32.mrf.mxu0
        %v2728 = vadd.f32 0.0, %v2727
        %v2729 = vpop.f32.mrf.mxu0
        %2730 = vdwg.mxu0
        %v2732 = vsel %vm659, %v2670, 0
        %2734 = vmatpush.bf16.msra.mxu0 0
        %2735 = vmatpush.bf16.msra.mxu0 0
        %2736 = vmatpush.bf16.msra.mxu0 0
        %2737 = vmatpush.bf16.msra.mxu0 0
        %2738 = vmatpush.bf16.msra.mxu0 0
        %2739 = vmatpush.bf16.msra.mxu0 0
        %2740 = vmatpush.bf16.msra.mxu0 %v905
        %2741 = vmatpush.bf16.msra.mxu0 %v901
        %2742 = vmatmul.bf16.gmra.mxu0 %v2732
        %v2743 = vpop.f32.mrf.mxu0
        %v2744 = vadd.f32 %v2689, %v2743
        %v2745 = vpop.f32.mrf.mxu0
        %2746 = vdwg.mxu0
        %2747 = vmatpush.bf16.msra.mxu0 0
        %2748 = vmatpush.bf16.msra.mxu0 0
        %2749 = vmatpush.bf16.msra.mxu0 0
        %2750 = vmatpush.bf16.msra.mxu0 0
        %2751 = vmatpush.bf16.msra.mxu0 0
        %2752 = vmatpush.bf16.msra.mxu0 0
        %2753 = vmatpush.bf16.msra.mxu0 %v906
        %2754 = vmatpush.bf16.msra.mxu0 %v902
        %2755 = vmatmul.bf16.gmra.mxu0 %v2732
        %v2756 = vpop.f32.mrf.mxu0
        %v2757 = vadd.f32 %v2702, %v2756
        %v2758 = vpop.f32.mrf.mxu0
        %2759 = vdwg.mxu0
        %2760 = vmatpush.bf16.msra.mxu0 0
        %2761 = vmatpush.bf16.msra.mxu0 0
        %2762 = vmatpush.bf16.msra.mxu0 0
        %2763 = vmatpush.bf16.msra.mxu0 0
        %2764 = vmatpush.bf16.msra.mxu0 0
        %2765 = vmatpush.bf16.msra.mxu0 0
        %2766 = vmatpush.bf16.msra.mxu0 %v907
        %2767 = vmatpush.bf16.msra.mxu0 %v903
        %2768 = vmatmul.bf16.gmra.mxu0 %v2732
        %v2769 = vpop.f32.mrf.mxu0
        %v2770 = vadd.f32 %v2715, %v2769
        %v2771 = vpop.f32.mrf.mxu0
        %2772 = vdwg.mxu0
        %2773 = vmatpush.bf16.msra.mxu0 0
        %2774 = vmatpush.bf16.msra.mxu0 0
        %2775 = vmatpush.bf16.msra.mxu0 0
        %2776 = vmatpush.bf16.msra.mxu0 0
        %2777 = vmatpush.bf16.msra.mxu0 0
        %2778 = vmatpush.bf16.msra.mxu0 0
        %2779 = vmatpush.bf16.msra.mxu0 %v908
        %2780 = vmatpush.bf16.msra.mxu0 %v904
        %2781 = vmatmul.bf16.gmra.mxu0 %v2732
        %v2782 = vpop.f32.mrf.mxu0
        %v2783 = vadd.f32 %v2728, %v2782
        %v2784 = vpop.f32.mrf.mxu0
        %2785 = vdwg.mxu0
        %v2786 = vadd.f32 %v2744, %v973
        %v2787 = vadd.f32 %v2757, %v974
        %v2788 = vadd.f32 %v2770, %v975
        %v2789 = vadd.f32 %v2783, %v976
        %v2790 = vxor.u32 %v2786, 2147483648
        %v2791 = vmul.f32 %v2790, 1.442695
        %v2792 = vpow.pop %v2791
        %v2793 = vadd.f32 %v2792, 1.0
        %v2794 = vrcp.pop %v2793
        %v2795 = vmul.f32 %v2793, %v2794
        %v2796 = vsub.f32 1.0, %v2795
        %v2797 = vmul.f32 %v2794, %v2796
        %v2798 = vadd.f32 %v2794, %v2797
        %vm2799 = vweird.f32 %v2793
        %vm2800 = vweird.f32 %v2794
        %vm2801 = vmor %vm2799, %vm2800
        %v2802 = vsel %vm2801, %v2794, %v2798
        %v2803 = vand.u32 2147483647, %v2793
        %vm2804 = vcmp.eq.f32.partialorder %v2803, 8.507059e+37
        %v2805 = vand.u32 %v2793, 2147483648
        %v2806 = vor.u32 1.1754944e-38, %v2805
        %v2807 = vsel %vm2804, %v2806, %v2802
        %v2808 = vmul.f32 1.0, %v2807
        %v2809 = vxor.u32 %v2787, 2147483648
        %v2810 = vmul.f32 %v2809, 1.442695
        %v2811 = vpow.pop %v2810
        %v2812 = vadd.f32 %v2811, 1.0
        %v2813 = vrcp.pop %v2812
        %v2814 = vmul.f32 %v2812, %v2813
        %v2815 = vsub.f32 1.0, %v2814
        %v2816 = vmul.f32 %v2813, %v2815
        %v2817 = vadd.f32 %v2813, %v2816
        %vm2818 = vweird.f32 %v2812
        %vm2819 = vweird.f32 %v2813
        %vm2820 = vmor %vm2818, %vm2819
        %v2821 = vsel %vm2820, %v2813, %v2817
        %v2822 = vand.u32 2147483647, %v2812
        %vm2823 = vcmp.eq.f32.partialorder %v2822, 8.507059e+37
        %v2824 = vand.u32 %v2812, 2147483648
        %v2825 = vor.u32 1.1754944e-38, %v2824
        %v2826 = vsel %vm2823, %v2825, %v2821
        %v2827 = vmul.f32 1.0, %v2826
        %v2828 = vxor.u32 %v2788, 2147483648
        %v2829 = vmul.f32 %v2828, 1.442695
        %v2830 = vpow.pop %v2829
        %v2831 = vadd.f32 %v2830, 1.0
        %v2832 = vrcp.pop %v2831
        %v2833 = vmul.f32 %v2831, %v2832
        %v2834 = vsub.f32 1.0, %v2833
        %v2835 = vmul.f32 %v2832, %v2834
        %v2836 = vadd.f32 %v2832, %v2835
        %vm2837 = vweird.f32 %v2831
        %vm2838 = vweird.f32 %v2832
        %vm2839 = vmor %vm2837, %vm2838
        %v2840 = vsel %vm2839, %v2832, %v2836
        %v2841 = vand.u32 2147483647, %v2831
        %vm2842 = vcmp.eq.f32.partialorder %v2841, 8.507059e+37
        %v2843 = vand.u32 %v2831, 2147483648
        %v2844 = vor.u32 1.1754944e-38, %v2843
        %v2845 = vsel %vm2842, %v2844, %v2840
        %v2846 = vmul.f32 1.0, %v2845
        %v2847 = vtanh.pop %v2789
        %v2848 = vmul.f32 %v2486, %v2808
        %v2849 = vmul.f32 %v2827, %v2847
        %v2850 = vadd.f32 %v2848, %v2849
        %v2851 = vtanh.pop %v2850
        %v2852 = vmul.f32 %v2846, %v2851
        %v2853 = vsub.f32 %v2850, %v2486
        %v2854 = vmul.f32 %v2678, %v2853
        %v2855 = vadd.f32 %v2486, %v2854
        %v2856 = vsub.f32 %v2852, %v2489
        %v2857 = vmul.f32 %v2678, %v2856
        %v2858 = vadd.f32 %v2489, %v2857
        %v2859 = vpack.c.bf16 %v2858, %v2858
        %v2860 = vpack.c.bf16 %v2668, %v2668
        %2861 = vmatpush.bf16.msra.mxu0 %v1180
        %2862 = vmatpush.bf16.msra.mxu0 %v1176
        %2863 = vmatpush.bf16.msra.mxu0 %v1172
        %2864 = vmatpush.bf16.msra.mxu0 %v1168
        %2865 = vmatpush.bf16.msra.mxu0 %v1164
        %2866 = vmatpush.bf16.msra.mxu0 %v1160
        %2867 = vmatpush.bf16.msra.mxu0 %v1156
        %2868 = vmatpush.bf16.msra.mxu0 %v1152
        %2869 = vmatmul.bf16.gmra.mxu0 %v2860
        %v2870 = vpop.f32.mrf.mxu0
        %v2871 = vadd.f32 0.0, %v2870
        %v2872 = vpop.f32.mrf.mxu0
        %2873 = vdwg.mxu0
        %2874 = vmatpush.bf16.msra.mxu0 %v1181
        %2875 = vmatpush.bf16.msra.mxu0 %v1177
        %2876 = vmatpush.bf16.msra.mxu0 %v1173
        %2877 = vmatpush.bf16.msra.mxu0 %v1169
        %2878 = vmatpush.bf16.msra.mxu0 %v1165
        %2879 = vmatpush.bf16.msra.mxu0 %v1161
        %2880 = vmatpush.bf16.msra.mxu0 %v1157
        %2881 = vmatpush.bf16.msra.mxu0 %v1153
        %2882 = vmatmul.bf16.gmra.mxu0 %v2860
        %v2883 = vpop.f32.mrf.mxu0
        %v2884 = vadd.f32 0.0, %v2883
        %v2885 = vpop.f32.mrf.mxu0
        %2886 = vdwg.mxu0
        %2887 = vmatpush.bf16.msra.mxu0 %v1182
        %2888 = vmatpush.bf16.msra.mxu0 %v1178
        %2889 = vmatpush.bf16.msra.mxu0 %v1174
        %2890 = vmatpush.bf16.msra.mxu0 %v1170
        %2891 = vmatpush.bf16.msra.mxu0 %v1166
        %2892 = vmatpush.bf16.msra.mxu0 %v1162
        %2893 = vmatpush.bf16.msra.mxu0 %v1158
        %2894 = vmatpush.bf16.msra.mxu0 %v1154
        %2895 = vmatmul.bf16.gmra.mxu0 %v2860
        %v2896 = vpop.f32.mrf.mxu0
        %v2897 = vadd.f32 0.0, %v2896
        %v2898 = vpop.f32.mrf.mxu0
        %2899 = vdwg.mxu0
        %2900 = vmatpush.bf16.msra.mxu0 %v1183
        %2901 = vmatpush.bf16.msra.mxu0 %v1179
        %2902 = vmatpush.bf16.msra.mxu0 %v1175
        %2903 = vmatpush.bf16.msra.mxu0 %v1171
        %2904 = vmatpush.bf16.msra.mxu0 %v1167
        %2905 = vmatpush.bf16.msra.mxu0 %v1163
        %2906 = vmatpush.bf16.msra.mxu0 %v1159
        %2907 = vmatpush.bf16.msra.mxu0 %v1155
        %2908 = vmatmul.bf16.gmra.mxu0 %v2860
        %v2909 = vpop.f32.mrf.mxu0
        %v2910 = vadd.f32 0.0, %v2909
        %v2911 = vpop.f32.mrf.mxu0
        %2912 = vdwg.mxu0
        %2913 = vmatpush.bf16.msra.mxu0 %v1392
        %2914 = vmatpush.bf16.msra.mxu0 %v1388
        %2915 = vmatpush.bf16.msra.mxu0 %v1384
        %2916 = vmatpush.bf16.msra.mxu0 %v1380
        %2917 = vmatpush.bf16.msra.mxu0 %v1376
        %2918 = vmatpush.bf16.msra.mxu0 %v1372
        %2919 = vmatpush.bf16.msra.mxu0 %v1368
        %2920 = vmatpush.bf16.msra.mxu0 %v1364
        %2921 = vmatmul.bf16.gmra.mxu0 %v2859
        %v2922 = vpop.f32.mrf.mxu0
        %v2923 = vadd.f32 %v2871, %v2922
        %v2924 = vpop.f32.mrf.mxu0
        %2925 = vdwg.mxu0
        %2926 = vmatpush.bf16.msra.mxu0 %v1393
        %2927 = vmatpush.bf16.msra.mxu0 %v1389
        %2928 = vmatpush.bf16.msra.mxu0 %v1385
        %2929 = vmatpush.bf16.msra.mxu0 %v1381
        %2930 = vmatpush.bf16.msra.mxu0 %v1377
        %2931 = vmatpush.bf16.msra.mxu0 %v1373
        %2932 = vmatpush.bf16.msra.mxu0 %v1369
        %2933 = vmatpush.bf16.msra.mxu0 %v1365
        %2934 = vmatmul.bf16.gmra.mxu0 %v2859
        %v2935 = vpop.f32.mrf.mxu0
        %v2936 = vadd.f32 %v2884, %v2935
        %v2937 = vpop.f32.mrf.mxu0
        %2938 = vdwg.mxu0
        %2939 = vmatpush.bf16.msra.mxu0 %v1394
        %2940 = vmatpush.bf16.msra.mxu0 %v1390
        %2941 = vmatpush.bf16.msra.mxu0 %v1386
        %2942 = vmatpush.bf16.msra.mxu0 %v1382
        %2943 = vmatpush.bf16.msra.mxu0 %v1378
        %2944 = vmatpush.bf16.msra.mxu0 %v1374
        %2945 = vmatpush.bf16.msra.mxu0 %v1370
        %2946 = vmatpush.bf16.msra.mxu0 %v1366
        %2947 = vmatmul.bf16.gmra.mxu0 %v2859
        %v2948 = vpop.f32.mrf.mxu0
        %v2949 = vadd.f32 %v2897, %v2948
        %v2950 = vpop.f32.mrf.mxu0
        %2951 = vdwg.mxu0
        %2952 = vmatpush.bf16.msra.mxu0 %v1395
        %2953 = vmatpush.bf16.msra.mxu0 %v1391
        %2954 = vmatpush.bf16.msra.mxu0 %v1387
        %2955 = vmatpush.bf16.msra.mxu0 %v1383
        %2956 = vmatpush.bf16.msra.mxu0 %v1379
        %2957 = vmatpush.bf16.msra.mxu0 %v1375
        %2958 = vmatpush.bf16.msra.mxu0 %v1371
        %2959 = vmatpush.bf16.msra.mxu0 %v1367
        %2960 = vmatmul.bf16.gmra.mxu0 %v2859
        %v2961 = vpop.f32.mrf.mxu0
        %v2962 = vadd.f32 %v2910, %v2961
        %v2963 = vpop.f32.mrf.mxu0
        %2964 = vdwg.mxu0
        %v2965 = vadd.f32 %v2923, %v1481
        %v2966 = vadd.f32 %v2936, %v1482
        %v2967 = vadd.f32 %v2949, %v1483
        %v2968 = vadd.f32 %v2962, %v1484
        %v2969 = vxor.u32 %v2965, 2147483648
        %v2970 = vmul.f32 %v2969, 1.442695
        %v2971 = vpow.pop %v2970
        %v2972 = vadd.f32 %v2971, 1.0
        %v2973 = vrcp.pop %v2972
        %v2974 = vmul.f32 %v2972, %v2973
        %v2975 = vsub.f32 1.0, %v2974
        %v2976 = vmul.f32 %v2973, %v2975
        %v2977 = vadd.f32 %v2973, %v2976
        %vm2978 = vweird.f32 %v2972
        %vm2979 = vweird.f32 %v2973
        %vm2980 = vmor %vm2978, %vm2979
        %v2981 = vsel %vm2980, %v2973, %v2977
        %v2982 = vand.u32 2147483647, %v2972
        %vm2983 = vcmp.eq.f32.partialorder %v2982, 8.507059e+37
        %v2984 = vand.u32 %v2972, 2147483648
        %v2985 = vor.u32 1.1754944e-38, %v2984
        %v2986 = vsel %vm2983, %v2985, %v2981
        %v2987 = vmul.f32 1.0, %v2986
        %v2988 = vxor.u32 %v2966, 2147483648
        %v2989 = vmul.f32 %v2988, 1.442695
        %v2990 = vpow.pop %v2989
        %v2991 = vadd.f32 %v2990, 1.0
        %v2992 = vrcp.pop %v2991
        %v2993 = vmul.f32 %v2991, %v2992
        %v2994 = vsub.f32 1.0, %v2993
        %v2995 = vmul.f32 %v2992, %v2994
        %v2996 = vadd.f32 %v2992, %v2995
        %vm2997 = vweird.f32 %v2991
        %vm2998 = vweird.f32 %v2992
        %vm2999 = vmor %vm2997, %vm2998
        %v3000 = vsel %vm2999, %v2992, %v2996
        %v3001 = vand.u32 2147483647, %v2991
        %vm3002 = vcmp.eq.f32.partialorder %v3001, 8.507059e+37
        %v3003 = vand.u32 %v2991, 2147483648
        %v3004 = vor.u32 1.1754944e-38, %v3003
        %v3005 = vsel %vm3002, %v3004, %v3000
        %v3006 = vmul.f32 1.0, %v3005
        %v3007 = vxor.u32 %v2967, 2147483648
        %v3008 = vmul.f32 %v3007, 1.442695
        %v3009 = vpow.pop %v3008
        %v3010 = vadd.f32 %v3009, 1.0
        %v3011 = vrcp.pop %v3010
        %v3012 = vmul.f32 %v3010, %v3011
        %v3013 = vsub.f32 1.0, %v3012
        %v3014 = vmul.f32 %v3011, %v3013
        %v3015 = vadd.f32 %v3011, %v3014
        %vm3016 = vweird.f32 %v3010
        %vm3017 = vweird.f32 %v3011
        %vm3018 = vmor %vm3016, %vm3017
        %v3019 = vsel %vm3018, %v3011, %v3015
        %v3020 = vand.u32 2147483647, %v3010
        %vm3021 = vcmp.eq.f32.partialorder %v3020, 8.507059e+37
        %v3022 = vand.u32 %v3010, 2147483648
        %v3023 = vor.u32 1.1754944e-38, %v3022
        %v3024 = vsel %vm3021, %v3023, %v3019
        %v3025 = vmul.f32 1.0, %v3024
        %v3026 = vtanh.pop %v2968
        %v3027 = vmul.f32 %v2665, %v2987
        %v3028 = vmul.f32 %v3006, %v3026
        %v3029 = vadd.f32 %v3027, %v3028
        %v3030 = vtanh.pop %v3029
        %v3031 = vmul.f32 %v3025, %v3030
        %v3032 = vsub.f32 %v3029, %v2665
        %v3033 = vmul.f32 %v2678, %v3032
        %v3034 = vadd.f32 %v2665, %v3033
        %v3035 = vsub.f32 %v3031, %v2668
        %v3036 = vmul.f32 %v2678, %v3035
        %v3037 = vadd.f32 %v2668, %v3036
        %s3038 = scalar_lea.vmem %s449, 20 [#allocation6]
        %v3039 = vld [vmem:[%s3038] sm:$0xf]
        %v3040 = vunpack.c.l.bf16 %v3039
        %vm3041 = vcmp.ne.f32.partialorder %v3040, %v655
        %v3042 = vsel %vm3041, 1, 0
        %v3043 = vcvt.s32.f32 %v3042
        %v3044 = vsel %vm659, %v3043, 0.0
        %3045 = vadd.xlane.f32.xlu0 %v3044
        %v3046 = vpop.xlane.xlu0 %3045
        %v3047 = vmin.f32 %v3046, 1.0
        %3048 = vmatpush.bf16.msra.mxu0 %v789
        %3049 = vmatpush.bf16.msra.mxu0 %v785
        %3050 = vmatpush.bf16.msra.mxu0 %v781
        %3051 = vmatpush.bf16.msra.mxu0 %v777
        %3052 = vmatpush.bf16.msra.mxu0 %v773
        %3053 = vmatpush.bf16.msra.mxu0 %v769
        %3054 = vmatpush.bf16.msra.mxu0 %v765
        %3055 = vmatpush.bf16.msra.mxu0 %v761
        %3056 = vmatmul.bf16.gmra.mxu0 %v2859
        %v3057 = vpop.f32.mrf.mxu0
        %v3058 = vadd.f32 0.0, %v3057
        %v3059 = vpop.f32.mrf.mxu0
        %3060 = vdwg.mxu0
        %3061 = vmatpush.bf16.msra.mxu0 %v790
        %3062 = vmatpush.bf16.msra.mxu0 %v786
        %3063 = vmatpush.bf16.msra.mxu0 %v782
        %3064 = vmatpush.bf16.msra.mxu0 %v778
        %3065 = vmatpush.bf16.msra.mxu0 %v774
        %3066 = vmatpush.bf16.msra.mxu0 %v770
        %3067 = vmatpush.bf16.msra.mxu0 %v766
        %3068 = vmatpush.bf16.msra.mxu0 %v762
        %3069 = vmatmul.bf16.gmra.mxu0 %v2859
        %v3070 = vpop.f32.mrf.mxu0
        %v3071 = vadd.f32 0.0, %v3070
        %v3072 = vpop.f32.mrf.mxu0
        %3073 = vdwg.mxu0
        %3074 = vmatpush.bf16.msra.mxu0 %v791
        %3075 = vmatpush.bf16.msra.mxu0 %v787
        %3076 = vmatpush.bf16.msra.mxu0 %v783
        %3077 = vmatpush.bf16.msra.mxu0 %v779
        %3078 = vmatpush.bf16.msra.mxu0 %v775
        %3079 = vmatpush.bf16.msra.mxu0 %v771
        %3080 = vmatpush.bf16.msra.mxu0 %v767
        %3081 = vmatpush.bf16.msra.mxu0 %v763
        %3082 = vmatmul.bf16.gmra.mxu0 %v2859
        %v3083 = vpop.f32.mrf.mxu0
        %v3084 = vadd.f32 0.0, %v3083
        %v3085 = vpop.f32.mrf.mxu0
        %3086 = vdwg.mxu0
        %3087 = vmatpush.bf16.msra.mxu0 %v792
        %3088 = vmatpush.bf16.msra.mxu0 %v788
        %3089 = vmatpush.bf16.msra.mxu0 %v784
        %3090 = vmatpush.bf16.msra.mxu0 %v780
        %3091 = vmatpush.bf16.msra.mxu0 %v776
        %3092 = vmatpush.bf16.msra.mxu0 %v772
        %3093 = vmatpush.bf16.msra.mxu0 %v768
        %3094 = vmatpush.bf16.msra.mxu0 %v764
        %3095 = vmatmul.bf16.gmra.mxu0 %v2859
        %v3096 = vpop.f32.mrf.mxu0
        %v3097 = vadd.f32 0.0, %v3096
        %v3098 = vpop.f32.mrf.mxu0
        %3099 = vdwg.mxu0
        %v3101 = vsel %vm659, %v3039, 0
        %3103 = vmatpush.bf16.msra.mxu0 0
        %3104 = vmatpush.bf16.msra.mxu0 0
        %3105 = vmatpush.bf16.msra.mxu0 0
        %3106 = vmatpush.bf16.msra.mxu0 0
        %3107 = vmatpush.bf16.msra.mxu0 0
        %3108 = vmatpush.bf16.msra.mxu0 0
        %3109 = vmatpush.bf16.msra.mxu0 %v905
        %3110 = vmatpush.bf16.msra.mxu0 %v901
        %3111 = vmatmul.bf16.gmra.mxu0 %v3101
        %v3112 = vpop.f32.mrf.mxu0
        %v3113 = vadd.f32 %v3058, %v3112
        %v3114 = vpop.f32.mrf.mxu0
        %3115 = vdwg.mxu0
        %3116 = vmatpush.bf16.msra.mxu0 0
        %3117 = vmatpush.bf16.msra.mxu0 0
        %3118 = vmatpush.bf16.msra.mxu0 0
        %3119 = vmatpush.bf16.msra.mxu0 0
        %3120 = vmatpush.bf16.msra.mxu0 0
        %3121 = vmatpush.bf16.msra.mxu0 0
        %3122 = vmatpush.bf16.msra.mxu0 %v906
        %3123 = vmatpush.bf16.msra.mxu0 %v902
        %3124 = vmatmul.bf16.gmra.mxu0 %v3101
        %v3125 = vpop.f32.mrf.mxu0
        %v3126 = vadd.f32 %v3071, %v3125
        %v3127 = vpop.f32.mrf.mxu0
        %3128 = vdwg.mxu0
        %3129 = vmatpush.bf16.msra.mxu0 0
        %3130 = vmatpush.bf16.msra.mxu0 0
        %3131 = vmatpush.bf16.msra.mxu0 0
        %3132 = vmatpush.bf16.msra.mxu0 0
        %3133 = vmatpush.bf16.msra.mxu0 0
        %3134 = vmatpush.bf16.msra.mxu0 0
        %3135 = vmatpush.bf16.msra.mxu0 %v907
        %3136 = vmatpush.bf16.msra.mxu0 %v903
        %3137 = vmatmul.bf16.gmra.mxu0 %v3101
        %v3138 = vpop.f32.mrf.mxu0
        %v3139 = vadd.f32 %v3084, %v3138
        %v3140 = vpop.f32.mrf.mxu0
        %3141 = vdwg.mxu0
        %3142 = vmatpush.bf16.msra.mxu0 0
        %3143 = vmatpush.bf16.msra.mxu0 0
        %3144 = vmatpush.bf16.msra.mxu0 0
        %3145 = vmatpush.bf16.msra.mxu0 0
        %3146 = vmatpush.bf16.msra.mxu0 0
        %3147 = vmatpush.bf16.msra.mxu0 0
        %3148 = vmatpush.bf16.msra.mxu0 %v908
        %3149 = vmatpush.bf16.msra.mxu0 %v904
        %3150 = vmatmul.bf16.gmra.mxu0 %v3101
        %v3151 = vpop.f32.mrf.mxu0
        %v3152 = vadd.f32 %v3097, %v3151
        %v3153 = vpop.f32.mrf.mxu0
        %3154 = vdwg.mxu0
        %v3155 = vadd.f32 %v3113, %v973
        %v3156 = vadd.f32 %v3126, %v974
        %v3157 = vadd.f32 %v3139, %v975
        %v3158 = vadd.f32 %v3152, %v976
        %v3159 = vxor.u32 %v3155, 2147483648
        %v3160 = vmul.f32 %v3159, 1.442695
        %v3161 = vpow.pop %v3160
        %v3162 = vadd.f32 %v3161, 1.0
        %v3163 = vrcp.pop %v3162
        %v3164 = vmul.f32 %v3162, %v3163
        %v3165 = vsub.f32 1.0, %v3164
        %v3166 = vmul.f32 %v3163, %v3165
        %v3167 = vadd.f32 %v3163, %v3166
        %vm3168 = vweird.f32 %v3162
        %vm3169 = vweird.f32 %v3163
        %vm3170 = vmor %vm3168, %vm3169
        %v3171 = vsel %vm3170, %v3163, %v3167
        %v3172 = vand.u32 2147483647, %v3162
        %vm3173 = vcmp.eq.f32.partialorder %v3172, 8.507059e+37
        %v3174 = vand.u32 %v3162, 2147483648
        %v3175 = vor.u32 1.1754944e-38, %v3174
        %v3176 = vsel %vm3173, %v3175, %v3171
        %v3177 = vmul.f32 1.0, %v3176
        %v3178 = vxor.u32 %v3156, 2147483648
        %v3179 = vmul.f32 %v3178, 1.442695
        %v3180 = vpow.pop %v3179
        %v3181 = vadd.f32 %v3180, 1.0
        %v3182 = vrcp.pop %v3181
        %v3183 = vmul.f32 %v3181, %v3182
        %v3184 = vsub.f32 1.0, %v3183
        %v3185 = vmul.f32 %v3182, %v3184
        %v3186 = vadd.f32 %v3182, %v3185
        %vm3187 = vweird.f32 %v3181
        %vm3188 = vweird.f32 %v3182
        %vm3189 = vmor %vm3187, %vm3188
        %v3190 = vsel %vm3189, %v3182, %v3186
        %v3191 = vand.u32 2147483647, %v3181
        %vm3192 = vcmp.eq.f32.partialorder %v3191, 8.507059e+37
        %v3193 = vand.u32 %v3181, 2147483648
        %v3194 = vor.u32 1.1754944e-38, %v3193
        %v3195 = vsel %vm3192, %v3194, %v3190
        %v3196 = vmul.f32 1.0, %v3195
        %v3197 = vxor.u32 %v3157, 2147483648
        %v3198 = vmul.f32 %v3197, 1.442695
        %v3199 = vpow.pop %v3198
        %v3200 = vadd.f32 %v3199, 1.0
        %v3201 = vrcp.pop %v3200
        %v3202 = vmul.f32 %v3200, %v3201
        %v3203 = vsub.f32 1.0, %v3202
        %v3204 = vmul.f32 %v3201, %v3203
        %v3205 = vadd.f32 %v3201, %v3204
        %vm3206 = vweird.f32 %v3200
        %vm3207 = vweird.f32 %v3201
        %vm3208 = vmor %vm3206, %vm3207
        %v3209 = vsel %vm3208, %v3201, %v3205
        %v3210 = vand.u32 2147483647, %v3200
        %vm3211 = vcmp.eq.f32.partialorder %v3210, 8.507059e+37
        %v3212 = vand.u32 %v3200, 2147483648
        %v3213 = vor.u32 1.1754944e-38, %v3212
        %v3214 = vsel %vm3211, %v3213, %v3209
        %v3215 = vmul.f32 1.0, %v3214
        %v3216 = vtanh.pop %v3158
        %v3217 = vmul.f32 %v2855, %v3177
        %v3218 = vmul.f32 %v3196, %v3216
        %v3219 = vadd.f32 %v3217, %v3218
        %v3220 = vtanh.pop %v3219
        %v3221 = vmul.f32 %v3215, %v3220
        %v3222 = vsub.f32 %v3219, %v2855
        %v3223 = vmul.f32 %v3047, %v3222
        %v3224 = vadd.f32 %v2855, %v3223
        %v3225 = vsub.f32 %v3221, %v2858
        %v3226 = vmul.f32 %v3047, %v3225
        %v3227 = vadd.f32 %v2858, %v3226
        %v3228 = vpack.c.bf16 %v3227, %v3227
        %v3229 = vpack.c.bf16 %v3037, %v3037
        %3230 = vmatpush.bf16.msra.mxu0 %v1180
        %3231 = vmatpush.bf16.msra.mxu0 %v1176
        %3232 = vmatpush.bf16.msra.mxu0 %v1172
        %3233 = vmatpush.bf16.msra.mxu0 %v1168
        %3234 = vmatpush.bf16.msra.mxu0 %v1164
        %3235 = vmatpush.bf16.msra.mxu0 %v1160
        %3236 = vmatpush.bf16.msra.mxu0 %v1156
        %3237 = vmatpush.bf16.msra.mxu0 %v1152
        %3238 = vmatmul.bf16.gmra.mxu0 %v3229
        %v3239 = vpop.f32.mrf.mxu0
        %v3240 = vadd.f32 0.0, %v3239
        %v3241 = vpop.f32.mrf.mxu0
        %3242 = vdwg.mxu0
        %3243 = vmatpush.bf16.msra.mxu0 %v1181
        %3244 = vmatpush.bf16.msra.mxu0 %v1177
        %3245 = vmatpush.bf16.msra.mxu0 %v1173
        %3246 = vmatpush.bf16.msra.mxu0 %v1169
        %3247 = vmatpush.bf16.msra.mxu0 %v1165
        %3248 = vmatpush.bf16.msra.mxu0 %v1161
        %3249 = vmatpush.bf16.msra.mxu0 %v1157
        %3250 = vmatpush.bf16.msra.mxu0 %v1153
        %3251 = vmatmul.bf16.gmra.mxu0 %v3229
        %v3252 = vpop.f32.mrf.mxu0
        %v3253 = vadd.f32 0.0, %v3252
        %v3254 = vpop.f32.mrf.mxu0
        %3255 = vdwg.mxu0
        %3256 = vmatpush.bf16.msra.mxu0 %v1182
        %3257 = vmatpush.bf16.msra.mxu0 %v1178
        %3258 = vmatpush.bf16.msra.mxu0 %v1174
        %3259 = vmatpush.bf16.msra.mxu0 %v1170
        %3260 = vmatpush.bf16.msra.mxu0 %v1166
        %3261 = vmatpush.bf16.msra.mxu0 %v1162
        %3262 = vmatpush.bf16.msra.mxu0 %v1158
        %3263 = vmatpush.bf16.msra.mxu0 %v1154
        %3264 = vmatmul.bf16.gmra.mxu0 %v3229
        %v3265 = vpop.f32.mrf.mxu0
        %v3266 = vadd.f32 0.0, %v3265
        %v3267 = vpop.f32.mrf.mxu0
        %3268 = vdwg.mxu0
        %3269 = vmatpush.bf16.msra.mxu0 %v1183
        %3270 = vmatpush.bf16.msra.mxu0 %v1179
        %3271 = vmatpush.bf16.msra.mxu0 %v1175
        %3272 = vmatpush.bf16.msra.mxu0 %v1171
        %3273 = vmatpush.bf16.msra.mxu0 %v1167
        %3274 = vmatpush.bf16.msra.mxu0 %v1163
        %3275 = vmatpush.bf16.msra.mxu0 %v1159
        %3276 = vmatpush.bf16.msra.mxu0 %v1155
        %3277 = vmatmul.bf16.gmra.mxu0 %v3229
        %v3278 = vpop.f32.mrf.mxu0
        %v3279 = vadd.f32 0.0, %v3278
        %v3280 = vpop.f32.mrf.mxu0
        %3281 = vdwg.mxu0
        %3282 = vmatpush.bf16.msra.mxu0 %v1392
        %3283 = vmatpush.bf16.msra.mxu0 %v1388
        %3284 = vmatpush.bf16.msra.mxu0 %v1384
        %3285 = vmatpush.bf16.msra.mxu0 %v1380
        %3286 = vmatpush.bf16.msra.mxu0 %v1376
        %3287 = vmatpush.bf16.msra.mxu0 %v1372
        %3288 = vmatpush.bf16.msra.mxu0 %v1368
        %3289 = vmatpush.bf16.msra.mxu0 %v1364
        %3290 = vmatmul.bf16.gmra.mxu0 %v3228
        %v3291 = vpop.f32.mrf.mxu0
        %v3292 = vadd.f32 %v3240, %v3291
        %v3293 = vpop.f32.mrf.mxu0
        %3294 = vdwg.mxu0
        %3295 = vmatpush.bf16.msra.mxu0 %v1393
        %3296 = vmatpush.bf16.msra.mxu0 %v1389
        %3297 = vmatpush.bf16.msra.mxu0 %v1385
        %3298 = vmatpush.bf16.msra.mxu0 %v1381
        %3299 = vmatpush.bf16.msra.mxu0 %v1377
        %3300 = vmatpush.bf16.msra.mxu0 %v1373
        %3301 = vmatpush.bf16.msra.mxu0 %v1369
        %3302 = vmatpush.bf16.msra.mxu0 %v1365
        %3303 = vmatmul.bf16.gmra.mxu0 %v3228
        %v3304 = vpop.f32.mrf.mxu0
        %v3305 = vadd.f32 %v3253, %v3304
        %v3306 = vpop.f32.mrf.mxu0
        %3307 = vdwg.mxu0
        %3308 = vmatpush.bf16.msra.mxu0 %v1394
        %3309 = vmatpush.bf16.msra.mxu0 %v1390
        %3310 = vmatpush.bf16.msra.mxu0 %v1386
        %3311 = vmatpush.bf16.msra.mxu0 %v1382
        %3312 = vmatpush.bf16.msra.mxu0 %v1378
        %3313 = vmatpush.bf16.msra.mxu0 %v1374
        %3314 = vmatpush.bf16.msra.mxu0 %v1370
        %3315 = vmatpush.bf16.msra.mxu0 %v1366
        %3316 = vmatmul.bf16.gmra.mxu0 %v3228
        %v3317 = vpop.f32.mrf.mxu0
        %v3318 = vadd.f32 %v3266, %v3317
        %v3319 = vpop.f32.mrf.mxu0
        %3320 = vdwg.mxu0
        %3321 = vmatpush.bf16.msra.mxu0 %v1395
        %3322 = vmatpush.bf16.msra.mxu0 %v1391
        %3323 = vmatpush.bf16.msra.mxu0 %v1387
        %3324 = vmatpush.bf16.msra.mxu0 %v1383
        %3325 = vmatpush.bf16.msra.mxu0 %v1379
        %3326 = vmatpush.bf16.msra.mxu0 %v1375
        %3327 = vmatpush.bf16.msra.mxu0 %v1371
        %3328 = vmatpush.bf16.msra.mxu0 %v1367
        %3329 = vmatmul.bf16.gmra.mxu0 %v3228
        %v3330 = vpop.f32.mrf.mxu0
        %v3331 = vadd.f32 %v3279, %v3330
        %v3332 = vpop.f32.mrf.mxu0
        %3333 = vdwg.mxu0
        %v3334 = vadd.f32 %v3292, %v1481
        %v3335 = vadd.f32 %v3305, %v1482
        %v3336 = vadd.f32 %v3318, %v1483
        %v3337 = vadd.f32 %v3331, %v1484
        %v3338 = vxor.u32 %v3334, 2147483648
        %v3339 = vmul.f32 %v3338, 1.442695
        %v3340 = vpow.pop %v3339
        %v3341 = vadd.f32 %v3340, 1.0
        %v3342 = vrcp.pop %v3341
        %v3343 = vmul.f32 %v3341, %v3342
        %v3344 = vsub.f32 1.0, %v3343
        %v3345 = vmul.f32 %v3342, %v3344
        %v3346 = vadd.f32 %v3342, %v3345
        %vm3347 = vweird.f32 %v3341
        %vm3348 = vweird.f32 %v3342
        %vm3349 = vmor %vm3347, %vm3348
        %v3350 = vsel %vm3349, %v3342, %v3346
        %v3351 = vand.u32 2147483647, %v3341
        %vm3352 = vcmp.eq.f32.partialorder %v3351, 8.507059e+37
        %v3353 = vand.u32 %v3341, 2147483648
        %v3354 = vor.u32 1.1754944e-38, %v3353
        %v3355 = vsel %vm3352, %v3354, %v3350
        %v3356 = vmul.f32 1.0, %v3355
        %v3357 = vxor.u32 %v3335, 2147483648
        %v3358 = vmul.f32 %v3357, 1.442695
        %v3359 = vpow.pop %v3358
        %v3360 = vadd.f32 %v3359, 1.0
        %v3361 = vrcp.pop %v3360
        %v3362 = vmul.f32 %v3360, %v3361
        %v3363 = vsub.f32 1.0, %v3362
        %v3364 = vmul.f32 %v3361, %v3363
        %v3365 = vadd.f32 %v3361, %v3364
        %vm3366 = vweird.f32 %v3360
        %vm3367 = vweird.f32 %v3361
        %vm3368 = vmor %vm3366, %vm3367
        %v3369 = vsel %vm3368, %v3361, %v3365
        %v3370 = vand.u32 2147483647, %v3360
        %vm3371 = vcmp.eq.f32.partialorder %v3370, 8.507059e+37
        %v3372 = vand.u32 %v3360, 2147483648
        %v3373 = vor.u32 1.1754944e-38, %v3372
        %v3374 = vsel %vm3371, %v3373, %v3369
        %v3375 = vmul.f32 1.0, %v3374
        %v3376 = vxor.u32 %v3336, 2147483648
        %v3377 = vmul.f32 %v3376, 1.442695
        %v3378 = vpow.pop %v3377
        %v3379 = vadd.f32 %v3378, 1.0
        %v3380 = vrcp.pop %v3379
        %v3381 = vmul.f32 %v3379, %v3380
        %v3382 = vsub.f32 1.0, %v3381
        %v3383 = vmul.f32 %v3380, %v3382
        %v3384 = vadd.f32 %v3380, %v3383
        %vm3385 = vweird.f32 %v3379
        %vm3386 = vweird.f32 %v3380
        %vm3387 = vmor %vm3385, %vm3386
        %v3388 = vsel %vm3387, %v3380, %v3384
        %v3389 = vand.u32 2147483647, %v3379
        %vm3390 = vcmp.eq.f32.partialorder %v3389, 8.507059e+37
        %v3391 = vand.u32 %v3379, 2147483648
        %v3392 = vor.u32 1.1754944e-38, %v3391
        %v3393 = vsel %vm3390, %v3392, %v3388
        %v3394 = vmul.f32 1.0, %v3393
        %v3395 = vtanh.pop %v3337
        %v3396 = vmul.f32 %v3034, %v3356
        %v3397 = vmul.f32 %v3375, %v3395
        %v3398 = vadd.f32 %v3396, %v3397
        %v3399 = vtanh.pop %v3398
        %v3400 = vmul.f32 %v3394, %v3399
        %v3401 = vsub.f32 %v3398, %v3034
        %v3402 = vmul.f32 %v3047, %v3401
        %v3403 = vadd.f32 %v3034, %v3402
        %v3404 = vsub.f32 %v3400, %v3037
        %v3405 = vmul.f32 %v3047, %v3404
        %v3406 = vadd.f32 %v3037, %v3405
        %s3407 = scalar_lea.vmem %s449, 24 [#allocation6]
        %v3408 = vld [vmem:[%s3407] sm:$0xf]
        %v3409 = vunpack.c.l.bf16 %v3408
        %vm3410 = vcmp.ne.f32.partialorder %v3409, %v655
        %v3411 = vsel %vm3410, 1, 0
        %v3412 = vcvt.s32.f32 %v3411
        %v3413 = vsel %vm659, %v3412, 0.0
        %3414 = vadd.xlane.f32.xlu0 %v3413
        %v3415 = vpop.xlane.xlu0 %3414
        %v3416 = vmin.f32 %v3415, 1.0
        %3417 = vmatpush.bf16.msra.mxu0 %v789
        %3418 = vmatpush.bf16.msra.mxu0 %v785
        %3419 = vmatpush.bf16.msra.mxu0 %v781
        %3420 = vmatpush.bf16.msra.mxu0 %v777
        %3421 = vmatpush.bf16.msra.mxu0 %v773
        %3422 = vmatpush.bf16.msra.mxu0 %v769
        %3423 = vmatpush.bf16.msra.mxu0 %v765
        %3424 = vmatpush.bf16.msra.mxu0 %v761
        %3425 = vmatmul.bf16.gmra.mxu0 %v3228
        %v3426 = vpop.f32.mrf.mxu0
        %v3427 = vadd.f32 0.0, %v3426
        %v3428 = vpop.f32.mrf.mxu0
        %3429 = vdwg.mxu0
        %3430 = vmatpush.bf16.msra.mxu0 %v790
        %3431 = vmatpush.bf16.msra.mxu0 %v786
        %3432 = vmatpush.bf16.msra.mxu0 %v782
        %3433 = vmatpush.bf16.msra.mxu0 %v778
        %3434 = vmatpush.bf16.msra.mxu0 %v774
        %3435 = vmatpush.bf16.msra.mxu0 %v770
        %3436 = vmatpush.bf16.msra.mxu0 %v766
        %3437 = vmatpush.bf16.msra.mxu0 %v762
        %3438 = vmatmul.bf16.gmra.mxu0 %v3228
        %v3439 = vpop.f32.mrf.mxu0
        %v3440 = vadd.f32 0.0, %v3439
        %v3441 = vpop.f32.mrf.mxu0
        %3442 = vdwg.mxu0
        %3443 = vmatpush.bf16.msra.mxu0 %v791
        %3444 = vmatpush.bf16.msra.mxu0 %v787
        %3445 = vmatpush.bf16.msra.mxu0 %v783
        %3446 = vmatpush.bf16.msra.mxu0 %v779
        %3447 = vmatpush.bf16.msra.mxu0 %v775
        %3448 = vmatpush.bf16.msra.mxu0 %v771
        %3449 = vmatpush.bf16.msra.mxu0 %v767
        %3450 = vmatpush.bf16.msra.mxu0 %v763
        %3451 = vmatmul.bf16.gmra.mxu0 %v3228
        %v3452 = vpop.f32.mrf.mxu0
        %v3453 = vadd.f32 0.0, %v3452
        %v3454 = vpop.f32.mrf.mxu0
        %3455 = vdwg.mxu0
        %3456 = vmatpush.bf16.msra.mxu0 %v792
        %3457 = vmatpush.bf16.msra.mxu0 %v788
        %3458 = vmatpush.bf16.msra.mxu0 %v784
        %3459 = vmatpush.bf16.msra.mxu0 %v780
        %3460 = vmatpush.bf16.msra.mxu0 %v776
        %3461 = vmatpush.bf16.msra.mxu0 %v772
        %3462 = vmatpush.bf16.msra.mxu0 %v768
        %3463 = vmatpush.bf16.msra.mxu0 %v764
        %3464 = vmatmul.bf16.gmra.mxu0 %v3228
        %v3465 = vpop.f32.mrf.mxu0
        %v3466 = vadd.f32 0.0, %v3465
        %v3467 = vpop.f32.mrf.mxu0
        %3468 = vdwg.mxu0
        %v3470 = vsel %vm659, %v3408, 0
        %3472 = vmatpush.bf16.msra.mxu0 0
        %3473 = vmatpush.bf16.msra.mxu0 0
        %3474 = vmatpush.bf16.msra.mxu0 0
        %3475 = vmatpush.bf16.msra.mxu0 0
        %3476 = vmatpush.bf16.msra.mxu0 0
        %3477 = vmatpush.bf16.msra.mxu0 0
        %3478 = vmatpush.bf16.msra.mxu0 %v905
        %3479 = vmatpush.bf16.msra.mxu0 %v901
        %3480 = vmatmul.bf16.gmra.mxu0 %v3470
        %v3481 = vpop.f32.mrf.mxu0
        %v3482 = vadd.f32 %v3427, %v3481
        %v3483 = vpop.f32.mrf.mxu0
        %3484 = vdwg.mxu0
        %3485 = vmatpush.bf16.msra.mxu0 0
        %3486 = vmatpush.bf16.msra.mxu0 0
        %3487 = vmatpush.bf16.msra.mxu0 0
        %3488 = vmatpush.bf16.msra.mxu0 0
        %3489 = vmatpush.bf16.msra.mxu0 0
        %3490 = vmatpush.bf16.msra.mxu0 0
        %3491 = vmatpush.bf16.msra.mxu0 %v906
        %3492 = vmatpush.bf16.msra.mxu0 %v902
        %3493 = vmatmul.bf16.gmra.mxu0 %v3470
        %v3494 = vpop.f32.mrf.mxu0
        %v3495 = vadd.f32 %v3440, %v3494
        %v3496 = vpop.f32.mrf.mxu0
        %3497 = vdwg.mxu0
        %3498 = vmatpush.bf16.msra.mxu0 0
        %3499 = vmatpush.bf16.msra.mxu0 0
        %3500 = vmatpush.bf16.msra.mxu0 0
        %3501 = vmatpush.bf16.msra.mxu0 0
        %3502 = vmatpush.bf16.msra.mxu0 0
        %3503 = vmatpush.bf16.msra.mxu0 0
        %3504 = vmatpush.bf16.msra.mxu0 %v907
        %3505 = vmatpush.bf16.msra.mxu0 %v903
        %3506 = vmatmul.bf16.gmra.mxu0 %v3470
        %v3507 = vpop.f32.mrf.mxu0
        %v3508 = vadd.f32 %v3453, %v3507
        %v3509 = vpop.f32.mrf.mxu0
        %3510 = vdwg.mxu0
        %3511 = vmatpush.bf16.msra.mxu0 0
        %3512 = vmatpush.bf16.msra.mxu0 0
        %3513 = vmatpush.bf16.msra.mxu0 0
        %3514 = vmatpush.bf16.msra.mxu0 0
        %3515 = vmatpush.bf16.msra.mxu0 0
        %3516 = vmatpush.bf16.msra.mxu0 0
        %3517 = vmatpush.bf16.msra.mxu0 %v908
        %3518 = vmatpush.bf16.msra.mxu0 %v904
        %3519 = vmatmul.bf16.gmra.mxu0 %v3470
        %v3520 = vpop.f32.mrf.mxu0
        %v3521 = vadd.f32 %v3466, %v3520
        %v3522 = vpop.f32.mrf.mxu0
        %3523 = vdwg.mxu0
        %v3524 = vadd.f32 %v3482, %v973
        %v3525 = vadd.f32 %v3495, %v974
        %v3526 = vadd.f32 %v3508, %v975
        %v3527 = vadd.f32 %v3521, %v976
        %v3528 = vxor.u32 %v3524, 2147483648
        %v3529 = vmul.f32 %v3528, 1.442695
        %v3530 = vpow.pop %v3529
        %v3531 = vadd.f32 %v3530, 1.0
        %v3532 = vrcp.pop %v3531
        %v3533 = vmul.f32 %v3531, %v3532
        %v3534 = vsub.f32 1.0, %v3533
        %v3535 = vmul.f32 %v3532, %v3534
        %v3536 = vadd.f32 %v3532, %v3535
        %vm3537 = vweird.f32 %v3531
        %vm3538 = vweird.f32 %v3532
        %vm3539 = vmor %vm3537, %vm3538
        %v3540 = vsel %vm3539, %v3532, %v3536
        %v3541 = vand.u32 2147483647, %v3531
        %vm3542 = vcmp.eq.f32.partialorder %v3541, 8.507059e+37
        %v3543 = vand.u32 %v3531, 2147483648
        %v3544 = vor.u32 1.1754944e-38, %v3543
        %v3545 = vsel %vm3542, %v3544, %v3540
        %v3546 = vmul.f32 1.0, %v3545
        %v3547 = vxor.u32 %v3525, 2147483648
        %v3548 = vmul.f32 %v3547, 1.442695
        %v3549 = vpow.pop %v3548
        %v3550 = vadd.f32 %v3549, 1.0
        %v3551 = vrcp.pop %v3550
        %v3552 = vmul.f32 %v3550, %v3551
        %v3553 = vsub.f32 1.0, %v3552
        %v3554 = vmul.f32 %v3551, %v3553
        %v3555 = vadd.f32 %v3551, %v3554
        %vm3556 = vweird.f32 %v3550
        %vm3557 = vweird.f32 %v3551
        %vm3558 = vmor %vm3556, %vm3557
        %v3559 = vsel %vm3558, %v3551, %v3555
        %v3560 = vand.u32 2147483647, %v3550
        %vm3561 = vcmp.eq.f32.partialorder %v3560, 8.507059e+37
        %v3562 = vand.u32 %v3550, 2147483648
        %v3563 = vor.u32 1.1754944e-38, %v3562
        %v3564 = vsel %vm3561, %v3563, %v3559
        %v3565 = vmul.f32 1.0, %v3564
        %v3566 = vxor.u32 %v3526, 2147483648
        %v3567 = vmul.f32 %v3566, 1.442695
        %v3568 = vpow.pop %v3567
        %v3569 = vadd.f32 %v3568, 1.0
        %v3570 = vrcp.pop %v3569
        %v3571 = vmul.f32 %v3569, %v3570
        %v3572 = vsub.f32 1.0, %v3571
        %v3573 = vmul.f32 %v3570, %v3572
        %v3574 = vadd.f32 %v3570, %v3573
        %vm3575 = vweird.f32 %v3569
        %vm3576 = vweird.f32 %v3570
        %vm3577 = vmor %vm3575, %vm3576
        %v3578 = vsel %vm3577, %v3570, %v3574
        %v3579 = vand.u32 2147483647, %v3569
        %vm3580 = vcmp.eq.f32.partialorder %v3579, 8.507059e+37
        %v3581 = vand.u32 %v3569, 2147483648
        %v3582 = vor.u32 1.1754944e-38, %v3581
        %v3583 = vsel %vm3580, %v3582, %v3578
        %v3584 = vmul.f32 1.0, %v3583
        %v3585 = vtanh.pop %v3527
        %v3586 = vmul.f32 %v3224, %v3546
        %v3587 = vmul.f32 %v3565, %v3585
        %v3588 = vadd.f32 %v3586, %v3587
        %v3589 = vtanh.pop %v3588
        %v3590 = vmul.f32 %v3584, %v3589
        %v3591 = vsub.f32 %v3588, %v3224
        %v3592 = vmul.f32 %v3416, %v3591
        %v3593 = vadd.f32 %v3224, %v3592
        %v3594 = vsub.f32 %v3590, %v3227
        %v3595 = vmul.f32 %v3416, %v3594
        %v3596 = vadd.f32 %v3227, %v3595
        %v3597 = vpack.c.bf16 %v3596, %v3596
        %v3598 = vpack.c.bf16 %v3406, %v3406
        %3599 = vmatpush.bf16.msra.mxu0 %v1180
        %3600 = vmatpush.bf16.msra.mxu0 %v1176
        %3601 = vmatpush.bf16.msra.mxu0 %v1172
        %3602 = vmatpush.bf16.msra.mxu0 %v1168
        %3603 = vmatpush.bf16.msra.mxu0 %v1164
        %3604 = vmatpush.bf16.msra.mxu0 %v1160
        %3605 = vmatpush.bf16.msra.mxu0 %v1156
        %3606 = vmatpush.bf16.msra.mxu0 %v1152
        %3607 = vmatmul.bf16.gmra.mxu0 %v3598
        %v3608 = vpop.f32.mrf.mxu0
        %v3609 = vadd.f32 0.0, %v3608
        %v3610 = vpop.f32.mrf.mxu0
        %3611 = vdwg.mxu0
        %3612 = vmatpush.bf16.msra.mxu0 %v1181
        %3613 = vmatpush.bf16.msra.mxu0 %v1177
        %3614 = vmatpush.bf16.msra.mxu0 %v1173
        %3615 = vmatpush.bf16.msra.mxu0 %v1169
        %3616 = vmatpush.bf16.msra.mxu0 %v1165
        %3617 = vmatpush.bf16.msra.mxu0 %v1161
        %3618 = vmatpush.bf16.msra.mxu0 %v1157
        %3619 = vmatpush.bf16.msra.mxu0 %v1153
        %3620 = vmatmul.bf16.gmra.mxu0 %v3598
        %v3621 = vpop.f32.mrf.mxu0
        %v3622 = vadd.f32 0.0, %v3621
        %v3623 = vpop.f32.mrf.mxu0
        %3624 = vdwg.mxu0
        %3625 = vmatpush.bf16.msra.mxu0 %v1182
        %3626 = vmatpush.bf16.msra.mxu0 %v1178
        %3627 = vmatpush.bf16.msra.mxu0 %v1174
        %3628 = vmatpush.bf16.msra.mxu0 %v1170
        %3629 = vmatpush.bf16.msra.mxu0 %v1166
        %3630 = vmatpush.bf16.msra.mxu0 %v1162
        %3631 = vmatpush.bf16.msra.mxu0 %v1158
        %3632 = vmatpush.bf16.msra.mxu0 %v1154
        %3633 = vmatmul.bf16.gmra.mxu0 %v3598
        %v3634 = vpop.f32.mrf.mxu0
        %v3635 = vadd.f32 0.0, %v3634
        %v3636 = vpop.f32.mrf.mxu0
        %3637 = vdwg.mxu0
        %3638 = vmatpush.bf16.msra.mxu0 %v1183
        %3639 = vmatpush.bf16.msra.mxu0 %v1179
        %3640 = vmatpush.bf16.msra.mxu0 %v1175
        %3641 = vmatpush.bf16.msra.mxu0 %v1171
        %3642 = vmatpush.bf16.msra.mxu0 %v1167
        %3643 = vmatpush.bf16.msra.mxu0 %v1163
        %3644 = vmatpush.bf16.msra.mxu0 %v1159
        %3645 = vmatpush.bf16.msra.mxu0 %v1155
        %3646 = vmatmul.bf16.gmra.mxu0 %v3598
        %v3647 = vpop.f32.mrf.mxu0
        %v3648 = vadd.f32 0.0, %v3647
        %v3649 = vpop.f32.mrf.mxu0
        %3650 = vdwg.mxu0
        %3651 = vmatpush.bf16.msra.mxu0 %v1392
        %3652 = vmatpush.bf16.msra.mxu0 %v1388
        %3653 = vmatpush.bf16.msra.mxu0 %v1384
        %3654 = vmatpush.bf16.msra.mxu0 %v1380
        %3655 = vmatpush.bf16.msra.mxu0 %v1376
        %3656 = vmatpush.bf16.msra.mxu0 %v1372
        %3657 = vmatpush.bf16.msra.mxu0 %v1368
        %3658 = vmatpush.bf16.msra.mxu0 %v1364
        %3659 = vmatmul.bf16.gmra.mxu0 %v3597
        %v3660 = vpop.f32.mrf.mxu0
        %v3661 = vadd.f32 %v3609, %v3660
        %v3662 = vpop.f32.mrf.mxu0
        %3663 = vdwg.mxu0
        %3664 = vmatpush.bf16.msra.mxu0 %v1393
        %3665 = vmatpush.bf16.msra.mxu0 %v1389
        %3666 = vmatpush.bf16.msra.mxu0 %v1385
        %3667 = vmatpush.bf16.msra.mxu0 %v1381
        %3668 = vmatpush.bf16.msra.mxu0 %v1377
        %3669 = vmatpush.bf16.msra.mxu0 %v1373
        %3670 = vmatpush.bf16.msra.mxu0 %v1369
        %3671 = vmatpush.bf16.msra.mxu0 %v1365
        %3672 = vmatmul.bf16.gmra.mxu0 %v3597
        %v3673 = vpop.f32.mrf.mxu0
        %v3674 = vadd.f32 %v3622, %v3673
        %v3675 = vpop.f32.mrf.mxu0
        %3676 = vdwg.mxu0
        %3677 = vmatpush.bf16.msra.mxu0 %v1394
        %3678 = vmatpush.bf16.msra.mxu0 %v1390
        %3679 = vmatpush.bf16.msra.mxu0 %v1386
        %3680 = vmatpush.bf16.msra.mxu0 %v1382
        %3681 = vmatpush.bf16.msra.mxu0 %v1378
        %3682 = vmatpush.bf16.msra.mxu0 %v1374
        %3683 = vmatpush.bf16.msra.mxu0 %v1370
        %3684 = vmatpush.bf16.msra.mxu0 %v1366
        %3685 = vmatmul.bf16.gmra.mxu0 %v3597
        %v3686 = vpop.f32.mrf.mxu0
        %v3687 = vadd.f32 %v3635, %v3686
        %v3688 = vpop.f32.mrf.mxu0
        %3689 = vdwg.mxu0
        %3690 = vmatpush.bf16.msra.mxu0 %v1395
        %3691 = vmatpush.bf16.msra.mxu0 %v1391
        %3692 = vmatpush.bf16.msra.mxu0 %v1387
        %3693 = vmatpush.bf16.msra.mxu0 %v1383
        %3694 = vmatpush.bf16.msra.mxu0 %v1379
        %3695 = vmatpush.bf16.msra.mxu0 %v1375
        %3696 = vmatpush.bf16.msra.mxu0 %v1371
        %3697 = vmatpush.bf16.msra.mxu0 %v1367
        %3698 = vmatmul.bf16.gmra.mxu0 %v3597
        %v3699 = vpop.f32.mrf.mxu0
        %v3700 = vadd.f32 %v3648, %v3699
        %v3701 = vpop.f32.mrf.mxu0
        %3702 = vdwg.mxu0
        %v3703 = vadd.f32 %v3661, %v1481
        %v3704 = vadd.f32 %v3674, %v1482
        %v3705 = vadd.f32 %v3687, %v1483
        %v3706 = vadd.f32 %v3700, %v1484
        %v3707 = vxor.u32 %v3703, 2147483648
        %v3708 = vmul.f32 %v3707, 1.442695
        %v3709 = vpow.pop %v3708
        %v3710 = vadd.f32 %v3709, 1.0
        %v3711 = vrcp.pop %v3710
        %v3712 = vmul.f32 %v3710, %v3711
        %v3713 = vsub.f32 1.0, %v3712
        %v3714 = vmul.f32 %v3711, %v3713
        %v3715 = vadd.f32 %v3711, %v3714
        %vm3716 = vweird.f32 %v3710
        %vm3717 = vweird.f32 %v3711
        %vm3718 = vmor %vm3716, %vm3717
        %v3719 = vsel %vm3718, %v3711, %v3715
        %v3720 = vand.u32 2147483647, %v3710
        %vm3721 = vcmp.eq.f32.partialorder %v3720, 8.507059e+37
        %v3722 = vand.u32 %v3710, 2147483648
        %v3723 = vor.u32 1.1754944e-38, %v3722
        %v3724 = vsel %vm3721, %v3723, %v3719
        %v3725 = vmul.f32 1.0, %v3724
        %v3726 = vxor.u32 %v3704, 2147483648
        %v3727 = vmul.f32 %v3726, 1.442695
        %v3728 = vpow.pop %v3727
        %v3729 = vadd.f32 %v3728, 1.0
        %v3730 = vrcp.pop %v3729
        %v3731 = vmul.f32 %v3729, %v3730
        %v3732 = vsub.f32 1.0, %v3731
        %v3733 = vmul.f32 %v3730, %v3732
        %v3734 = vadd.f32 %v3730, %v3733
        %vm3735 = vweird.f32 %v3729
        %vm3736 = vweird.f32 %v3730
        %vm3737 = vmor %vm3735, %vm3736
        %v3738 = vsel %vm3737, %v3730, %v3734
        %v3739 = vand.u32 2147483647, %v3729
        %vm3740 = vcmp.eq.f32.partialorder %v3739, 8.507059e+37
        %v3741 = vand.u32 %v3729, 2147483648
        %v3742 = vor.u32 1.1754944e-38, %v3741
        %v3743 = vsel %vm3740, %v3742, %v3738
        %v3744 = vmul.f32 1.0, %v3743
        %v3745 = vxor.u32 %v3705, 2147483648
        %v3746 = vmul.f32 %v3745, 1.442695
        %v3747 = vpow.pop %v3746
        %v3748 = vadd.f32 %v3747, 1.0
        %v3749 = vrcp.pop %v3748
        %v3750 = vmul.f32 %v3748, %v3749
        %v3751 = vsub.f32 1.0, %v3750
        %v3752 = vmul.f32 %v3749, %v3751
        %v3753 = vadd.f32 %v3749, %v3752
        %vm3754 = vweird.f32 %v3748
        %vm3755 = vweird.f32 %v3749
        %vm3756 = vmor %vm3754, %vm3755
        %v3757 = vsel %vm3756, %v3749, %v3753
        %v3758 = vand.u32 2147483647, %v3748
        %vm3759 = vcmp.eq.f32.partialorder %v3758, 8.507059e+37
        %v3760 = vand.u32 %v3748, 2147483648
        %v3761 = vor.u32 1.1754944e-38, %v3760
        %v3762 = vsel %vm3759, %v3761, %v3757
        %v3763 = vmul.f32 1.0, %v3762
        %v3764 = vtanh.pop %v3706
        %v3765 = vmul.f32 %v3403, %v3725
        %v3766 = vmul.f32 %v3744, %v3764
        %v3767 = vadd.f32 %v3765, %v3766
        %v3768 = vtanh.pop %v3767
        %v3769 = vmul.f32 %v3763, %v3768
        %v3770 = vsub.f32 %v3767, %v3403
        %v3771 = vmul.f32 %v3416, %v3770
        %v3772 = vadd.f32 %v3403, %v3771
        %v3773 = vsub.f32 %v3769, %v3406
        %v3774 = vmul.f32 %v3416, %v3773
        %v3775 = vadd.f32 %v3406, %v3774
        %s3776 = scalar_lea.vmem %s449, 28 [#allocation6]
        %v3777 = vld [vmem:[%s3776] sm:$0xf]
        %v3778 = vunpack.c.l.bf16 %v3777
        %vm3779 = vcmp.ne.f32.partialorder %v3778, %v655
        %v3780 = vsel %vm3779, 1, 0
        %v3781 = vcvt.s32.f32 %v3780
        %v3782 = vsel %vm659, %v3781, 0.0
        %3783 = vadd.xlane.f32.xlu0 %v3782
        %v3784 = vpop.xlane.xlu0 %3783
        %v3785 = vmin.f32 %v3784, 1.0
        %3786 = vmatpush.bf16.msra.mxu0 %v789
        %3787 = vmatpush.bf16.msra.mxu0 %v785
        %3788 = vmatpush.bf16.msra.mxu0 %v781
        %3789 = vmatpush.bf16.msra.mxu0 %v777
        %3790 = vmatpush.bf16.msra.mxu0 %v773
        %3791 = vmatpush.bf16.msra.mxu0 %v769
        %3792 = vmatpush.bf16.msra.mxu0 %v765
        %3793 = vmatpush.bf16.msra.mxu0 %v761
        %3794 = vmatmul.bf16.gmra.mxu0 %v3597
        %v3795 = vpop.f32.mrf.mxu0
        %v3796 = vadd.f32 0.0, %v3795
        %v3797 = vpop.f32.mrf.mxu0
        %3798 = vdwg.mxu0
        %3799 = vmatpush.bf16.msra.mxu0 %v790
        %3800 = vmatpush.bf16.msra.mxu0 %v786
        %3801 = vmatpush.bf16.msra.mxu0 %v782
        %3802 = vmatpush.bf16.msra.mxu0 %v778
        %3803 = vmatpush.bf16.msra.mxu0 %v774
        %3804 = vmatpush.bf16.msra.mxu0 %v770
        %3805 = vmatpush.bf16.msra.mxu0 %v766
        %3806 = vmatpush.bf16.msra.mxu0 %v762
        %3807 = vmatmul.bf16.gmra.mxu0 %v3597
        %v3808 = vpop.f32.mrf.mxu0
        %v3809 = vadd.f32 0.0, %v3808
        %v3810 = vpop.f32.mrf.mxu0
        %3811 = vdwg.mxu0
        %3812 = vmatpush.bf16.msra.mxu0 %v791
        %3813 = vmatpush.bf16.msra.mxu0 %v787
        %3814 = vmatpush.bf16.msra.mxu0 %v783
        %3815 = vmatpush.bf16.msra.mxu0 %v779
        %3816 = vmatpush.bf16.msra.mxu0 %v775
        %3817 = vmatpush.bf16.msra.mxu0 %v771
        %3818 = vmatpush.bf16.msra.mxu0 %v767
        %3819 = vmatpush.bf16.msra.mxu0 %v763
        %3820 = vmatmul.bf16.gmra.mxu0 %v3597
        %v3821 = vpop.f32.mrf.mxu0
        %v3822 = vadd.f32 0.0, %v3821
        %v3823 = vpop.f32.mrf.mxu0
        %3824 = vdwg.mxu0
        %3825 = vmatpush.bf16.msra.mxu0 %v792
        %3826 = vmatpush.bf16.msra.mxu0 %v788
        %3827 = vmatpush.bf16.msra.mxu0 %v784
        %3828 = vmatpush.bf16.msra.mxu0 %v780
        %3829 = vmatpush.bf16.msra.mxu0 %v776
        %3830 = vmatpush.bf16.msra.mxu0 %v772
        %3831 = vmatpush.bf16.msra.mxu0 %v768
        %3832 = vmatpush.bf16.msra.mxu0 %v764
        %3833 = vmatmul.bf16.gmra.mxu0 %v3597
        %v3834 = vpop.f32.mrf.mxu0
        %v3835 = vadd.f32 0.0, %v3834
        %v3836 = vpop.f32.mrf.mxu0
        %3837 = vdwg.mxu0
        %v3839 = vsel %vm659, %v3777, 0
        %3841 = vmatpush.bf16.msra.mxu0 0
        %3842 = vmatpush.bf16.msra.mxu0 0
        %3843 = vmatpush.bf16.msra.mxu0 0
        %3844 = vmatpush.bf16.msra.mxu0 0
        %3845 = vmatpush.bf16.msra.mxu0 0
        %3846 = vmatpush.bf16.msra.mxu0 0
        %3847 = vmatpush.bf16.msra.mxu0 %v905
        %3848 = vmatpush.bf16.msra.mxu0 %v901
        %3849 = vmatmul.bf16.gmra.mxu0 %v3839
        %v3850 = vpop.f32.mrf.mxu0
        %v3851 = vadd.f32 %v3796, %v3850
        %v3852 = vpop.f32.mrf.mxu0
        %3853 = vdwg.mxu0
        %3854 = vmatpush.bf16.msra.mxu0 0
        %3855 = vmatpush.bf16.msra.mxu0 0
        %3856 = vmatpush.bf16.msra.mxu0 0
        %3857 = vmatpush.bf16.msra.mxu0 0
        %3858 = vmatpush.bf16.msra.mxu0 0
        %3859 = vmatpush.bf16.msra.mxu0 0
        %3860 = vmatpush.bf16.msra.mxu0 %v906
        %3861 = vmatpush.bf16.msra.mxu0 %v902
        %3862 = vmatmul.bf16.gmra.mxu0 %v3839
        %v3863 = vpop.f32.mrf.mxu0
        %v3864 = vadd.f32 %v3809, %v3863
        %v3865 = vpop.f32.mrf.mxu0
        %3866 = vdwg.mxu0
        %3867 = vmatpush.bf16.msra.mxu0 0
        %3868 = vmatpush.bf16.msra.mxu0 0
        %3869 = vmatpush.bf16.msra.mxu0 0
        %3870 = vmatpush.bf16.msra.mxu0 0
        %3871 = vmatpush.bf16.msra.mxu0 0
        %3872 = vmatpush.bf16.msra.mxu0 0
        %3873 = vmatpush.bf16.msra.mxu0 %v907
        %3874 = vmatpush.bf16.msra.mxu0 %v903
        %3875 = vmatmul.bf16.gmra.mxu0 %v3839
        %v3876 = vpop.f32.mrf.mxu0
        %v3877 = vadd.f32 %v3822, %v3876
        %v3878 = vpop.f32.mrf.mxu0
        %3879 = vdwg.mxu0
        %3880 = vmatpush.bf16.msra.mxu0 0
        %3881 = vmatpush.bf16.msra.mxu0 0
        %3882 = vmatpush.bf16.msra.mxu0 0
        %3883 = vmatpush.bf16.msra.mxu0 0
        %3884 = vmatpush.bf16.msra.mxu0 0
        %3885 = vmatpush.bf16.msra.mxu0 0
        %3886 = vmatpush.bf16.msra.mxu0 %v908
        %3887 = vmatpush.bf16.msra.mxu0 %v904
        %3888 = vmatmul.bf16.gmra.mxu0 %v3839
        %v3889 = vpop.f32.mrf.mxu0
        %v3890 = vadd.f32 %v3835, %v3889
        %v3891 = vpop.f32.mrf.mxu0
        %3892 = vdwg.mxu0
        %v3893 = vadd.f32 %v3851, %v973
        %v3894 = vadd.f32 %v3864, %v974
        %v3895 = vadd.f32 %v3877, %v975
        %v3896 = vadd.f32 %v3890, %v976
        %v3897 = vxor.u32 %v3893, 2147483648
        %v3898 = vmul.f32 %v3897, 1.442695
        %v3899 = vpow.pop %v3898
        %v3900 = vadd.f32 %v3899, 1.0
        %v3901 = vrcp.pop %v3900
        %v3902 = vmul.f32 %v3900, %v3901
        %v3903 = vsub.f32 1.0, %v3902
        %v3904 = vmul.f32 %v3901, %v3903
        %v3905 = vadd.f32 %v3901, %v3904
        %vm3906 = vweird.f32 %v3900
        %vm3907 = vweird.f32 %v3901
        %vm3908 = vmor %vm3906, %vm3907
        %v3909 = vsel %vm3908, %v3901, %v3905
        %v3910 = vand.u32 2147483647, %v3900
        %vm3911 = vcmp.eq.f32.partialorder %v3910, 8.507059e+37
        %v3912 = vand.u32 %v3900, 2147483648
        %v3913 = vor.u32 1.1754944e-38, %v3912
        %v3914 = vsel %vm3911, %v3913, %v3909
        %v3915 = vmul.f32 1.0, %v3914
        %v3916 = vxor.u32 %v3894, 2147483648
        %v3917 = vmul.f32 %v3916, 1.442695
        %v3918 = vpow.pop %v3917
        %v3919 = vadd.f32 %v3918, 1.0
        %v3920 = vrcp.pop %v3919
        %v3921 = vmul.f32 %v3919, %v3920
        %v3922 = vsub.f32 1.0, %v3921
        %v3923 = vmul.f32 %v3920, %v3922
        %v3924 = vadd.f32 %v3920, %v3923
        %vm3925 = vweird.f32 %v3919
        %vm3926 = vweird.f32 %v3920
        %vm3927 = vmor %vm3925, %vm3926
        %v3928 = vsel %vm3927, %v3920, %v3924
        %v3929 = vand.u32 2147483647, %v3919
        %vm3930 = vcmp.eq.f32.partialorder %v3929, 8.507059e+37
        %v3931 = vand.u32 %v3919, 2147483648
        %v3932 = vor.u32 1.1754944e-38, %v3931
        %v3933 = vsel %vm3930, %v3932, %v3928
        %v3934 = vmul.f32 1.0, %v3933
        %v3935 = vxor.u32 %v3895, 2147483648
        %v3936 = vmul.f32 %v3935, 1.442695
        %v3937 = vpow.pop %v3936
        %v3938 = vadd.f32 %v3937, 1.0
        %v3939 = vrcp.pop %v3938
        %v3940 = vmul.f32 %v3938, %v3939
        %v3941 = vsub.f32 1.0, %v3940
        %v3942 = vmul.f32 %v3939, %v3941
        %v3943 = vadd.f32 %v3939, %v3942
        %vm3944 = vweird.f32 %v3938
        %vm3945 = vweird.f32 %v3939
        %vm3946 = vmor %vm3944, %vm3945
        %v3947 = vsel %vm3946, %v3939, %v3943
        %v3948 = vand.u32 2147483647, %v3938
        %vm3949 = vcmp.eq.f32.partialorder %v3948, 8.507059e+37
        %v3950 = vand.u32 %v3938, 2147483648
        %v3951 = vor.u32 1.1754944e-38, %v3950
        %v3952 = vsel %vm3949, %v3951, %v3947
        %v3953 = vmul.f32 1.0, %v3952
        %v3954 = vtanh.pop %v3896
        %v3955 = vmul.f32 %v3593, %v3915
        %v3956 = vmul.f32 %v3934, %v3954
        %v3957 = vadd.f32 %v3955, %v3956
        %v3958 = vtanh.pop %v3957
        %v3959 = vmul.f32 %v3953, %v3958
        %v3960 = vsub.f32 %v3957, %v3593
        %v3961 = vmul.f32 %v3785, %v3960
        %v3962 = vadd.f32 %v3593, %v3961
        %v3963 = vsub.f32 %v3959, %v3596
        %v3964 = vmul.f32 %v3785, %v3963
        %v3965 = vadd.f32 %v3596, %v3964
        %v3966 = vpack.c.bf16 %v3965, %v3965
        %v3967 = vpack.c.bf16 %v3775, %v3775
        %3968 = vmatpush.bf16.msra.mxu0 %v1180
        %3969 = vmatpush.bf16.msra.mxu0 %v1176
        %3970 = vmatpush.bf16.msra.mxu0 %v1172
        %3971 = vmatpush.bf16.msra.mxu0 %v1168
        %3972 = vmatpush.bf16.msra.mxu0 %v1164
        %3973 = vmatpush.bf16.msra.mxu0 %v1160
        %3974 = vmatpush.bf16.msra.mxu0 %v1156
        %3975 = vmatpush.bf16.msra.mxu0 %v1152
        %3976 = vmatmul.bf16.gmra.mxu0 %v3967
        %v3977 = vpop.f32.mrf.mxu0
        %v3978 = vadd.f32 0.0, %v3977
        %v3979 = vpop.f32.mrf.mxu0
        %3980 = vdwg.mxu0
        %3981 = vmatpush.bf16.msra.mxu0 %v1181
        %3982 = vmatpush.bf16.msra.mxu0 %v1177
        %3983 = vmatpush.bf16.msra.mxu0 %v1173
        %3984 = vmatpush.bf16.msra.mxu0 %v1169
        %3985 = vmatpush.bf16.msra.mxu0 %v1165
        %3986 = vmatpush.bf16.msra.mxu0 %v1161
        %3987 = vmatpush.bf16.msra.mxu0 %v1157
        %3988 = vmatpush.bf16.msra.mxu0 %v1153
        %3989 = vmatmul.bf16.gmra.mxu0 %v3967
        %v3990 = vpop.f32.mrf.mxu0
        %v3991 = vadd.f32 0.0, %v3990
        %v3992 = vpop.f32.mrf.mxu0
        %3993 = vdwg.mxu0
        %3994 = vmatpush.bf16.msra.mxu0 %v1182
        %3995 = vmatpush.bf16.msra.mxu0 %v1178
        %3996 = vmatpush.bf16.msra.mxu0 %v1174
        %3997 = vmatpush.bf16.msra.mxu0 %v1170
        %3998 = vmatpush.bf16.msra.mxu0 %v1166
        %3999 = vmatpush.bf16.msra.mxu0 %v1162
        %4000 = vmatpush.bf16.msra.mxu0 %v1158
        %4001 = vmatpush.bf16.msra.mxu0 %v1154
        %4002 = vmatmul.bf16.gmra.mxu0 %v3967
        %v4003 = vpop.f32.mrf.mxu0
        %v4004 = vadd.f32 0.0, %v4003
        %v4005 = vpop.f32.mrf.mxu0
        %4006 = vdwg.mxu0
        %4007 = vmatpush.bf16.msra.mxu0 %v1183
        %4008 = vmatpush.bf16.msra.mxu0 %v1179
        %4009 = vmatpush.bf16.msra.mxu0 %v1175
        %4010 = vmatpush.bf16.msra.mxu0 %v1171
        %4011 = vmatpush.bf16.msra.mxu0 %v1167
        %4012 = vmatpush.bf16.msra.mxu0 %v1163
        %4013 = vmatpush.bf16.msra.mxu0 %v1159
        %4014 = vmatpush.bf16.msra.mxu0 %v1155
        %4015 = vmatmul.bf16.gmra.mxu0 %v3967
        %v4016 = vpop.f32.mrf.mxu0
        %v4017 = vadd.f32 0.0, %v4016
        %v4018 = vpop.f32.mrf.mxu0
        %4019 = vdwg.mxu0
        %4020 = vmatpush.bf16.msra.mxu0 %v1392
        %4021 = vmatpush.bf16.msra.mxu0 %v1388
        %4022 = vmatpush.bf16.msra.mxu0 %v1384
        %4023 = vmatpush.bf16.msra.mxu0 %v1380
        %4024 = vmatpush.bf16.msra.mxu0 %v1376
        %4025 = vmatpush.bf16.msra.mxu0 %v1372
        %4026 = vmatpush.bf16.msra.mxu0 %v1368
        %4027 = vmatpush.bf16.msra.mxu0 %v1364
        %4028 = vmatmul.bf16.gmra.mxu0 %v3966
        %v4029 = vpop.f32.mrf.mxu0
        %v4030 = vadd.f32 %v3978, %v4029
        %v4031 = vpop.f32.mrf.mxu0
        %4032 = vdwg.mxu0
        %4033 = vmatpush.bf16.msra.mxu0 %v1393
        %4034 = vmatpush.bf16.msra.mxu0 %v1389
        %4035 = vmatpush.bf16.msra.mxu0 %v1385
        %4036 = vmatpush.bf16.msra.mxu0 %v1381
        %4037 = vmatpush.bf16.msra.mxu0 %v1377
        %4038 = vmatpush.bf16.msra.mxu0 %v1373
        %4039 = vmatpush.bf16.msra.mxu0 %v1369
        %4040 = vmatpush.bf16.msra.mxu0 %v1365
        %4041 = vmatmul.bf16.gmra.mxu0 %v3966
        %v4042 = vpop.f32.mrf.mxu0
        %v4043 = vadd.f32 %v3991, %v4042
        %v4044 = vpop.f32.mrf.mxu0
        %4045 = vdwg.mxu0
        %4046 = vmatpush.bf16.msra.mxu0 %v1394
        %4047 = vmatpush.bf16.msra.mxu0 %v1390
        %4048 = vmatpush.bf16.msra.mxu0 %v1386
        %4049 = vmatpush.bf16.msra.mxu0 %v1382
        %4050 = vmatpush.bf16.msra.mxu0 %v1378
        %4051 = vmatpush.bf16.msra.mxu0 %v1374
        %4052 = vmatpush.bf16.msra.mxu0 %v1370
        %4053 = vmatpush.bf16.msra.mxu0 %v1366
        %4054 = vmatmul.bf16.gmra.mxu0 %v3966
        %v4055 = vpop.f32.mrf.mxu0
        %v4056 = vadd.f32 %v4004, %v4055
        %v4057 = vpop.f32.mrf.mxu0
        %4058 = vdwg.mxu0
        %4059 = vmatpush.bf16.msra.mxu0 %v1395
        %4060 = vmatpush.bf16.msra.mxu0 %v1391
        %4061 = vmatpush.bf16.msra.mxu0 %v1387
        %4062 = vmatpush.bf16.msra.mxu0 %v1383
        %4063 = vmatpush.bf16.msra.mxu0 %v1379
        %4064 = vmatpush.bf16.msra.mxu0 %v1375
        %4065 = vmatpush.bf16.msra.mxu0 %v1371
        %4066 = vmatpush.bf16.msra.mxu0 %v1367
        %4067 = vmatmul.bf16.gmra.mxu0 %v3966
        %v4068 = vpop.f32.mrf.mxu0
        %v4069 = vadd.f32 %v4017, %v4068
        %v4070 = vpop.f32.mrf.mxu0
        %4071 = vdwg.mxu0
        %v4072 = vadd.f32 %v4030, %v1481
        %v4073 = vadd.f32 %v4043, %v1482
        %v4074 = vadd.f32 %v4056, %v1483
        %v4075 = vadd.f32 %v4069, %v1484
        %v4076 = vxor.u32 %v4072, 2147483648
        %v4077 = vmul.f32 %v4076, 1.442695
        %v4078 = vpow.pop %v4077
        %v4079 = vadd.f32 %v4078, 1.0
        %v4080 = vrcp.pop %v4079
        %v4081 = vmul.f32 %v4079, %v4080
        %v4082 = vsub.f32 1.0, %v4081
        %v4083 = vmul.f32 %v4080, %v4082
        %v4084 = vadd.f32 %v4080, %v4083
        %vm4085 = vweird.f32 %v4079
        %vm4086 = vweird.f32 %v4080
        %vm4087 = vmor %vm4085, %vm4086
        %v4088 = vsel %vm4087, %v4080, %v4084
        %v4089 = vand.u32 2147483647, %v4079
        %vm4090 = vcmp.eq.f32.partialorder %v4089, 8.507059e+37
        %v4091 = vand.u32 %v4079, 2147483648
        %v4092 = vor.u32 1.1754944e-38, %v4091
        %v4093 = vsel %vm4090, %v4092, %v4088
        %v4094 = vmul.f32 1.0, %v4093
        %v4095 = vxor.u32 %v4073, 2147483648
        %v4096 = vmul.f32 %v4095, 1.442695
        %v4097 = vpow.pop %v4096
        %v4098 = vadd.f32 %v4097, 1.0
        %v4099 = vrcp.pop %v4098
        %v4100 = vmul.f32 %v4098, %v4099
        %v4101 = vsub.f32 1.0, %v4100
        %v4102 = vmul.f32 %v4099, %v4101
        %v4103 = vadd.f32 %v4099, %v4102
        %vm4104 = vweird.f32 %v4098
        %vm4105 = vweird.f32 %v4099
        %vm4106 = vmor %vm4104, %vm4105
        %v4107 = vsel %vm4106, %v4099, %v4103
        %v4108 = vand.u32 2147483647, %v4098
        %vm4109 = vcmp.eq.f32.partialorder %v4108, 8.507059e+37
        %v4110 = vand.u32 %v4098, 2147483648
        %v4111 = vor.u32 1.1754944e-38, %v4110
        %v4112 = vsel %vm4109, %v4111, %v4107
        %v4113 = vmul.f32 1.0, %v4112
        %v4114 = vxor.u32 %v4074, 2147483648
        %v4115 = vmul.f32 %v4114, 1.442695
        %v4116 = vpow.pop %v4115
        %v4117 = vadd.f32 %v4116, 1.0
        %v4118 = vrcp.pop %v4117
        %v4119 = vmul.f32 %v4117, %v4118
        %v4120 = vsub.f32 1.0, %v4119
        %v4121 = vmul.f32 %v4118, %v4120
        %v4122 = vadd.f32 %v4118, %v4121
        %vm4123 = vweird.f32 %v4117
        %vm4124 = vweird.f32 %v4118
        %vm4125 = vmor %vm4123, %vm4124
        %v4126 = vsel %vm4125, %v4118, %v4122
        %v4127 = vand.u32 2147483647, %v4117
        %vm4128 = vcmp.eq.f32.partialorder %v4127, 8.507059e+37
        %v4129 = vand.u32 %v4117, 2147483648
        %v4130 = vor.u32 1.1754944e-38, %v4129
        %v4131 = vsel %vm4128, %v4130, %v4126
        %v4132 = vmul.f32 1.0, %v4131
        %v4133 = vtanh.pop %v4075
        %v4134 = vmul.f32 %v3772, %v4094
        %v4135 = vmul.f32 %v4113, %v4133
        %v4136 = vadd.f32 %v4134, %v4135
        %v4137 = vtanh.pop %v4136
        %v4138 = vmul.f32 %v4132, %v4137
        %v4139 = vsub.f32 %v4136, %v3772
        %v4140 = vmul.f32 %v3785, %v4139
        %v4141 = vadd.f32 %v3772, %v4140
        %v4142 = vsub.f32 %v4138, %v3775
        %v4143 = vmul.f32 %v3785, %v4142
        %v4144 = vadd.f32 %v3775, %v4143
        %4145 = vst [vmem:[#allocation2] sm:$0xff] %v3965
        %4146 = vst [vmem:[#allocation4] sm:$0xff] %v3962
        %4147 = vst [vmem:[#allocation3] sm:$0xff] %v4144
        %4148 = vst [vmem:[#allocation5] sm:$0xff] %v4141
        %p4149 = scmp.eq.s32.totalorder %s38, 1
        // Predicated region
        $region97: #{tpu_custom_call.1} parent=59 // pred_check
          %p4150 = pneg %p4149
        $region98: #{tpu_custom_call.1} parent=59 // pred_check_branch
          %4152 = sbr.rel (%p4150) target = $region100
        $region99: #{tpu_custom_call.1} parent=59 // pred_region
          %v4153 = vpack.c.bf16 %v4144, %v4144
          %v4154 = vld [vmem:[#allocation18] sm:$0xf]
          %v4155 = vld [vmem:[#allocation18 + $0x4] sm:$0xf]
          %v4156 = vld [vmem:[#allocation18 + $0x8] sm:$0xf]
          %v4157 = vld [vmem:[#allocation18 + $0xc] sm:$0xf]
          %v4158 = vld [vmem:[#allocation18 + $0x10] sm:$0xf]
          %v4159 = vld [vmem:[#allocation18 + $0x14] sm:$0xf]
          %v4160 = vld [vmem:[#allocation18 + $0x18] sm:$0xf]
          %v4161 = vld [vmem:[#allocation18 + $0x1c] sm:$0xf]
          %v4162 = vld [vmem:[#allocation18 + $0x20] sm:$0xf]
          %v4163 = vld [vmem:[#allocation18 + $0x24] sm:$0xf]
          %v4164 = vld [vmem:[#allocation18 + $0x28] sm:$0xf]
          %v4165 = vld [vmem:[#allocation18 + $0x2c] sm:$0xf]
          %v4166 = vld [vmem:[#allocation18 + $0x30] sm:$0xf]
          %v4167 = vld [vmem:[#allocation18 + $0x34] sm:$0xf]
          %v4168 = vld [vmem:[#allocation18 + $0x38] sm:$0xf]
          %v4169 = vld [vmem:[#allocation18 + $0x3c] sm:$0xf]
          %v4170 = vld [vmem:[%s9] sm:$0x1]
          %v4172 = vperm.slane %v4170, 0
          %v4190 = vunpack.c.l.b16 %v4154
          %v4191 = vunpack.c.l.b16 %v4155
          %v4192 = vunpack.c.l.b16 %v4156
          %v4193 = vunpack.c.l.b16 %v4157
          %v4194 = vunpack.c.l.b16 %v4158
          %v4195 = vunpack.c.l.b16 %v4159
          %v4196 = vunpack.c.l.b16 %v4160
          %v4197 = vunpack.c.l.b16 %v4161
          %v4198 = vunpack.c.l.b16 %v4162
          %v4199 = vunpack.c.l.b16 %v4163
          %v4200 = vunpack.c.l.b16 %v4164
          %v4201 = vunpack.c.l.b16 %v4165
          %v4202 = vunpack.c.l.b16 %v4166
          %v4203 = vunpack.c.l.b16 %v4167
          %v4204 = vunpack.c.l.b16 %v4168
          %v4205 = vunpack.c.l.b16 %v4169
          %v4206 = vpack.c.b16 %v4191, %v4190
          %v4207 = vpack.c.b16 %v4193, %v4192
          %v4208 = vpack.c.b16 %v4195, %v4194
          %v4209 = vpack.c.b16 %v4197, %v4196
          %v4210 = vpack.c.b16 %v4199, %v4198
          %v4211 = vpack.c.b16 %v4201, %v4200
          %v4212 = vpack.c.b16 %v4203, %v4202
          %v4213 = vpack.c.b16 %v4205, %v4204
          %4222 = vmatpush.bf16.msra.mxu0 %v4213
          %4223 = vmatpush.bf16.msra.mxu0 %v4212
          %4224 = vmatpush.bf16.msra.mxu0 %v4211
          %4225 = vmatpush.bf16.msra.mxu0 %v4210
          %4226 = vmatpush.bf16.msra.mxu0 %v4209
          %4227 = vmatpush.bf16.msra.mxu0 %v4208
          %4228 = vmatpush.bf16.msra.mxu0 %v4207
          %4229 = vmatpush.bf16.msra.mxu0 %v4206
          %4230 = vmatmul.bf16.gmra.mxu0 %v4153
          %v4231 = vpop.f32.mrf.mxu0
          %v4232 = vadd.f32 %v4172, %v4231
          %v4233 = vpop.f32.mrf.mxu0
          %4234 = vdwg.mxu0
          %v4235 = vxor.u32 %v4232, 2147483648
          %v4236 = vmul.f32 %v4235, 1.442695
          %v4237 = vpow.pop %v4236
          %v4238 = vadd.f32 %v4237, 1.0
          %v4239 = vrcp.pop %v4238
          %v4240 = vmul.f32 %v4238, %v4239
          %v4241 = vsub.f32 1.0, %v4240
          %v4242 = vmul.f32 %v4239, %v4241
          %v4243 = vadd.f32 %v4239, %v4242
          %vm4244 = vweird.f32 %v4238
          %vm4245 = vweird.f32 %v4239
          %vm4246 = vmor %vm4244, %vm4245
          %v4247 = vsel %vm4246, %v4239, %v4243
          %v4248 = vand.u32 2147483647, %v4238
          %vm4249 = vcmp.eq.f32.partialorder %v4248, 8.507059e+37
          %v4250 = vand.u32 %v4238, 2147483648
          %v4251 = vor.u32 1.1754944e-38, %v4250
          %v4252 = vsel %vm4249, %v4251, %v4247
          %v4253 = vmul.f32 1.0, %v4252
          %4254 = vst [vmem:[%s531] sm:$0xff] %v4253
        $region100: #{tpu_custom_call.1} parent=59 // pred_fallthru
          _
        %s4255 = sand.u32 %s275, 1
        %s4256 = scalar_lea.sflag [#allocation8], %s4255
        %s4257 = sand.u32 %s275, 1
        %s4258 = smul.addr %s4257, 8
        %s4259 = scalar_lea.vmem [#allocation20], %s4258
        // Predicated region
        $region101: #{tpu_custom_call.1} parent=59 // pred_check
          %p4260 = pneg %p285
        $region102: #{tpu_custom_call.1} parent=59 // pred_check_branch
          %4262 = sbr.rel (%p4260) target = $region104
        $region103: #{tpu_custom_call.1} parent=59 // pred_region
          %4264 = vsyncadd %s4256, 0
          %s4265 = smul.addr %s37, 8
          %s4266 = scalar_lea.hbm %s10, %s4265
          %s4268 = sshll.u32 %s4259, 4
          %s4269 = int_to_ptr.vmem [resolvable:$true] %s4268
          %s4270 = sshll.u32 %s4266, 4
          %s4271 = int_to_ptr.hbm [resolvable:$true] %s4270
          %4273 = dma.vmem_to_hbm [thread:$0]  %s4269, 128, %s4271, %s4256
        $region104: #{tpu_custom_call.1} parent=59 // pred_fallthru
          _
      $region60: #{tpu_custom_call.1} parent=5 // pred_fallthru
        _
      %p4274 = scmp.le.s32.totalorder 2, %s28
      // Predicated region
      $region105: #{tpu_custom_call.1} parent=5 // pred_check
        %p4275 = pneg %p4274
      $region106: #{tpu_custom_call.1} parent=5 // pred_check_branch
        %4277 = sbr.rel (%p4275) target = $region108
      $region107: #{tpu_custom_call.1} parent=5 // pred_region
        %s4278 = ssub.s32 %s28, 2
        // Predicated region
        $region109: #{tpu_custom_call.1} parent=107 // pred_check
          %p4279 = pneg %p291
        $region110: #{tpu_custom_call.1} parent=107 // pred_check_branch
          %4281 = sbr.rel (%p4279) target = $region112
        $region111: #{tpu_custom_call.1} parent=107 // pred_region
          %s4282 = sand.u32 %s276, 1
          %s4283 = scalar_lea.sflag [#allocation8], %s4282
          %s4284 = sand.u32 %s276, 1
          %s4285 = smul.addr %s4284, 8
          %s4286 = scalar_lea.vmem [#allocation20], %s4285
          %4288 = dma.done %s4283, 128
        $region112: #{tpu_custom_call.1} parent=107 // pred_fallthru
          _
      $region108: #{tpu_custom_call.1} parent=5 // pred_fallthru
        _
    $region6: #{tpu_custom_call.1} parent=1 // loop_footer
      %s32 = sadd.s32 1, %s28
    $region7: #{tpu_custom_call.1} parent=1 // loop_footer_branch
      %27 = sbr.rel target = $region3
    $region8: #{tpu_custom_call.1} parent=1 // loop_exit
      _
    %4289 = vsyncpa [#allocation7], 1
    %s4290 = scalar_lea.sflag [#allocation7], 1
    %4291 = vsyncpa %s4290, 1
    %4292 = vsyncpa [#allocation10], 1
    %s4293 = scalar_lea.sflag [#allocation10], 1
    %4294 = vsyncpa %s4293, 1
    %4295 = vsyncpa [#allocation13], 1
    %4296 = vsyncpa [#allocation16], 1
    %4297 = vsyncpa [#allocation19], 1
    %4298 = vsyncpa [#allocation8], 1
    %s4299 = scalar_lea.sflag [#allocation8], 1
    %4300 = vsyncpa %s4299, 1

</llo_original>
